<compile_context>
chip_gen: v6e
topology: v6e:2x2x1
jax: 0.10.0
libtpu: 0.0.40
codegen_flags: <defaults>
</compile_context>

<pallas_src>
import jax
import jax.numpy as jnp
from jax.experimental import pallas as pl
from jax.experimental.pallas import tpu as pltpu


def _dpcnn_kernel(x_ref, wr0_ref, wr1_ref, wr2_ref, br_ref, wc9_ref, bc_ref,
                  wcls_ref, bcls_ref, out_ref, *pool_bufs):
    """One grid step = one chunk of `bs` batch elements.

    x_ref        : (bs, L, H)   input sequences
    wr{0,1,2}_ref: (H, F)       region-conv tap d weight  [h, f]
    br_ref       : (1, F)
    wc9_ref      : (3F, F)      conv weight rows          [d*F + f_in, f_out]
    bc_ref       : (1, F)
    wcls_ref     : (F, NL)      classifier weight (transposed)
    bcls_ref     : (1, NL)
    out_ref      : (1, bs, NL)  logits block for this grid step
    pool_bufs    : bs x (L, F)  per-element VMEM scratch for the stride-2 downsample
    """
    bs, L, H = x_ref.shape
    F = br_ref.shape[1]
    n0 = L - 2

    wr0 = wr0_ref[...]
    wr1 = wr1_ref[...]
    wr2 = wr2_ref[...]
    br = br_ref[...]
    bc = bc_ref[...]
    bcls = bcls_ref[...]
    wc9 = wc9_ref[...]
    wcls = wcls_ref[...]

    # Hoisted weight rows: reused by every conv / the classifier.
    wc_rows = [wc9[k:k + 1, :] for k in range(3 * F)]      # 9 x (1, F)
    wcls_rows = [wcls[f:f + 1, :] for f in range(F)]       # F x (1, NL)
    zrow = jnp.zeros((1, F), jnp.float32)

    def region_conv(xb):
        # Conv2d(1, F, (3, H)) as three accumulating MXU matmuls on sublane-shifted
        # views (no lane-axis im2col concat).
        a = jnp.dot(xb[0:n0, :], wr0, preferred_element_type=jnp.float32)
        a = a + jnp.dot(xb[1:n0 + 1, :], wr1, preferred_element_type=jnp.float32)
        a = a + jnp.dot(xb[2:n0 + 2, :], wr2, preferred_element_type=jnp.float32)
        return a + br                                       # (n0, F)

    def conv3(h):
        # padding1 + ReLU + Conv2d(F, F, (3, 1)); length preserving.
        # relu(pad(z)) == pad(relu(z)) since relu(0) == 0, so pad zeros fold in.
        # Unrolled into 9 VPU broadcast FMAs (no MXU round-trip latency).
        n = h.shape[0]
        p = jnp.concatenate([zrow, jnp.maximum(h, 0.0), zrow], axis=0)   # (n+2, F)
        cols = [p[:, f:f + 1] for f in range(F)]                          # F x (n+2, 1)
        acc = None
        for d in range(3):
            for fi in range(F):
                t = cols[fi][d:d + n, :] * wc_rows[d * F + fi]            # (n,1)*(1,F)
                acc = t if acc is None else acc + t
        return acc + bc                                                   # (n, F)

    def maxpool(h, buf):
        # padding2 + MaxPool2d((3, 1), stride=2): out[i] = max(p2[2i], p2[2i+1], p2[2i+2]).
        # Stride-1 sliding max done in registers; only the stride-2 downsample uses VMEM.
        n = h.shape[0]
        oh = (n - 2) // 2 + 1
        p2 = jnp.concatenate([h, zrow], axis=0)                           # (n+1, F)
        s = jnp.maximum(jnp.maximum(p2[0:n - 1, :], p2[1:n, :]), p2[2:n + 1, :])  # (n-1, F)
        if oh == 1:
            return s[0:1, :]
        buf[0:n - 1, :] = s
        return buf[pl.ds(0, oh, stride=2), :]                             # (oh, F)

    finals = []
    for b in range(bs):                      # static -> fully unrolled; per-element buffers
        h = region_conv(x_ref[b])            # (L-2, F)
        h = conv3(h)
        h = conv3(h)
        # pyramid blocks: shapes are static, so the loop fully unrolls at trace time
        while h.shape[0] >= 2:
            px = maxpool(h, pool_bufs[b])
            h = conv3(conv3(px)) + px
        finals.append(h)                     # (1, F)

    hfin = finals[0] if bs == 1 else jnp.concatenate(finals, axis=0)      # (bs, F)

    # classifier: F broadcast FMAs on the VPU (NL=4 -> MXU would be ~3% utilized)
    logits = None
    for f in range(F):
        t = hfin[:, f:f + 1] * wcls_rows[f]                               # (bs,1)*(1,NL)
        logits = t if logits is None else logits + t
    out_ref[0] = logits + bcls                                            # (bs, NL)


def _default_grid_steps(batch):
    """2 on v7x (2 TensorCores/chip) when the batch divides; 1 on v5e/v6e."""
    try:
        kind = jax.devices()[0].device_kind.lower()
    except Exception:
        return 1
    if batch % 2 == 0 and "v7" in kind:
        return 2
    return 1


def dpcnn_forward(x, params, *, grid_steps=None):
    """x: (B, L, H) float32 -> logits (B, num_labels)."""
    wr0, wr1, wr2, br, wc9, bc, wcls, bcls = params
    B, L, H = x.shape
    F = br.shape[1]
    NL = wcls.shape[1]
    if grid_steps is None:
        grid_steps = _default_grid_steps(B)
    assert B % grid_steps == 0, "batch must divide evenly over grid steps"
    bs = B // grid_steps

    out = pl.pallas_call(
        _dpcnn_kernel,
        out_shape=jax.ShapeDtypeStruct((grid_steps, bs, NL), jnp.float32),
        grid=(grid_steps,),
        in_specs=[
            pl.BlockSpec((bs, L, H), lambda g: (g, 0, 0)),
            pl.BlockSpec((H, F), lambda g: (0, 0)),
            pl.BlockSpec((H, F), lambda g: (0, 0)),
            pl.BlockSpec((H, F), lambda g: (0, 0)),
            pl.BlockSpec((1, F), lambda g: (0, 0)),
            pl.BlockSpec((3 * F, F), lambda g: (0, 0)),
            pl.BlockSpec((1, F), lambda g: (0, 0)),
            pl.BlockSpec((F, NL), lambda g: (0, 0)),
            pl.BlockSpec((1, NL), lambda g: (0, 0)),
        ],
        out_specs=pl.BlockSpec((1, bs, NL), lambda g: (g, 0, 0)),
        scratch_shapes=[pltpu.VMEM((L, F), jnp.float32) for _ in range(bs)],
        compiler_params=pltpu.CompilerParams(dimension_semantics=("parallel",)),
    )(x, wr0, wr1, wr2, br, wc9, bc, wcls, bcls)
    return out.reshape(B, NL)


def init_params(key, hidden_size, num_labels, n_filters=3):
    """Raw parameters with the exact PyTorch layouts."""
    k = jax.random.split(key, 6)
    w_region = 0.1 * jax.random.normal(k[0], (n_filters, 1, 3, hidden_size), jnp.float32)
    b_region = 0.1 * jax.random.normal(k[1], (n_filters,), jnp.float32)
    w_conv = 0.1 * jax.random.normal(k[2], (n_filters, n_filters, 3, 1), jnp.float32)
    b_conv = 0.1 * jax.random.normal(k[3], (n_filters,), jnp.float32)
    w_cls = 0.1 * jax.random.normal(k[4], (num_labels, n_filters), jnp.float32)
    b_cls = 0.1 * jax.random.normal(k[5], (num_labels,), jnp.float32)
    return w_region, b_region, w_conv, b_conv, w_cls, b_cls


def pack_params(raw):
    """Rearrange the PyTorch-layout weights into the kernel layouts."""
    w_region, b_region, w_conv, b_conv, w_cls, b_cls = raw
    F = w_region.shape[0]
    NL = w_cls.shape[0]
    # region conv split into its three taps: wr_d[h, f] = w_region[f, 0, d, h]
    wr0 = jnp.transpose(w_region[:, 0, 0, :], (1, 0))
    wr1 = jnp.transpose(w_region[:, 0, 1, :], (1, 0))
    wr2 = jnp.transpose(w_region[:, 0, 2, :], (1, 0))
    br = b_region.reshape(1, F)
    # conv weight rows: wc9[d*F + f_in, f_out] = w_conv[f_out, f_in, d, 0]
    wc9 = jnp.transpose(w_conv[:, :, :, 0], (2, 1, 0)).reshape(3 * F, F)
    bc = b_conv.reshape(1, F)
    wcls = w_cls.T                                                        # (F, NL)
    bcls = b_cls.reshape(1, NL)
    return wr0, wr1, wr2, br, wc9, bc, wcls, bcls


def dpcnn_reference(x, raw):
    """Plain-JAX reference built directly from the PyTorch-layout weights."""
    w_region, b_region, w_conv, b_conv, w_cls, b_cls = raw

    def conv_region(xb):                       # (L, H) -> (L-2, F)
        n = xb.shape[0] - 2
        taps = jnp.stack([xb[d:d + n] for d in range(3)], axis=0)          # (3, n, H)
        return jnp.einsum('dnh,fdh->nf', taps, w_region[:, 0]) + b_region

    def conv3(h):                              # (m, F) -> (m-2, F)
        n = h.shape[0] - 2
        taps = jnp.stack([h[d:d + n] for d in range(3)], axis=0)           # (3, n, F)
        return jnp.einsum('dng,fgd->nf', taps, w_conv[:, :, :, 0]) + b_conv

    pad1 = lambda z: jnp.pad(z, ((1, 1), (0, 0)))
    pad2 = lambda z: jnp.pad(z, ((0, 1), (0, 0)))
    relu = lambda z: jnp.maximum(z, 0.0)

    def maxpool(z):                            # on already padded z
        oh = (z.shape[0] - 3) // 2 + 1
        return jnp.stack([jnp.max(z[2 * i:2 * i + 3], axis=0) for i in range(oh)], axis=0)

    def single(xb):
        h = conv_region(xb)
        h = conv3(relu(pad1(h)))
        h = conv3(relu(pad1(h)))
        while h.shape[0] >= 2:
            px = maxpool(pad2(h))
            g = conv3(relu(pad1(px)))
            g = conv3(relu(pad1(g)))
            h = g + px
        return h[0] @ w_cls.T + b_cls

    return jnp.stack([single(x[b]) for b in range(x.shape[0])], axis=0)


if __name__ == "__main__":
    B, L, H = 2, 16, 32          # batch, seq_len, hidden_size
    NUM_LABELS, N_FILTERS = 4, 3

    key = jax.random.PRNGKey(0)
    kx, kp = jax.random.split(key)
    # TODO(synk): torch's x.squeeze() drops the batch dim when B==1; this script assumes B>1.
    seq_out = jax.random.normal(kx, (B, L, H), jnp.float32)
    raw = init_params(kp, H, NUM_LABELS, N_FILTERS)
    params = pack_params(raw)

    logits = dpcnn_forward(seq_out, params)
    logits = jax.block_until_ready(logits)

    ref = dpcnn_reference(seq_out, raw)
    assert logits.shape == (B, NUM_LABELS)
    assert jnp.allclose(logits, ref, atol=1e-4, rtol=1e-4), (logits, ref)
    print("KERNEL_OK")
</pallas_src>

<mosaic_0001>
module attributes {stable_mosaic.version = 11 : i64} {
  func.func @_dpcnn_kernel(%arg0: i32, %arg1: memref<2x16x32xf32, #tpu.memory_space<vmem>>, %arg2: memref<32x3xf32, #tpu.memory_space<vmem>>, %arg3: memref<32x3xf32, #tpu.memory_space<vmem>>, %arg4: memref<32x3xf32, #tpu.memory_space<vmem>>, %arg5: memref<1x3xf32, #tpu.memory_space<vmem>>, %arg6: memref<9x3xf32, #tpu.memory_space<vmem>>, %arg7: memref<1x3xf32, #tpu.memory_space<vmem>>, %arg8: memref<3x4xf32, #tpu.memory_space<vmem>>, %arg9: memref<1x4xf32, #tpu.memory_space<vmem>>, %arg10: memref<1x2x4xf32, #tpu.memory_space<vmem>>, %arg11: memref<16x3xf32, #tpu.memory_space<vmem>>, %arg12: memref<16x3xf32, #tpu.memory_space<vmem>>) attributes {dimension_semantics = [#tpu.dimension_semantics<parallel>], iteration_bounds = array<i64: 1>, scalar_prefetch = 0 : i64, scratch_operands = 2 : i64, tpu.core_type = #tpu.core_type<tc>, window_params = [{transform_indices = @transform_0, window_bounds = array<i64: 2, 16, 32>}, {pipeline_mode = #tpu.pipeline_mode<synchronous>, transform_indices = @transform_1, window_bounds = array<i64: 32, 3>}, {pipeline_mode = #tpu.pipeline_mode<synchronous>, transform_indices = @transform_2, window_bounds = array<i64: 32, 3>}, {pipeline_mode = #tpu.pipeline_mode<synchronous>, transform_indices = @transform_3, window_bounds = array<i64: 32, 3>}, {pipeline_mode = #tpu.pipeline_mode<synchronous>, transform_indices = @transform_4, window_bounds = array<i64: 1, 3>}, {pipeline_mode = #tpu.pipeline_mode<synchronous>, transform_indices = @transform_5, window_bounds = array<i64: 9, 3>}, {pipeline_mode = #tpu.pipeline_mode<synchronous>, transform_indices = @transform_6, window_bounds = array<i64: 1, 3>}, {pipeline_mode = #tpu.pipeline_mode<synchronous>, transform_indices = @transform_7, window_bounds = array<i64: 3, 4>}, {pipeline_mode = #tpu.pipeline_mode<synchronous>, transform_indices = @transform_8, window_bounds = array<i64: 1, 4>}, {transform_indices = @transform_9, window_bounds = array<i64: 1, 2, 4>}]} {
    %c0 = arith.constant 0 : index
    %c0_0 = arith.constant 0 : index
    %0 = vector.load %arg2[%c0, %c0_0] : memref<32x3xf32, #tpu.memory_space<vmem>>, vector<32x3xf32>
    %c0_1 = arith.constant 0 : index
    %c0_2 = arith.constant 0 : index
    %1 = vector.load %arg3[%c0_1, %c0_2] : memref<32x3xf32, #tpu.memory_space<vmem>>, vector<32x3xf32>
    %c0_3 = arith.constant 0 : index
    %c0_4 = arith.constant 0 : index
    %2 = vector.load %arg4[%c0_3, %c0_4] : memref<32x3xf32, #tpu.memory_space<vmem>>, vector<32x3xf32>
    %c0_5 = arith.constant 0 : index
    %c0_6 = arith.constant 0 : index
    %3 = vector.load %arg5[%c0_5, %c0_6] : memref<1x3xf32, #tpu.memory_space<vmem>>, vector<1x3xf32>
    %c0_7 = arith.constant 0 : index
    %c0_8 = arith.constant 0 : index
    %4 = vector.load %arg7[%c0_7, %c0_8] : memref<1x3xf32, #tpu.memory_space<vmem>>, vector<1x3xf32>
    %c0_9 = arith.constant 0 : index
    %c0_10 = arith.constant 0 : index
    %5 = vector.load %arg9[%c0_9, %c0_10] : memref<1x4xf32, #tpu.memory_space<vmem>>, vector<1x4xf32>
    %c0_11 = arith.constant 0 : index
    %c0_12 = arith.constant 0 : index
    %6 = vector.load %arg6[%c0_11, %c0_12] : memref<9x3xf32, #tpu.memory_space<vmem>>, vector<9x3xf32>
    %c0_13 = arith.constant 0 : index
    %c0_14 = arith.constant 0 : index
    %7 = vector.load %arg8[%c0_13, %c0_14] : memref<3x4xf32, #tpu.memory_space<vmem>>, vector<3x4xf32>
    %8 = vector.extract_strided_slice %6 {offsets = [0, 0], sizes = [1, 3], strides = [1, 1]} : vector<9x3xf32> to vector<1x3xf32>
    %9 = vector.extract_strided_slice %6 {offsets = [1, 0], sizes = [1, 3], strides = [1, 1]} : vector<9x3xf32> to vector<1x3xf32>
    %10 = vector.extract_strided_slice %6 {offsets = [2, 0], sizes = [1, 3], strides = [1, 1]} : vector<9x3xf32> to vector<1x3xf32>
    %11 = vector.extract_strided_slice %6 {offsets = [3, 0], sizes = [1, 3], strides = [1, 1]} : vector<9x3xf32> to vector<1x3xf32>
    %12 = vector.extract_strided_slice %6 {offsets = [4, 0], sizes = [1, 3], strides = [1, 1]} : vector<9x3xf32> to vector<1x3xf32>
    %13 = vector.extract_strided_slice %6 {offsets = [5, 0], sizes = [1, 3], strides = [1, 1]} : vector<9x3xf32> to vector<1x3xf32>
    %14 = vector.extract_strided_slice %6 {offsets = [6, 0], sizes = [1, 3], strides = [1, 1]} : vector<9x3xf32> to vector<1x3xf32>
    %15 = vector.extract_strided_slice %6 {offsets = [7, 0], sizes = [1, 3], strides = [1, 1]} : vector<9x3xf32> to vector<1x3xf32>
    %16 = vector.extract_strided_slice %6 {offsets = [8, 0], sizes = [1, 3], strides = [1, 1]} : vector<9x3xf32> to vector<1x3xf32>
    %17 = vector.extract_strided_slice %7 {offsets = [0, 0], sizes = [1, 4], strides = [1, 1]} : vector<3x4xf32> to vector<1x4xf32>
    %18 = vector.extract_strided_slice %7 {offsets = [1, 0], sizes = [1, 4], strides = [1, 1]} : vector<3x4xf32> to vector<1x4xf32>
    %19 = vector.extract_strided_slice %7 {offsets = [2, 0], sizes = [1, 4], strides = [1, 1]} : vector<3x4xf32> to vector<1x4xf32>
    %cst = arith.constant 0.000000e+00 : f32
    %20 = vector.broadcast %cst : f32 to vector<1x3xf32>
    %c0_15 = arith.constant 0 : index
    %c0_16 = arith.constant 0 : index
    %c0_17 = arith.constant 0 : index
    %21 = vector.load %arg1[%c0_15, %c0_16, %c0_17] : memref<2x16x32xf32, #tpu.memory_space<vmem>>, vector<1x16x32xf32>
    %22 = vector.shape_cast %21 : vector<1x16x32xf32> to vector<16x32xf32>
    %23 = vector.extract_strided_slice %22 {offsets = [0, 0], sizes = [14, 32], strides = [1, 1]} : vector<16x32xf32> to vector<14x32xf32>
    %cst_18 = arith.constant dense<0.000000e+00> : vector<14x3xf32>
    %24 = tpu.matmul %23, %0, %cst_18 {dimension_numbers = #tpu.dot_dimension_numbers<[1], [0], [0], [1], [0, 0, 1, 1], [], []>} : vector<14x32xf32>, vector<32x3xf32>, vector<14x3xf32> -> vector<14x3xf32>
    %25 = vector.extract_strided_slice %22 {offsets = [1, 0], sizes = [14, 32], strides = [1, 1]} : vector<16x32xf32> to vector<14x32xf32>
    %cst_19 = arith.constant dense<0.000000e+00> : vector<14x3xf32>
    %26 = tpu.matmul %25, %1, %cst_19 {dimension_numbers = #tpu.dot_dimension_numbers<[1], [0], [0], [1], [0, 0, 1, 1], [], []>} : vector<14x32xf32>, vector<32x3xf32>, vector<14x3xf32> -> vector<14x3xf32>
    %27 = arith.addf %24, %26 : vector<14x3xf32>
    %28 = vector.extract_strided_slice %22 {offsets = [2, 0], sizes = [14, 32], strides = [1, 1]} : vector<16x32xf32> to vector<14x32xf32>
    %cst_20 = arith.constant dense<0.000000e+00> : vector<14x3xf32>
    %29 = tpu.matmul %28, %2, %cst_20 {dimension_numbers = #tpu.dot_dimension_numbers<[1], [0], [0], [1], [0, 0, 1, 1], [], []>} : vector<14x32xf32>, vector<32x3xf32>, vector<14x3xf32> -> vector<14x3xf32>
    %30 = arith.addf %27, %29 : vector<14x3xf32>
    %31 = vector.broadcast %3 : vector<1x3xf32> to vector<14x3xf32>
    %32 = arith.addf %30, %31 : vector<14x3xf32>
    %cst_21 = arith.constant 0.000000e+00 : f32
    %33 = vector.broadcast %cst_21 : f32 to vector<14x3xf32>
    %34 = arith.maximumf %32, %33 : vector<14x3xf32>
    %35 = tpu.concatenate %20, %34, %20 in 0 : vector<1x3xf32>, vector<14x3xf32>, vector<1x3xf32> -> vector<16x3xf32>
    %36 = vector.extract_strided_slice %35 {offsets = [0, 0], sizes = [16, 1], strides = [1, 1]} : vector<16x3xf32> to vector<16x1xf32>
    %37 = vector.extract_strided_slice %35 {offsets = [0, 1], sizes = [16, 1], strides = [1, 1]} : vector<16x3xf32> to vector<16x1xf32>
    %38 = vector.extract_strided_slice %35 {offsets = [0, 2], sizes = [16, 1], strides = [1, 1]} : vector<16x3xf32> to vector<16x1xf32>
    %39 = vector.extract_strided_slice %36 {offsets = [0, 0], sizes = [14, 1], strides = [1, 1]} : vector<16x1xf32> to vector<14x1xf32>
    %40 = vector.broadcast %39 : vector<14x1xf32> to vector<14x3xf32>
    %41 = vector.broadcast %8 : vector<1x3xf32> to vector<14x3xf32>
    %42 = arith.mulf %40, %41 : vector<14x3xf32>
    %43 = vector.extract_strided_slice %37 {offsets = [0, 0], sizes = [14, 1], strides = [1, 1]} : vector<16x1xf32> to vector<14x1xf32>
    %44 = vector.broadcast %43 : vector<14x1xf32> to vector<14x3xf32>
    %45 = vector.broadcast %9 : vector<1x3xf32> to vector<14x3xf32>
    %46 = arith.mulf %44, %45 : vector<14x3xf32>
    %47 = arith.addf %42, %46 : vector<14x3xf32>
    %48 = vector.extract_strided_slice %38 {offsets = [0, 0], sizes = [14, 1], strides = [1, 1]} : vector<16x1xf32> to vector<14x1xf32>
    %49 = vector.broadcast %48 : vector<14x1xf32> to vector<14x3xf32>
    %50 = vector.broadcast %10 : vector<1x3xf32> to vector<14x3xf32>
    %51 = arith.mulf %49, %50 : vector<14x3xf32>
    %52 = arith.addf %47, %51 : vector<14x3xf32>
    %53 = vector.extract_strided_slice %36 {offsets = [1, 0], sizes = [14, 1], strides = [1, 1]} : vector<16x1xf32> to vector<14x1xf32>
    %54 = vector.broadcast %53 : vector<14x1xf32> to vector<14x3xf32>
    %55 = vector.broadcast %11 : vector<1x3xf32> to vector<14x3xf32>
    %56 = arith.mulf %54, %55 : vector<14x3xf32>
    %57 = arith.addf %52, %56 : vector<14x3xf32>
    %58 = vector.extract_strided_slice %37 {offsets = [1, 0], sizes = [14, 1], strides = [1, 1]} : vector<16x1xf32> to vector<14x1xf32>
    %59 = vector.broadcast %58 : vector<14x1xf32> to vector<14x3xf32>
    %60 = vector.broadcast %12 : vector<1x3xf32> to vector<14x3xf32>
    %61 = arith.mulf %59, %60 : vector<14x3xf32>
    %62 = arith.addf %57, %61 : vector<14x3xf32>
    %63 = vector.extract_strided_slice %38 {offsets = [1, 0], sizes = [14, 1], strides = [1, 1]} : vector<16x1xf32> to vector<14x1xf32>
    %64 = vector.broadcast %63 : vector<14x1xf32> to vector<14x3xf32>
    %65 = vector.broadcast %13 : vector<1x3xf32> to vector<14x3xf32>
    %66 = arith.mulf %64, %65 : vector<14x3xf32>
    %67 = arith.addf %62, %66 : vector<14x3xf32>
    %68 = vector.extract_strided_slice %36 {offsets = [2, 0], sizes = [14, 1], strides = [1, 1]} : vector<16x1xf32> to vector<14x1xf32>
    %69 = vector.broadcast %68 : vector<14x1xf32> to vector<14x3xf32>
    %70 = vector.broadcast %14 : vector<1x3xf32> to vector<14x3xf32>
    %71 = arith.mulf %69, %70 : vector<14x3xf32>
    %72 = arith.addf %67, %71 : vector<14x3xf32>
    %73 = vector.extract_strided_slice %37 {offsets = [2, 0], sizes = [14, 1], strides = [1, 1]} : vector<16x1xf32> to vector<14x1xf32>
    %74 = vector.broadcast %73 : vector<14x1xf32> to vector<14x3xf32>
    %75 = vector.broadcast %15 : vector<1x3xf32> to vector<14x3xf32>
    %76 = arith.mulf %74, %75 : vector<14x3xf32>
    %77 = arith.addf %72, %76 : vector<14x3xf32>
    %78 = vector.extract_strided_slice %38 {offsets = [2, 0], sizes = [14, 1], strides = [1, 1]} : vector<16x1xf32> to vector<14x1xf32>
    %79 = vector.broadcast %78 : vector<14x1xf32> to vector<14x3xf32>
    %80 = vector.broadcast %16 : vector<1x3xf32> to vector<14x3xf32>
    %81 = arith.mulf %79, %80 : vector<14x3xf32>
    %82 = arith.addf %77, %81 : vector<14x3xf32>
    %83 = vector.broadcast %4 : vector<1x3xf32> to vector<14x3xf32>
    %84 = arith.addf %82, %83 : vector<14x3xf32>
    %cst_22 = arith.constant 0.000000e+00 : f32
    %85 = vector.broadcast %cst_22 : f32 to vector<14x3xf32>
    %86 = arith.maximumf %84, %85 : vector<14x3xf32>
    %87 = tpu.concatenate %20, %86, %20 in 0 : vector<1x3xf32>, vector<14x3xf32>, vector<1x3xf32> -> vector<16x3xf32>
    %88 = vector.extract_strided_slice %87 {offsets = [0, 0], sizes = [16, 1], strides = [1, 1]} : vector<16x3xf32> to vector<16x1xf32>
    %89 = vector.extract_strided_slice %87 {offsets = [0, 1], sizes = [16, 1], strides = [1, 1]} : vector<16x3xf32> to vector<16x1xf32>
    %90 = vector.extract_strided_slice %87 {offsets = [0, 2], sizes = [16, 1], strides = [1, 1]} : vector<16x3xf32> to vector<16x1xf32>
    %91 = vector.extract_strided_slice %88 {offsets = [0, 0], sizes = [14, 1], strides = [1, 1]} : vector<16x1xf32> to vector<14x1xf32>
    %92 = vector.broadcast %91 : vector<14x1xf32> to vector<14x3xf32>
    %93 = vector.broadcast %8 : vector<1x3xf32> to vector<14x3xf32>
    %94 = arith.mulf %92, %93 : vector<14x3xf32>
    %95 = vector.extract_strided_slice %89 {offsets = [0, 0], sizes = [14, 1], strides = [1, 1]} : vector<16x1xf32> to vector<14x1xf32>
    %96 = vector.broadcast %95 : vector<14x1xf32> to vector<14x3xf32>
    %97 = vector.broadcast %9 : vector<1x3xf32> to vector<14x3xf32>
    %98 = arith.mulf %96, %97 : vector<14x3xf32>
    %99 = arith.addf %94, %98 : vector<14x3xf32>
    %100 = vector.extract_strided_slice %90 {offsets = [0, 0], sizes = [14, 1], strides = [1, 1]} : vector<16x1xf32> to vector<14x1xf32>
    %101 = vector.broadcast %100 : vector<14x1xf32> to vector<14x3xf32>
    %102 = vector.broadcast %10 : vector<1x3xf32> to vector<14x3xf32>
    %103 = arith.mulf %101, %102 : vector<14x3xf32>
    %104 = arith.addf %99, %103 : vector<14x3xf32>
    %105 = vector.extract_strided_slice %88 {offsets = [1, 0], sizes = [14, 1], strides = [1, 1]} : vector<16x1xf32> to vector<14x1xf32>
    %106 = vector.broadcast %105 : vector<14x1xf32> to vector<14x3xf32>
    %107 = vector.broadcast %11 : vector<1x3xf32> to vector<14x3xf32>
    %108 = arith.mulf %106, %107 : vector<14x3xf32>
    %109 = arith.addf %104, %108 : vector<14x3xf32>
    %110 = vector.extract_strided_slice %89 {offsets = [1, 0], sizes = [14, 1], strides = [1, 1]} : vector<16x1xf32> to vector<14x1xf32>
    %111 = vector.broadcast %110 : vector<14x1xf32> to vector<14x3xf32>
    %112 = vector.broadcast %12 : vector<1x3xf32> to vector<14x3xf32>
    %113 = arith.mulf %111, %112 : vector<14x3xf32>
    %114 = arith.addf %109, %113 : vector<14x3xf32>
    %115 = vector.extract_strided_slice %90 {offsets = [1, 0], sizes = [14, 1], strides = [1, 1]} : vector<16x1xf32> to vector<14x1xf32>
    %116 = vector.broadcast %115 : vector<14x1xf32> to vector<14x3xf32>
    %117 = vector.broadcast %13 : vector<1x3xf32> to vector<14x3xf32>
    %118 = arith.mulf %116, %117 : vector<14x3xf32>
    %119 = arith.addf %114, %118 : vector<14x3xf32>
    %120 = vector.extract_strided_slice %88 {offsets = [2, 0], sizes = [14, 1], strides = [1, 1]} : vector<16x1xf32> to vector<14x1xf32>
    %121 = vector.broadcast %120 : vector<14x1xf32> to vector<14x3xf32>
    %122 = vector.broadcast %14 : vector<1x3xf32> to vector<14x3xf32>
    %123 = arith.mulf %121, %122 : vector<14x3xf32>
    %124 = arith.addf %119, %123 : vector<14x3xf32>
    %125 = vector.extract_strided_slice %89 {offsets = [2, 0], sizes = [14, 1], strides = [1, 1]} : vector<16x1xf32> to vector<14x1xf32>
    %126 = vector.broadcast %125 : vector<14x1xf32> to vector<14x3xf32>
    %127 = vector.broadcast %15 : vector<1x3xf32> to vector<14x3xf32>
    %128 = arith.mulf %126, %127 : vector<14x3xf32>
    %129 = arith.addf %124, %128 : vector<14x3xf32>
    %130 = vector.extract_strided_slice %90 {offsets = [2, 0], sizes = [14, 1], strides = [1, 1]} : vector<16x1xf32> to vector<14x1xf32>
    %131 = vector.broadcast %130 : vector<14x1xf32> to vector<14x3xf32>
    %132 = vector.broadcast %16 : vector<1x3xf32> to vector<14x3xf32>
    %133 = arith.mulf %131, %132 : vector<14x3xf32>
    %134 = arith.addf %129, %133 : vector<14x3xf32>
    %135 = vector.broadcast %4 : vector<1x3xf32> to vector<14x3xf32>
    %136 = arith.addf %134, %135 : vector<14x3xf32>
    %137 = tpu.concatenate %136, %20 in 0 : vector<14x3xf32>, vector<1x3xf32> -> vector<15x3xf32>
    %138 = vector.extract_strided_slice %137 {offsets = [0, 0], sizes = [13, 3], strides = [1, 1]} : vector<15x3xf32> to vector<13x3xf32>
    %139 = vector.extract_strided_slice %137 {offsets = [1, 0], sizes = [13, 3], strides = [1, 1]} : vector<15x3xf32> to vector<13x3xf32>
    %140 = arith.maximumf %138, %139 : vector<13x3xf32>
    %141 = vector.extract_strided_slice %137 {offsets = [2, 0], sizes = [13, 3], strides = [1, 1]} : vector<15x3xf32> to vector<13x3xf32>
    %142 = arith.maximumf %140, %141 : vector<13x3xf32>
    %c0_23 = arith.constant 0 : index
    %c0_24 = arith.constant 0 : index
    %143 = vector.load %arg11[%c0_23, %c0_24] : memref<16x3xf32, #tpu.memory_space<vmem>>, vector<13x3xf32>
    tpu.vector_store %arg11[%c0_23, %c0_24], %142 {strides = array<i32>} : memref<16x3xf32, #tpu.memory_space<vmem>>, vector<13x3xf32>,
    %c0_25 = arith.constant 0 : index
    %c0_26 = arith.constant 0 : index
    %144 = tpu.strided_load %arg11[%c0_25, %c0_26] {strides = array<i32: 2, 1>} : memref<16x3xf32, #tpu.memory_space<vmem>>, vector<7x3xf32>
    %cst_27 = arith.constant 0.000000e+00 : f32
    %145 = vector.broadcast %cst_27 : f32 to vector<7x3xf32>
    %146 = arith.maximumf %144, %145 : vector<7x3xf32>
    %147 = tpu.concatenate %20, %146, %20 in 0 : vector<1x3xf32>, vector<7x3xf32>, vector<1x3xf32> -> vector<9x3xf32>
    %148 = vector.extract_strided_slice %147 {offsets = [0, 0], sizes = [9, 1], strides = [1, 1]} : vector<9x3xf32> to vector<9x1xf32>
    %149 = vector.extract_strided_slice %147 {offsets = [0, 1], sizes = [9, 1], strides = [1, 1]} : vector<9x3xf32> to vector<9x1xf32>
    %150 = vector.extract_strided_slice %147 {offsets = [0, 2], sizes = [9, 1], strides = [1, 1]} : vector<9x3xf32> to vector<9x1xf32>
    %151 = vector.extract_strided_slice %148 {offsets = [0, 0], sizes = [7, 1], strides = [1, 1]} : vector<9x1xf32> to vector<7x1xf32>
    %152 = vector.broadcast %151 : vector<7x1xf32> to vector<7x3xf32>
    %153 = vector.broadcast %8 : vector<1x3xf32> to vector<7x3xf32>
    %154 = arith.mulf %152, %153 : vector<7x3xf32>
    %155 = vector.extract_strided_slice %149 {offsets = [0, 0], sizes = [7, 1], strides = [1, 1]} : vector<9x1xf32> to vector<7x1xf32>
    %156 = vector.broadcast %155 : vector<7x1xf32> to vector<7x3xf32>
    %157 = vector.broadcast %9 : vector<1x3xf32> to vector<7x3xf32>
    %158 = arith.mulf %156, %157 : vector<7x3xf32>
    %159 = arith.addf %154, %158 : vector<7x3xf32>
    %160 = vector.extract_strided_slice %150 {offsets = [0, 0], sizes = [7, 1], strides = [1, 1]} : vector<9x1xf32> to vector<7x1xf32>
    %161 = vector.broadcast %160 : vector<7x1xf32> to vector<7x3xf32>
    %162 = vector.broadcast %10 : vector<1x3xf32> to vector<7x3xf32>
    %163 = arith.mulf %161, %162 : vector<7x3xf32>
    %164 = arith.addf %159, %163 : vector<7x3xf32>
    %165 = vector.extract_strided_slice %148 {offsets = [1, 0], sizes = [7, 1], strides = [1, 1]} : vector<9x1xf32> to vector<7x1xf32>
    %166 = vector.broadcast %165 : vector<7x1xf32> to vector<7x3xf32>
    %167 = vector.broadcast %11 : vector<1x3xf32> to vector<7x3xf32>
    %168 = arith.mulf %166, %167 : vector<7x3xf32>
    %169 = arith.addf %164, %168 : vector<7x3xf32>
    %170 = vector.extract_strided_slice %149 {offsets = [1, 0], sizes = [7, 1], strides = [1, 1]} : vector<9x1xf32> to vector<7x1xf32>
    %171 = vector.broadcast %170 : vector<7x1xf32> to vector<7x3xf32>
    %172 = vector.broadcast %12 : vector<1x3xf32> to vector<7x3xf32>
    %173 = arith.mulf %171, %172 : vector<7x3xf32>
    %174 = arith.addf %169, %173 : vector<7x3xf32>
    %175 = vector.extract_strided_slice %150 {offsets = [1, 0], sizes = [7, 1], strides = [1, 1]} : vector<9x1xf32> to vector<7x1xf32>
    %176 = vector.broadcast %175 : vector<7x1xf32> to vector<7x3xf32>
    %177 = vector.broadcast %13 : vector<1x3xf32> to vector<7x3xf32>
    %178 = arith.mulf %176, %177 : vector<7x3xf32>
    %179 = arith.addf %174, %178 : vector<7x3xf32>
    %180 = vector.extract_strided_slice %148 {offsets = [2, 0], sizes = [7, 1], strides = [1, 1]} : vector<9x1xf32> to vector<7x1xf32>
    %181 = vector.broadcast %180 : vector<7x1xf32> to vector<7x3xf32>
    %182 = vector.broadcast %14 : vector<1x3xf32> to vector<7x3xf32>
    %183 = arith.mulf %181, %182 : vector<7x3xf32>
    %184 = arith.addf %179, %183 : vector<7x3xf32>
    %185 = vector.extract_strided_slice %149 {offsets = [2, 0], sizes = [7, 1], strides = [1, 1]} : vector<9x1xf32> to vector<7x1xf32>
    %186 = vector.broadcast %185 : vector<7x1xf32> to vector<7x3xf32>
    %187 = vector.broadcast %15 : vector<1x3xf32> to vector<7x3xf32>
    %188 = arith.mulf %186, %187 : vector<7x3xf32>
    %189 = arith.addf %184, %188 : vector<7x3xf32>
    %190 = vector.extract_strided_slice %150 {offsets = [2, 0], sizes = [7, 1], strides = [1, 1]} : vector<9x1xf32> to vector<7x1xf32>
    %191 = vector.broadcast %190 : vector<7x1xf32> to vector<7x3xf32>
    %192 = vector.broadcast %16 : vector<1x3xf32> to vector<7x3xf32>
    %193 = arith.mulf %191, %192 : vector<7x3xf32>
    %194 = arith.addf %189, %193 : vector<7x3xf32>
    %195 = vector.broadcast %4 : vector<1x3xf32> to vector<7x3xf32>
    %196 = arith.addf %194, %195 : vector<7x3xf32>
    %cst_28 = arith.constant 0.000000e+00 : f32
    %197 = vector.broadcast %cst_28 : f32 to vector<7x3xf32>
    %198 = arith.maximumf %196, %197 : vector<7x3xf32>
    %199 = tpu.concatenate %20, %198, %20 in 0 : vector<1x3xf32>, vector<7x3xf32>, vector<1x3xf32> -> vector<9x3xf32>
    %200 = vector.extract_strided_slice %199 {offsets = [0, 0], sizes = [9, 1], strides = [1, 1]} : vector<9x3xf32> to vector<9x1xf32>
    %201 = vector.extract_strided_slice %199 {offsets = [0, 1], sizes = [9, 1], strides = [1, 1]} : vector<9x3xf32> to vector<9x1xf32>
    %202 = vector.extract_strided_slice %199 {offsets = [0, 2], sizes = [9, 1], strides = [1, 1]} : vector<9x3xf32> to vector<9x1xf32>
    %203 = vector.extract_strided_slice %200 {offsets = [0, 0], sizes = [7, 1], strides = [1, 1]} : vector<9x1xf32> to vector<7x1xf32>
    %204 = vector.broadcast %203 : vector<7x1xf32> to vector<7x3xf32>
    %205 = vector.broadcast %8 : vector<1x3xf32> to vector<7x3xf32>
    %206 = arith.mulf %204, %205 : vector<7x3xf32>
    %207 = vector.extract_strided_slice %201 {offsets = [0, 0], sizes = [7, 1], strides = [1, 1]} : vector<9x1xf32> to vector<7x1xf32>
    %208 = vector.broadcast %207 : vector<7x1xf32> to vector<7x3xf32>
    %209 = vector.broadcast %9 : vector<1x3xf32> to vector<7x3xf32>
    %210 = arith.mulf %208, %209 : vector<7x3xf32>
    %211 = arith.addf %206, %210 : vector<7x3xf32>
    %212 = vector.extract_strided_slice %202 {offsets = [0, 0], sizes = [7, 1], strides = [1, 1]} : vector<9x1xf32> to vector<7x1xf32>
    %213 = vector.broadcast %212 : vector<7x1xf32> to vector<7x3xf32>
    %214 = vector.broadcast %10 : vector<1x3xf32> to vector<7x3xf32>
    %215 = arith.mulf %213, %214 : vector<7x3xf32>
    %216 = arith.addf %211, %215 : vector<7x3xf32>
    %217 = vector.extract_strided_slice %200 {offsets = [1, 0], sizes = [7, 1], strides = [1, 1]} : vector<9x1xf32> to vector<7x1xf32>
    %218 = vector.broadcast %217 : vector<7x1xf32> to vector<7x3xf32>
    %219 = vector.broadcast %11 : vector<1x3xf32> to vector<7x3xf32>
    %220 = arith.mulf %218, %219 : vector<7x3xf32>
    %221 = arith.addf %216, %220 : vector<7x3xf32>
    %222 = vector.extract_strided_slice %201 {offsets = [1, 0], sizes = [7, 1], strides = [1, 1]} : vector<9x1xf32> to vector<7x1xf32>
    %223 = vector.broadcast %222 : vector<7x1xf32> to vector<7x3xf32>
    %224 = vector.broadcast %12 : vector<1x3xf32> to vector<7x3xf32>
    %225 = arith.mulf %223, %224 : vector<7x3xf32>
    %226 = arith.addf %221, %225 : vector<7x3xf32>
    %227 = vector.extract_strided_slice %202 {offsets = [1, 0], sizes = [7, 1], strides = [1, 1]} : vector<9x1xf32> to vector<7x1xf32>
    %228 = vector.broadcast %227 : vector<7x1xf32> to vector<7x3xf32>
    %229 = vector.broadcast %13 : vector<1x3xf32> to vector<7x3xf32>
    %230 = arith.mulf %228, %229 : vector<7x3xf32>
    %231 = arith.addf %226, %230 : vector<7x3xf32>
    %232 = vector.extract_strided_slice %200 {offsets = [2, 0], sizes = [7, 1], strides = [1, 1]} : vector<9x1xf32> to vector<7x1xf32>
    %233 = vector.broadcast %232 : vector<7x1xf32> to vector<7x3xf32>
    %234 = vector.broadcast %14 : vector<1x3xf32> to vector<7x3xf32>
    %235 = arith.mulf %233, %234 : vector<7x3xf32>
    %236 = arith.addf %231, %235 : vector<7x3xf32>
    %237 = vector.extract_strided_slice %201 {offsets = [2, 0], sizes = [7, 1], strides = [1, 1]} : vector<9x1xf32> to vector<7x1xf32>
    %238 = vector.broadcast %237 : vector<7x1xf32> to vector<7x3xf32>
    %239 = vector.broadcast %15 : vector<1x3xf32> to vector<7x3xf32>
    %240 = arith.mulf %238, %239 : vector<7x3xf32>
    %241 = arith.addf %236, %240 : vector<7x3xf32>
    %242 = vector.extract_strided_slice %202 {offsets = [2, 0], sizes = [7, 1], strides = [1, 1]} : vector<9x1xf32> to vector<7x1xf32>
    %243 = vector.broadcast %242 : vector<7x1xf32> to vector<7x3xf32>
    %244 = vector.broadcast %16 : vector<1x3xf32> to vector<7x3xf32>
    %245 = arith.mulf %243, %244 : vector<7x3xf32>
    %246 = arith.addf %241, %245 : vector<7x3xf32>
    %247 = vector.broadcast %4 : vector<1x3xf32> to vector<7x3xf32>
    %248 = arith.addf %246, %247 : vector<7x3xf32>
    %249 = arith.addf %248, %144 : vector<7x3xf32>
    %250 = tpu.concatenate %249, %20 in 0 : vector<7x3xf32>, vector<1x3xf32> -> vector<8x3xf32>
    %251 = vector.extract_strided_slice %250 {offsets = [0, 0], sizes = [6, 3], strides = [1, 1]} : vector<8x3xf32> to vector<6x3xf32>
    %252 = vector.extract_strided_slice %250 {offsets = [1, 0], sizes = [6, 3], strides = [1, 1]} : vector<8x3xf32> to vector<6x3xf32>
    %253 = arith.maximumf %251, %252 : vector<6x3xf32>
    %254 = vector.extract_strided_slice %250 {offsets = [2, 0], sizes = [6, 3], strides = [1, 1]} : vector<8x3xf32> to vector<6x3xf32>
    %255 = arith.maximumf %253, %254 : vector<6x3xf32>
    %c0_29 = arith.constant 0 : index
    %c0_30 = arith.constant 0 : index
    %256 = vector.load %arg11[%c0_29, %c0_30] : memref<16x3xf32, #tpu.memory_space<vmem>>, vector<6x3xf32>
    tpu.vector_store %arg11[%c0_29, %c0_30], %255 {strides = array<i32>} : memref<16x3xf32, #tpu.memory_space<vmem>>, vector<6x3xf32>,
    %c0_31 = arith.constant 0 : index
    %c0_32 = arith.constant 0 : index
    %257 = tpu.strided_load %arg11[%c0_31, %c0_32] {strides = array<i32: 2, 1>} : memref<16x3xf32, #tpu.memory_space<vmem>>, vector<3x3xf32>
    %cst_33 = arith.constant 0.000000e+00 : f32
    %258 = vector.broadcast %cst_33 : f32 to vector<3x3xf32>
    %259 = arith.maximumf %257, %258 : vector<3x3xf32>
    %260 = tpu.concatenate %20, %259, %20 in 0 : vector<1x3xf32>, vector<3x3xf32>, vector<1x3xf32> -> vector<5x3xf32>
    %261 = vector.extract_strided_slice %260 {offsets = [0, 0], sizes = [5, 1], strides = [1, 1]} : vector<5x3xf32> to vector<5x1xf32>
    %262 = vector.extract_strided_slice %260 {offsets = [0, 1], sizes = [5, 1], strides = [1, 1]} : vector<5x3xf32> to vector<5x1xf32>
    %263 = vector.extract_strided_slice %260 {offsets = [0, 2], sizes = [5, 1], strides = [1, 1]} : vector<5x3xf32> to vector<5x1xf32>
    %264 = vector.extract_strided_slice %261 {offsets = [0, 0], sizes = [3, 1], strides = [1, 1]} : vector<5x1xf32> to vector<3x1xf32>
    %265 = vector.broadcast %264 : vector<3x1xf32> to vector<3x3xf32>
    %266 = vector.broadcast %8 : vector<1x3xf32> to vector<3x3xf32>
    %267 = arith.mulf %265, %266 : vector<3x3xf32>
    %268 = vector.extract_strided_slice %262 {offsets = [0, 0], sizes = [3, 1], strides = [1, 1]} : vector<5x1xf32> to vector<3x1xf32>
    %269 = vector.broadcast %268 : vector<3x1xf32> to vector<3x3xf32>
    %270 = vector.broadcast %9 : vector<1x3xf32> to vector<3x3xf32>
    %271 = arith.mulf %269, %270 : vector<3x3xf32>
    %272 = arith.addf %267, %271 : vector<3x3xf32>
    %273 = vector.extract_strided_slice %263 {offsets = [0, 0], sizes = [3, 1], strides = [1, 1]} : vector<5x1xf32> to vector<3x1xf32>
    %274 = vector.broadcast %273 : vector<3x1xf32> to vector<3x3xf32>
    %275 = vector.broadcast %10 : vector<1x3xf32> to vector<3x3xf32>
    %276 = arith.mulf %274, %275 : vector<3x3xf32>
    %277 = arith.addf %272, %276 : vector<3x3xf32>
    %278 = vector.extract_strided_slice %261 {offsets = [1, 0], sizes = [3, 1], strides = [1, 1]} : vector<5x1xf32> to vector<3x1xf32>
    %279 = vector.broadcast %278 : vector<3x1xf32> to vector<3x3xf32>
    %280 = vector.broadcast %11 : vector<1x3xf32> to vector<3x3xf32>
    %281 = arith.mulf %279, %280 : vector<3x3xf32>
    %282 = arith.addf %277, %281 : vector<3x3xf32>
    %283 = vector.extract_strided_slice %262 {offsets = [1, 0], sizes = [3, 1], strides = [1, 1]} : vector<5x1xf32> to vector<3x1xf32>
    %284 = vector.broadcast %283 : vector<3x1xf32> to vector<3x3xf32>
    %285 = vector.broadcast %12 : vector<1x3xf32> to vector<3x3xf32>
    %286 = arith.mulf %284, %285 : vector<3x3xf32>
    %287 = arith.addf %282, %286 : vector<3x3xf32>
    %288 = vector.extract_strided_slice %263 {offsets = [1, 0], sizes = [3, 1], strides = [1, 1]} : vector<5x1xf32> to vector<3x1xf32>
    %289 = vector.broadcast %288 : vector<3x1xf32> to vector<3x3xf32>
    %290 = vector.broadcast %13 : vector<1x3xf32> to vector<3x3xf32>
    %291 = arith.mulf %289, %290 : vector<3x3xf32>
    %292 = arith.addf %287, %291 : vector<3x3xf32>
    %293 = vector.extract_strided_slice %261 {offsets = [2, 0], sizes = [3, 1], strides = [1, 1]} : vector<5x1xf32> to vector<3x1xf32>
    %294 = vector.broadcast %293 : vector<3x1xf32> to vector<3x3xf32>
    %295 = vector.broadcast %14 : vector<1x3xf32> to vector<3x3xf32>
    %296 = arith.mulf %294, %295 : vector<3x3xf32>
    %297 = arith.addf %292, %296 : vector<3x3xf32>
    %298 = vector.extract_strided_slice %262 {offsets = [2, 0], sizes = [3, 1], strides = [1, 1]} : vector<5x1xf32> to vector<3x1xf32>
    %299 = vector.broadcast %298 : vector<3x1xf32> to vector<3x3xf32>
    %300 = vector.broadcast %15 : vector<1x3xf32> to vector<3x3xf32>
    %301 = arith.mulf %299, %300 : vector<3x3xf32>
    %302 = arith.addf %297, %301 : vector<3x3xf32>
    %303 = vector.extract_strided_slice %263 {offsets = [2, 0], sizes = [3, 1], strides = [1, 1]} : vector<5x1xf32> to vector<3x1xf32>
    %304 = vector.broadcast %303 : vector<3x1xf32> to vector<3x3xf32>
    %305 = vector.broadcast %16 : vector<1x3xf32> to vector<3x3xf32>
    %306 = arith.mulf %304, %305 : vector<3x3xf32>
    %307 = arith.addf %302, %306 : vector<3x3xf32>
    %308 = vector.broadcast %4 : vector<1x3xf32> to vector<3x3xf32>
    %309 = arith.addf %307, %308 : vector<3x3xf32>
    %cst_34 = arith.constant 0.000000e+00 : f32
    %310 = vector.broadcast %cst_34 : f32 to vector<3x3xf32>
    %311 = arith.maximumf %309, %310 : vector<3x3xf32>
    %312 = tpu.concatenate %20, %311, %20 in 0 : vector<1x3xf32>, vector<3x3xf32>, vector<1x3xf32> -> vector<5x3xf32>
    %313 = vector.extract_strided_slice %312 {offsets = [0, 0], sizes = [5, 1], strides = [1, 1]} : vector<5x3xf32> to vector<5x1xf32>
    %314 = vector.extract_strided_slice %312 {offsets = [0, 1], sizes = [5, 1], strides = [1, 1]} : vector<5x3xf32> to vector<5x1xf32>
    %315 = vector.extract_strided_slice %312 {offsets = [0, 2], sizes = [5, 1], strides = [1, 1]} : vector<5x3xf32> to vector<5x1xf32>
    %316 = vector.extract_strided_slice %313 {offsets = [0, 0], sizes = [3, 1], strides = [1, 1]} : vector<5x1xf32> to vector<3x1xf32>
    %317 = vector.broadcast %316 : vector<3x1xf32> to vector<3x3xf32>
    %318 = vector.broadcast %8 : vector<1x3xf32> to vector<3x3xf32>
    %319 = arith.mulf %317, %318 : vector<3x3xf32>
    %320 = vector.extract_strided_slice %314 {offsets = [0, 0], sizes = [3, 1], strides = [1, 1]} : vector<5x1xf32> to vector<3x1xf32>
    %321 = vector.broadcast %320 : vector<3x1xf32> to vector<3x3xf32>
    %322 = vector.broadcast %9 : vector<1x3xf32> to vector<3x3xf32>
    %323 = arith.mulf %321, %322 : vector<3x3xf32>
    %324 = arith.addf %319, %323 : vector<3x3xf32>
    %325 = vector.extract_strided_slice %315 {offsets = [0, 0], sizes = [3, 1], strides = [1, 1]} : vector<5x1xf32> to vector<3x1xf32>
    %326 = vector.broadcast %325 : vector<3x1xf32> to vector<3x3xf32>
    %327 = vector.broadcast %10 : vector<1x3xf32> to vector<3x3xf32>
    %328 = arith.mulf %326, %327 : vector<3x3xf32>
    %329 = arith.addf %324, %328 : vector<3x3xf32>
    %330 = vector.extract_strided_slice %313 {offsets = [1, 0], sizes = [3, 1], strides = [1, 1]} : vector<5x1xf32> to vector<3x1xf32>
    %331 = vector.broadcast %330 : vector<3x1xf32> to vector<3x3xf32>
    %332 = vector.broadcast %11 : vector<1x3xf32> to vector<3x3xf32>
    %333 = arith.mulf %331, %332 : vector<3x3xf32>
    %334 = arith.addf %329, %333 : vector<3x3xf32>
    %335 = vector.extract_strided_slice %314 {offsets = [1, 0], sizes = [3, 1], strides = [1, 1]} : vector<5x1xf32> to vector<3x1xf32>
    %336 = vector.broadcast %335 : vector<3x1xf32> to vector<3x3xf32>
    %337 = vector.broadcast %12 : vector<1x3xf32> to vector<3x3xf32>
    %338 = arith.mulf %336, %337 : vector<3x3xf32>
    %339 = arith.addf %334, %338 : vector<3x3xf32>
    %340 = vector.extract_strided_slice %315 {offsets = [1, 0], sizes = [3, 1], strides = [1, 1]} : vector<5x1xf32> to vector<3x1xf32>
    %341 = vector.broadcast %340 : vector<3x1xf32> to vector<3x3xf32>
    %342 = vector.broadcast %13 : vector<1x3xf32> to vector<3x3xf32>
    %343 = arith.mulf %341, %342 : vector<3x3xf32>
    %344 = arith.addf %339, %343 : vector<3x3xf32>
    %345 = vector.extract_strided_slice %313 {offsets = [2, 0], sizes = [3, 1], strides = [1, 1]} : vector<5x1xf32> to vector<3x1xf32>
    %346 = vector.broadcast %345 : vector<3x1xf32> to vector<3x3xf32>
    %347 = vector.broadcast %14 : vector<1x3xf32> to vector<3x3xf32>
    %348 = arith.mulf %346, %347 : vector<3x3xf32>
    %349 = arith.addf %344, %348 : vector<3x3xf32>
    %350 = vector.extract_strided_slice %314 {offsets = [2, 0], sizes = [3, 1], strides = [1, 1]} : vector<5x1xf32> to vector<3x1xf32>
    %351 = vector.broadcast %350 : vector<3x1xf32> to vector<3x3xf32>
    %352 = vector.broadcast %15 : vector<1x3xf32> to vector<3x3xf32>
    %353 = arith.mulf %351, %352 : vector<3x3xf32>
    %354 = arith.addf %349, %353 : vector<3x3xf32>
    %355 = vector.extract_strided_slice %315 {offsets = [2, 0], sizes = [3, 1], strides = [1, 1]} : vector<5x1xf32> to vector<3x1xf32>
    %356 = vector.broadcast %355 : vector<3x1xf32> to vector<3x3xf32>
    %357 = vector.broadcast %16 : vector<1x3xf32> to vector<3x3xf32>
    %358 = arith.mulf %356, %357 : vector<3x3xf32>
    %359 = arith.addf %354, %358 : vector<3x3xf32>
    %360 = vector.broadcast %4 : vector<1x3xf32> to vector<3x3xf32>
    %361 = arith.addf %359, %360 : vector<3x3xf32>
    %362 = arith.addf %361, %257 : vector<3x3xf32>
    %363 = tpu.concatenate %362, %20 in 0 : vector<3x3xf32>, vector<1x3xf32> -> vector<4x3xf32>
    %364 = vector.extract_strided_slice %363 {offsets = [0, 0], sizes = [2, 3], strides = [1, 1]} : vector<4x3xf32> to vector<2x3xf32>
    %365 = vector.extract_strided_slice %363 {offsets = [1, 0], sizes = [2, 3], strides = [1, 1]} : vector<4x3xf32> to vector<2x3xf32>
    %366 = arith.maximumf %364, %365 : vector<2x3xf32>
    %367 = vector.extract_strided_slice %363 {offsets = [2, 0], sizes = [2, 3], strides = [1, 1]} : vector<4x3xf32> to vector<2x3xf32>
    %368 = arith.maximumf %366, %367 : vector<2x3xf32>
    %369 = vector.extract_strided_slice %368 {offsets = [0, 0], sizes = [1, 3], strides = [1, 1]} : vector<2x3xf32> to vector<1x3xf32>
    %cst_35 = arith.constant 0.000000e+00 : f32
    %370 = vector.broadcast %cst_35 : f32 to vector<1x3xf32>
    %371 = arith.maximumf %369, %370 : vector<1x3xf32>
    %372 = tpu.concatenate %20, %371, %20 in 0 : vector<1x3xf32>, vector<1x3xf32>, vector<1x3xf32> -> vector<3x3xf32>
    %373 = vector.extract_strided_slice %372 {offsets = [0, 0], sizes = [3, 1], strides = [1, 1]} : vector<3x3xf32> to vector<3x1xf32>
    %374 = vector.extract_strided_slice %372 {offsets = [0, 1], sizes = [3, 1], strides = [1, 1]} : vector<3x3xf32> to vector<3x1xf32>
    %375 = vector.extract_strided_slice %372 {offsets = [0, 2], sizes = [3, 1], strides = [1, 1]} : vector<3x3xf32> to vector<3x1xf32>
    %376 = vector.extract_strided_slice %373 {offsets = [0, 0], sizes = [1, 1], strides = [1, 1]} : vector<3x1xf32> to vector<1x1xf32>
    %377 = vector.broadcast %376 : vector<1x1xf32> to vector<1x3xf32>
    %378 = arith.mulf %377, %8 : vector<1x3xf32>
    %379 = vector.extract_strided_slice %374 {offsets = [0, 0], sizes = [1, 1], strides = [1, 1]} : vector<3x1xf32> to vector<1x1xf32>
    %380 = vector.broadcast %379 : vector<1x1xf32> to vector<1x3xf32>
    %381 = arith.mulf %380, %9 : vector<1x3xf32>
    %382 = arith.addf %378, %381 : vector<1x3xf32>
    %383 = vector.extract_strided_slice %375 {offsets = [0, 0], sizes = [1, 1], strides = [1, 1]} : vector<3x1xf32> to vector<1x1xf32>
    %384 = vector.broadcast %383 : vector<1x1xf32> to vector<1x3xf32>
    %385 = arith.mulf %384, %10 : vector<1x3xf32>
    %386 = arith.addf %382, %385 : vector<1x3xf32>
    %387 = vector.extract_strided_slice %373 {offsets = [1, 0], sizes = [1, 1], strides = [1, 1]} : vector<3x1xf32> to vector<1x1xf32>
    %388 = vector.broadcast %387 : vector<1x1xf32> to vector<1x3xf32>
    %389 = arith.mulf %388, %11 : vector<1x3xf32>
    %390 = arith.addf %386, %389 : vector<1x3xf32>
    %391 = vector.extract_strided_slice %374 {offsets = [1, 0], sizes = [1, 1], strides = [1, 1]} : vector<3x1xf32> to vector<1x1xf32>
    %392 = vector.broadcast %391 : vector<1x1xf32> to vector<1x3xf32>
    %393 = arith.mulf %392, %12 : vector<1x3xf32>
    %394 = arith.addf %390, %393 : vector<1x3xf32>
    %395 = vector.extract_strided_slice %375 {offsets = [1, 0], sizes = [1, 1], strides = [1, 1]} : vector<3x1xf32> to vector<1x1xf32>
    %396 = vector.broadcast %395 : vector<1x1xf32> to vector<1x3xf32>
    %397 = arith.mulf %396, %13 : vector<1x3xf32>
    %398 = arith.addf %394, %397 : vector<1x3xf32>
    %399 = vector.extract_strided_slice %373 {offsets = [2, 0], sizes = [1, 1], strides = [1, 1]} : vector<3x1xf32> to vector<1x1xf32>
    %400 = vector.broadcast %399 : vector<1x1xf32> to vector<1x3xf32>
    %401 = arith.mulf %400, %14 : vector<1x3xf32>
    %402 = arith.addf %398, %401 : vector<1x3xf32>
    %403 = vector.extract_strided_slice %374 {offsets = [2, 0], sizes = [1, 1], strides = [1, 1]} : vector<3x1xf32> to vector<1x1xf32>
    %404 = vector.broadcast %403 : vector<1x1xf32> to vector<1x3xf32>
    %405 = arith.mulf %404, %15 : vector<1x3xf32>
    %406 = arith.addf %402, %405 : vector<1x3xf32>
    %407 = vector.extract_strided_slice %375 {offsets = [2, 0], sizes = [1, 1], strides = [1, 1]} : vector<3x1xf32> to vector<1x1xf32>
    %408 = vector.broadcast %407 : vector<1x1xf32> to vector<1x3xf32>
    %409 = arith.mulf %408, %16 : vector<1x3xf32>
    %410 = arith.addf %406, %409 : vector<1x3xf32>
    %411 = arith.addf %410, %4 : vector<1x3xf32>
    %cst_36 = arith.constant 0.000000e+00 : f32
    %412 = vector.broadcast %cst_36 : f32 to vector<1x3xf32>
    %413 = arith.maximumf %411, %412 : vector<1x3xf32>
    %414 = tpu.concatenate %20, %413, %20 in 0 : vector<1x3xf32>, vector<1x3xf32>, vector<1x3xf32> -> vector<3x3xf32>
    %415 = vector.extract_strided_slice %414 {offsets = [0, 0], sizes = [3, 1], strides = [1, 1]} : vector<3x3xf32> to vector<3x1xf32>
    %416 = vector.extract_strided_slice %414 {offsets = [0, 1], sizes = [3, 1], strides = [1, 1]} : vector<3x3xf32> to vector<3x1xf32>
    %417 = vector.extract_strided_slice %414 {offsets = [0, 2], sizes = [3, 1], strides = [1, 1]} : vector<3x3xf32> to vector<3x1xf32>
    %418 = vector.extract_strided_slice %415 {offsets = [0, 0], sizes = [1, 1], strides = [1, 1]} : vector<3x1xf32> to vector<1x1xf32>
    %419 = vector.broadcast %418 : vector<1x1xf32> to vector<1x3xf32>
    %420 = arith.mulf %419, %8 : vector<1x3xf32>
    %421 = vector.extract_strided_slice %416 {offsets = [0, 0], sizes = [1, 1], strides = [1, 1]} : vector<3x1xf32> to vector<1x1xf32>
    %422 = vector.broadcast %421 : vector<1x1xf32> to vector<1x3xf32>
    %423 = arith.mulf %422, %9 : vector<1x3xf32>
    %424 = arith.addf %420, %423 : vector<1x3xf32>
    %425 = vector.extract_strided_slice %417 {offsets = [0, 0], sizes = [1, 1], strides = [1, 1]} : vector<3x1xf32> to vector<1x1xf32>
    %426 = vector.broadcast %425 : vector<1x1xf32> to vector<1x3xf32>
    %427 = arith.mulf %426, %10 : vector<1x3xf32>
    %428 = arith.addf %424, %427 : vector<1x3xf32>
    %429 = vector.extract_strided_slice %415 {offsets = [1, 0], sizes = [1, 1], strides = [1, 1]} : vector<3x1xf32> to vector<1x1xf32>
    %430 = vector.broadcast %429 : vector<1x1xf32> to vector<1x3xf32>
    %431 = arith.mulf %430, %11 : vector<1x3xf32>
    %432 = arith.addf %428, %431 : vector<1x3xf32>
    %433 = vector.extract_strided_slice %416 {offsets = [1, 0], sizes = [1, 1], strides = [1, 1]} : vector<3x1xf32> to vector<1x1xf32>
    %434 = vector.broadcast %433 : vector<1x1xf32> to vector<1x3xf32>
    %435 = arith.mulf %434, %12 : vector<1x3xf32>
    %436 = arith.addf %432, %435 : vector<1x3xf32>
    %437 = vector.extract_strided_slice %417 {offsets = [1, 0], sizes = [1, 1], strides = [1, 1]} : vector<3x1xf32> to vector<1x1xf32>
    %438 = vector.broadcast %437 : vector<1x1xf32> to vector<1x3xf32>
    %439 = arith.mulf %438, %13 : vector<1x3xf32>
    %440 = arith.addf %436, %439 : vector<1x3xf32>
    %441 = vector.extract_strided_slice %415 {offsets = [2, 0], sizes = [1, 1], strides = [1, 1]} : vector<3x1xf32> to vector<1x1xf32>
    %442 = vector.broadcast %441 : vector<1x1xf32> to vector<1x3xf32>
    %443 = arith.mulf %442, %14 : vector<1x3xf32>
    %444 = arith.addf %440, %443 : vector<1x3xf32>
    %445 = vector.extract_strided_slice %416 {offsets = [2, 0], sizes = [1, 1], strides = [1, 1]} : vector<3x1xf32> to vector<1x1xf32>
    %446 = vector.broadcast %445 : vector<1x1xf32> to vector<1x3xf32>
    %447 = arith.mulf %446, %15 : vector<1x3xf32>
    %448 = arith.addf %444, %447 : vector<1x3xf32>
    %449 = vector.extract_strided_slice %417 {offsets = [2, 0], sizes = [1, 1], strides = [1, 1]} : vector<3x1xf32> to vector<1x1xf32>
    %450 = vector.broadcast %449 : vector<1x1xf32> to vector<1x3xf32>
    %451 = arith.mulf %450, %16 : vector<1x3xf32>
    %452 = arith.addf %448, %451 : vector<1x3xf32>
    %453 = arith.addf %452, %4 : vector<1x3xf32>
    %454 = arith.addf %453, %369 : vector<1x3xf32>
    %c1 = arith.constant 1 : index
    %c0_37 = arith.constant 0 : index
    %c0_38 = arith.constant 0 : index
    %455 = vector.load %arg1[%c1, %c0_37, %c0_38] : memref<2x16x32xf32, #tpu.memory_space<vmem>>, vector<1x16x32xf32>
    %456 = vector.shape_cast %455 : vector<1x16x32xf32> to vector<16x32xf32>
    %457 = vector.extract_strided_slice %456 {offsets = [0, 0], sizes = [14, 32], strides = [1, 1]} : vector<16x32xf32> to vector<14x32xf32>
    %cst_39 = arith.constant dense<0.000000e+00> : vector<14x3xf32>
    %458 = tpu.matmul %457, %0, %cst_39 {dimension_numbers = #tpu.dot_dimension_numbers<[1], [0], [0], [1], [0, 0, 1, 1], [], []>} : vector<14x32xf32>, vector<32x3xf32>, vector<14x3xf32> -> vector<14x3xf32>
    %459 = vector.extract_strided_slice %456 {offsets = [1, 0], sizes = [14, 32], strides = [1, 1]} : vector<16x32xf32> to vector<14x32xf32>
    %cst_40 = arith.constant dense<0.000000e+00> : vector<14x3xf32>
    %460 = tpu.matmul %459, %1, %cst_40 {dimension_numbers = #tpu.dot_dimension_numbers<[1], [0], [0], [1], [0, 0, 1, 1], [], []>} : vector<14x32xf32>, vector<32x3xf32>, vector<14x3xf32> -> vector<14x3xf32>
    %461 = arith.addf %458, %460 : vector<14x3xf32>
    %462 = vector.extract_strided_slice %456 {offsets = [2, 0], sizes = [14, 32], strides = [1, 1]} : vector<16x32xf32> to vector<14x32xf32>
    %cst_41 = arith.constant dense<0.000000e+00> : vector<14x3xf32>
    %463 = tpu.matmul %462, %2, %cst_41 {dimension_numbers = #tpu.dot_dimension_numbers<[1], [0], [0], [1], [0, 0, 1, 1], [], []>} : vector<14x32xf32>, vector<32x3xf32>, vector<14x3xf32> -> vector<14x3xf32>
    %464 = arith.addf %461, %463 : vector<14x3xf32>
    %465 = vector.broadcast %3 : vector<1x3xf32> to vector<14x3xf32>
    %466 = arith.addf %464, %465 : vector<14x3xf32>
    %cst_42 = arith.constant 0.000000e+00 : f32
    %467 = vector.broadcast %cst_42 : f32 to vector<14x3xf32>
    %468 = arith.maximumf %466, %467 : vector<14x3xf32>
    %469 = tpu.concatenate %20, %468, %20 in 0 : vector<1x3xf32>, vector<14x3xf32>, vector<1x3xf32> -> vector<16x3xf32>
    %470 = vector.extract_strided_slice %469 {offsets = [0, 0], sizes = [16, 1], strides = [1, 1]} : vector<16x3xf32> to vector<16x1xf32>
    %471 = vector.extract_strided_slice %469 {offsets = [0, 1], sizes = [16, 1], strides = [1, 1]} : vector<16x3xf32> to vector<16x1xf32>
    %472 = vector.extract_strided_slice %469 {offsets = [0, 2], sizes = [16, 1], strides = [1, 1]} : vector<16x3xf32> to vector<16x1xf32>
    %473 = vector.extract_strided_slice %470 {offsets = [0, 0], sizes = [14, 1], strides = [1, 1]} : vector<16x1xf32> to vector<14x1xf32>
    %474 = vector.broadcast %473 : vector<14x1xf32> to vector<14x3xf32>
    %475 = vector.broadcast %8 : vector<1x3xf32> to vector<14x3xf32>
    %476 = arith.mulf %474, %475 : vector<14x3xf32>
    %477 = vector.extract_strided_slice %471 {offsets = [0, 0], sizes = [14, 1], strides = [1, 1]} : vector<16x1xf32> to vector<14x1xf32>
    %478 = vector.broadcast %477 : vector<14x1xf32> to vector<14x3xf32>
    %479 = vector.broadcast %9 : vector<1x3xf32> to vector<14x3xf32>
    %480 = arith.mulf %478, %479 : vector<14x3xf32>
    %481 = arith.addf %476, %480 : vector<14x3xf32>
    %482 = vector.extract_strided_slice %472 {offsets = [0, 0], sizes = [14, 1], strides = [1, 1]} : vector<16x1xf32> to vector<14x1xf32>
    %483 = vector.broadcast %482 : vector<14x1xf32> to vector<14x3xf32>
    %484 = vector.broadcast %10 : vector<1x3xf32> to vector<14x3xf32>
    %485 = arith.mulf %483, %484 : vector<14x3xf32>
    %486 = arith.addf %481, %485 : vector<14x3xf32>
    %487 = vector.extract_strided_slice %470 {offsets = [1, 0], sizes = [14, 1], strides = [1, 1]} : vector<16x1xf32> to vector<14x1xf32>
    %488 = vector.broadcast %487 : vector<14x1xf32> to vector<14x3xf32>
    %489 = vector.broadcast %11 : vector<1x3xf32> to vector<14x3xf32>
    %490 = arith.mulf %488, %489 : vector<14x3xf32>
    %491 = arith.addf %486, %490 : vector<14x3xf32>
    %492 = vector.extract_strided_slice %471 {offsets = [1, 0], sizes = [14, 1], strides = [1, 1]} : vector<16x1xf32> to vector<14x1xf32>
    %493 = vector.broadcast %492 : vector<14x1xf32> to vector<14x3xf32>
    %494 = vector.broadcast %12 : vector<1x3xf32> to vector<14x3xf32>
    %495 = arith.mulf %493, %494 : vector<14x3xf32>
    %496 = arith.addf %491, %495 : vector<14x3xf32>
    %497 = vector.extract_strided_slice %472 {offsets = [1, 0], sizes = [14, 1], strides = [1, 1]} : vector<16x1xf32> to vector<14x1xf32>
    %498 = vector.broadcast %497 : vector<14x1xf32> to vector<14x3xf32>
    %499 = vector.broadcast %13 : vector<1x3xf32> to vector<14x3xf32>
    %500 = arith.mulf %498, %499 : vector<14x3xf32>
    %501 = arith.addf %496, %500 : vector<14x3xf32>
    %502 = vector.extract_strided_slice %470 {offsets = [2, 0], sizes = [14, 1], strides = [1, 1]} : vector<16x1xf32> to vector<14x1xf32>
    %503 = vector.broadcast %502 : vector<14x1xf32> to vector<14x3xf32>
    %504 = vector.broadcast %14 : vector<1x3xf32> to vector<14x3xf32>
    %505 = arith.mulf %503, %504 : vector<14x3xf32>
    %506 = arith.addf %501, %505 : vector<14x3xf32>
    %507 = vector.extract_strided_slice %471 {offsets = [2, 0], sizes = [14, 1], strides = [1, 1]} : vector<16x1xf32> to vector<14x1xf32>
    %508 = vector.broadcast %507 : vector<14x1xf32> to vector<14x3xf32>
    %509 = vector.broadcast %15 : vector<1x3xf32> to vector<14x3xf32>
    %510 = arith.mulf %508, %509 : vector<14x3xf32>
    %511 = arith.addf %506, %510 : vector<14x3xf32>
    %512 = vector.extract_strided_slice %472 {offsets = [2, 0], sizes = [14, 1], strides = [1, 1]} : vector<16x1xf32> to vector<14x1xf32>
    %513 = vector.broadcast %512 : vector<14x1xf32> to vector<14x3xf32>
    %514 = vector.broadcast %16 : vector<1x3xf32> to vector<14x3xf32>
    %515 = arith.mulf %513, %514 : vector<14x3xf32>
    %516 = arith.addf %511, %515 : vector<14x3xf32>
    %517 = vector.broadcast %4 : vector<1x3xf32> to vector<14x3xf32>
    %518 = arith.addf %516, %517 : vector<14x3xf32>
    %cst_43 = arith.constant 0.000000e+00 : f32
    %519 = vector.broadcast %cst_43 : f32 to vector<14x3xf32>
    %520 = arith.maximumf %518, %519 : vector<14x3xf32>
    %521 = tpu.concatenate %20, %520, %20 in 0 : vector<1x3xf32>, vector<14x3xf32>, vector<1x3xf32> -> vector<16x3xf32>
    %522 = vector.extract_strided_slice %521 {offsets = [0, 0], sizes = [16, 1], strides = [1, 1]} : vector<16x3xf32> to vector<16x1xf32>
    %523 = vector.extract_strided_slice %521 {offsets = [0, 1], sizes = [16, 1], strides = [1, 1]} : vector<16x3xf32> to vector<16x1xf32>
    %524 = vector.extract_strided_slice %521 {offsets = [0, 2], sizes = [16, 1], strides = [1, 1]} : vector<16x3xf32> to vector<16x1xf32>
    %525 = vector.extract_strided_slice %522 {offsets = [0, 0], sizes = [14, 1], strides = [1, 1]} : vector<16x1xf32> to vector<14x1xf32>
    %526 = vector.broadcast %525 : vector<14x1xf32> to vector<14x3xf32>
    %527 = vector.broadcast %8 : vector<1x3xf32> to vector<14x3xf32>
    %528 = arith.mulf %526, %527 : vector<14x3xf32>
    %529 = vector.extract_strided_slice %523 {offsets = [0, 0], sizes = [14, 1], strides = [1, 1]} : vector<16x1xf32> to vector<14x1xf32>
    %530 = vector.broadcast %529 : vector<14x1xf32> to vector<14x3xf32>
    %531 = vector.broadcast %9 : vector<1x3xf32> to vector<14x3xf32>
    %532 = arith.mulf %530, %531 : vector<14x3xf32>
    %533 = arith.addf %528, %532 : vector<14x3xf32>
    %534 = vector.extract_strided_slice %524 {offsets = [0, 0], sizes = [14, 1], strides = [1, 1]} : vector<16x1xf32> to vector<14x1xf32>
    %535 = vector.broadcast %534 : vector<14x1xf32> to vector<14x3xf32>
    %536 = vector.broadcast %10 : vector<1x3xf32> to vector<14x3xf32>
    %537 = arith.mulf %535, %536 : vector<14x3xf32>
    %538 = arith.addf %533, %537 : vector<14x3xf32>
    %539 = vector.extract_strided_slice %522 {offsets = [1, 0], sizes = [14, 1], strides = [1, 1]} : vector<16x1xf32> to vector<14x1xf32>
    %540 = vector.broadcast %539 : vector<14x1xf32> to vector<14x3xf32>
    %541 = vector.broadcast %11 : vector<1x3xf32> to vector<14x3xf32>
    %542 = arith.mulf %540, %541 : vector<14x3xf32>
    %543 = arith.addf %538, %542 : vector<14x3xf32>
    %544 = vector.extract_strided_slice %523 {offsets = [1, 0], sizes = [14, 1], strides = [1, 1]} : vector<16x1xf32> to vector<14x1xf32>
    %545 = vector.broadcast %544 : vector<14x1xf32> to vector<14x3xf32>
    %546 = vector.broadcast %12 : vector<1x3xf32> to vector<14x3xf32>
    %547 = arith.mulf %545, %546 : vector<14x3xf32>
    %548 = arith.addf %543, %547 : vector<14x3xf32>
    %549 = vector.extract_strided_slice %524 {offsets = [1, 0], sizes = [14, 1], strides = [1, 1]} : vector<16x1xf32> to vector<14x1xf32>
    %550 = vector.broadcast %549 : vector<14x1xf32> to vector<14x3xf32>
    %551 = vector.broadcast %13 : vector<1x3xf32> to vector<14x3xf32>
    %552 = arith.mulf %550, %551 : vector<14x3xf32>
    %553 = arith.addf %548, %552 : vector<14x3xf32>
    %554 = vector.extract_strided_slice %522 {offsets = [2, 0], sizes = [14, 1], strides = [1, 1]} : vector<16x1xf32> to vector<14x1xf32>
    %555 = vector.broadcast %554 : vector<14x1xf32> to vector<14x3xf32>
    %556 = vector.broadcast %14 : vector<1x3xf32> to vector<14x3xf32>
    %557 = arith.mulf %555, %556 : vector<14x3xf32>
    %558 = arith.addf %553, %557 : vector<14x3xf32>
    %559 = vector.extract_strided_slice %523 {offsets = [2, 0], sizes = [14, 1], strides = [1, 1]} : vector<16x1xf32> to vector<14x1xf32>
    %560 = vector.broadcast %559 : vector<14x1xf32> to vector<14x3xf32>
    %561 = vector.broadcast %15 : vector<1x3xf32> to vector<14x3xf32>
    %562 = arith.mulf %560, %561 : vector<14x3xf32>
    %563 = arith.addf %558, %562 : vector<14x3xf32>
    %564 = vector.extract_strided_slice %524 {offsets = [2, 0], sizes = [14, 1], strides = [1, 1]} : vector<16x1xf32> to vector<14x1xf32>
    %565 = vector.broadcast %564 : vector<14x1xf32> to vector<14x3xf32>
    %566 = vector.broadcast %16 : vector<1x3xf32> to vector<14x3xf32>
    %567 = arith.mulf %565, %566 : vector<14x3xf32>
    %568 = arith.addf %563, %567 : vector<14x3xf32>
    %569 = vector.broadcast %4 : vector<1x3xf32> to vector<14x3xf32>
    %570 = arith.addf %568, %569 : vector<14x3xf32>
    %571 = tpu.concatenate %570, %20 in 0 : vector<14x3xf32>, vector<1x3xf32> -> vector<15x3xf32>
    %572 = vector.extract_strided_slice %571 {offsets = [0, 0], sizes = [13, 3], strides = [1, 1]} : vector<15x3xf32> to vector<13x3xf32>
    %573 = vector.extract_strided_slice %571 {offsets = [1, 0], sizes = [13, 3], strides = [1, 1]} : vector<15x3xf32> to vector<13x3xf32>
    %574 = arith.maximumf %572, %573 : vector<13x3xf32>
    %575 = vector.extract_strided_slice %571 {offsets = [2, 0], sizes = [13, 3], strides = [1, 1]} : vector<15x3xf32> to vector<13x3xf32>
    %576 = arith.maximumf %574, %575 : vector<13x3xf32>
    %c0_44 = arith.constant 0 : index
    %c0_45 = arith.constant 0 : index
    %577 = vector.load %arg12[%c0_44, %c0_45] : memref<16x3xf32, #tpu.memory_space<vmem>>, vector<13x3xf32>
    tpu.vector_store %arg12[%c0_44, %c0_45], %576 {strides = array<i32>} : memref<16x3xf32, #tpu.memory_space<vmem>>, vector<13x3xf32>,
    %c0_46 = arith.constant 0 : index
    %c0_47 = arith.constant 0 : index
    %578 = tpu.strided_load %arg12[%c0_46, %c0_47] {strides = array<i32: 2, 1>} : memref<16x3xf32, #tpu.memory_space<vmem>>, vector<7x3xf32>
    %cst_48 = arith.constant 0.000000e+00 : f32
    %579 = vector.broadcast %cst_48 : f32 to vector<7x3xf32>
    %580 = arith.maximumf %578, %579 : vector<7x3xf32>
    %581 = tpu.concatenate %20, %580, %20 in 0 : vector<1x3xf32>, vector<7x3xf32>, vector<1x3xf32> -> vector<9x3xf32>
    %582 = vector.extract_strided_slice %581 {offsets = [0, 0], sizes = [9, 1], strides = [1, 1]} : vector<9x3xf32> to vector<9x1xf32>
    %583 = vector.extract_strided_slice %581 {offsets = [0, 1], sizes = [9, 1], strides = [1, 1]} : vector<9x3xf32> to vector<9x1xf32>
    %584 = vector.extract_strided_slice %581 {offsets = [0, 2], sizes = [9, 1], strides = [1, 1]} : vector<9x3xf32> to vector<9x1xf32>
    %585 = vector.extract_strided_slice %582 {offsets = [0, 0], sizes = [7, 1], strides = [1, 1]} : vector<9x1xf32> to vector<7x1xf32>
    %586 = vector.broadcast %585 : vector<7x1xf32> to vector<7x3xf32>
    %587 = vector.broadcast %8 : vector<1x3xf32> to vector<7x3xf32>
    %588 = arith.mulf %586, %587 : vector<7x3xf32>
    %589 = vector.extract_strided_slice %583 {offsets = [0, 0], sizes = [7, 1], strides = [1, 1]} : vector<9x1xf32> to vector<7x1xf32>
    %590 = vector.broadcast %589 : vector<7x1xf32> to vector<7x3xf32>
    %591 = vector.broadcast %9 : vector<1x3xf32> to vector<7x3xf32>
    %592 = arith.mulf %590, %591 : vector<7x3xf32>
    %593 = arith.addf %588, %592 : vector<7x3xf32>
    %594 = vector.extract_strided_slice %584 {offsets = [0, 0], sizes = [7, 1], strides = [1, 1]} : vector<9x1xf32> to vector<7x1xf32>
    %595 = vector.broadcast %594 : vector<7x1xf32> to vector<7x3xf32>
    %596 = vector.broadcast %10 : vector<1x3xf32> to vector<7x3xf32>
    %597 = arith.mulf %595, %596 : vector<7x3xf32>
    %598 = arith.addf %593, %597 : vector<7x3xf32>
    %599 = vector.extract_strided_slice %582 {offsets = [1, 0], sizes = [7, 1], strides = [1, 1]} : vector<9x1xf32> to vector<7x1xf32>
    %600 = vector.broadcast %599 : vector<7x1xf32> to vector<7x3xf32>
    %601 = vector.broadcast %11 : vector<1x3xf32> to vector<7x3xf32>
    %602 = arith.mulf %600, %601 : vector<7x3xf32>
    %603 = arith.addf %598, %602 : vector<7x3xf32>
    %604 = vector.extract_strided_slice %583 {offsets = [1, 0], sizes = [7, 1], strides = [1, 1]} : vector<9x1xf32> to vector<7x1xf32>
    %605 = vector.broadcast %604 : vector<7x1xf32> to vector<7x3xf32>
    %606 = vector.broadcast %12 : vector<1x3xf32> to vector<7x3xf32>
    %607 = arith.mulf %605, %606 : vector<7x3xf32>
    %608 = arith.addf %603, %607 : vector<7x3xf32>
    %609 = vector.extract_strided_slice %584 {offsets = [1, 0], sizes = [7, 1], strides = [1, 1]} : vector<9x1xf32> to vector<7x1xf32>
    %610 = vector.broadcast %609 : vector<7x1xf32> to vector<7x3xf32>
    %611 = vector.broadcast %13 : vector<1x3xf32> to vector<7x3xf32>
    %612 = arith.mulf %610, %611 : vector<7x3xf32>
    %613 = arith.addf %608, %612 : vector<7x3xf32>
    %614 = vector.extract_strided_slice %582 {offsets = [2, 0], sizes = [7, 1], strides = [1, 1]} : vector<9x1xf32> to vector<7x1xf32>
    %615 = vector.broadcast %614 : vector<7x1xf32> to vector<7x3xf32>
    %616 = vector.broadcast %14 : vector<1x3xf32> to vector<7x3xf32>
    %617 = arith.mulf %615, %616 : vector<7x3xf32>
    %618 = arith.addf %613, %617 : vector<7x3xf32>
    %619 = vector.extract_strided_slice %583 {offsets = [2, 0], sizes = [7, 1], strides = [1, 1]} : vector<9x1xf32> to vector<7x1xf32>
    %620 = vector.broadcast %619 : vector<7x1xf32> to vector<7x3xf32>
    %621 = vector.broadcast %15 : vector<1x3xf32> to vector<7x3xf32>
    %622 = arith.mulf %620, %621 : vector<7x3xf32>
    %623 = arith.addf %618, %622 : vector<7x3xf32>
    %624 = vector.extract_strided_slice %584 {offsets = [2, 0], sizes = [7, 1], strides = [1, 1]} : vector<9x1xf32> to vector<7x1xf32>
    %625 = vector.broadcast %624 : vector<7x1xf32> to vector<7x3xf32>
    %626 = vector.broadcast %16 : vector<1x3xf32> to vector<7x3xf32>
    %627 = arith.mulf %625, %626 : vector<7x3xf32>
    %628 = arith.addf %623, %627 : vector<7x3xf32>
    %629 = vector.broadcast %4 : vector<1x3xf32> to vector<7x3xf32>
    %630 = arith.addf %628, %629 : vector<7x3xf32>
    %cst_49 = arith.constant 0.000000e+00 : f32
    %631 = vector.broadcast %cst_49 : f32 to vector<7x3xf32>
    %632 = arith.maximumf %630, %631 : vector<7x3xf32>
    %633 = tpu.concatenate %20, %632, %20 in 0 : vector<1x3xf32>, vector<7x3xf32>, vector<1x3xf32> -> vector<9x3xf32>
    %634 = vector.extract_strided_slice %633 {offsets = [0, 0], sizes = [9, 1], strides = [1, 1]} : vector<9x3xf32> to vector<9x1xf32>
    %635 = vector.extract_strided_slice %633 {offsets = [0, 1], sizes = [9, 1], strides = [1, 1]} : vector<9x3xf32> to vector<9x1xf32>
    %636 = vector.extract_strided_slice %633 {offsets = [0, 2], sizes = [9, 1], strides = [1, 1]} : vector<9x3xf32> to vector<9x1xf32>
    %637 = vector.extract_strided_slice %634 {offsets = [0, 0], sizes = [7, 1], strides = [1, 1]} : vector<9x1xf32> to vector<7x1xf32>
    %638 = vector.broadcast %637 : vector<7x1xf32> to vector<7x3xf32>
    %639 = vector.broadcast %8 : vector<1x3xf32> to vector<7x3xf32>
    %640 = arith.mulf %638, %639 : vector<7x3xf32>
    %641 = vector.extract_strided_slice %635 {offsets = [0, 0], sizes = [7, 1], strides = [1, 1]} : vector<9x1xf32> to vector<7x1xf32>
    %642 = vector.broadcast %641 : vector<7x1xf32> to vector<7x3xf32>
    %643 = vector.broadcast %9 : vector<1x3xf32> to vector<7x3xf32>
    %644 = arith.mulf %642, %643 : vector<7x3xf32>
    %645 = arith.addf %640, %644 : vector<7x3xf32>
    %646 = vector.extract_strided_slice %636 {offsets = [0, 0], sizes = [7, 1], strides = [1, 1]} : vector<9x1xf32> to vector<7x1xf32>
    %647 = vector.broadcast %646 : vector<7x1xf32> to vector<7x3xf32>
    %648 = vector.broadcast %10 : vector<1x3xf32> to vector<7x3xf32>
    %649 = arith.mulf %647, %648 : vector<7x3xf32>
    %650 = arith.addf %645, %649 : vector<7x3xf32>
    %651 = vector.extract_strided_slice %634 {offsets = [1, 0], sizes = [7, 1], strides = [1, 1]} : vector<9x1xf32> to vector<7x1xf32>
    %652 = vector.broadcast %651 : vector<7x1xf32> to vector<7x3xf32>
    %653 = vector.broadcast %11 : vector<1x3xf32> to vector<7x3xf32>
    %654 = arith.mulf %652, %653 : vector<7x3xf32>
    %655 = arith.addf %650, %654 : vector<7x3xf32>
    %656 = vector.extract_strided_slice %635 {offsets = [1, 0], sizes = [7, 1], strides = [1, 1]} : vector<9x1xf32> to vector<7x1xf32>
    %657 = vector.broadcast %656 : vector<7x1xf32> to vector<7x3xf32>
    %658 = vector.broadcast %12 : vector<1x3xf32> to vector<7x3xf32>
    %659 = arith.mulf %657, %658 : vector<7x3xf32>
    %660 = arith.addf %655, %659 : vector<7x3xf32>
    %661 = vector.extract_strided_slice %636 {offsets = [1, 0], sizes = [7, 1], strides = [1, 1]} : vector<9x1xf32> to vector<7x1xf32>
    %662 = vector.broadcast %661 : vector<7x1xf32> to vector<7x3xf32>
    %663 = vector.broadcast %13 : vector<1x3xf32> to vector<7x3xf32>
    %664 = arith.mulf %662, %663 : vector<7x3xf32>
    %665 = arith.addf %660, %664 : vector<7x3xf32>
    %666 = vector.extract_strided_slice %634 {offsets = [2, 0], sizes = [7, 1], strides = [1, 1]} : vector<9x1xf32> to vector<7x1xf32>
    %667 = vector.broadcast %666 : vector<7x1xf32> to vector<7x3xf32>
    %668 = vector.broadcast %14 : vector<1x3xf32> to vector<7x3xf32>
    %669 = arith.mulf %667, %668 : vector<7x3xf32>
    %670 = arith.addf %665, %669 : vector<7x3xf32>
    %671 = vector.extract_strided_slice %635 {offsets = [2, 0], sizes = [7, 1], strides = [1, 1]} : vector<9x1xf32> to vector<7x1xf32>
    %672 = vector.broadcast %671 : vector<7x1xf32> to vector<7x3xf32>
    %673 = vector.broadcast %15 : vector<1x3xf32> to vector<7x3xf32>
    %674 = arith.mulf %672, %673 : vector<7x3xf32>
    %675 = arith.addf %670, %674 : vector<7x3xf32>
    %676 = vector.extract_strided_slice %636 {offsets = [2, 0], sizes = [7, 1], strides = [1, 1]} : vector<9x1xf32> to vector<7x1xf32>
    %677 = vector.broadcast %676 : vector<7x1xf32> to vector<7x3xf32>
    %678 = vector.broadcast %16 : vector<1x3xf32> to vector<7x3xf32>
    %679 = arith.mulf %677, %678 : vector<7x3xf32>
    %680 = arith.addf %675, %679 : vector<7x3xf32>
    %681 = vector.broadcast %4 : vector<1x3xf32> to vector<7x3xf32>
    %682 = arith.addf %680, %681 : vector<7x3xf32>
    %683 = arith.addf %682, %578 : vector<7x3xf32>
    %684 = tpu.concatenate %683, %20 in 0 : vector<7x3xf32>, vector<1x3xf32> -> vector<8x3xf32>
    %685 = vector.extract_strided_slice %684 {offsets = [0, 0], sizes = [6, 3], strides = [1, 1]} : vector<8x3xf32> to vector<6x3xf32>
    %686 = vector.extract_strided_slice %684 {offsets = [1, 0], sizes = [6, 3], strides = [1, 1]} : vector<8x3xf32> to vector<6x3xf32>
    %687 = arith.maximumf %685, %686 : vector<6x3xf32>
    %688 = vector.extract_strided_slice %684 {offsets = [2, 0], sizes = [6, 3], strides = [1, 1]} : vector<8x3xf32> to vector<6x3xf32>
    %689 = arith.maximumf %687, %688 : vector<6x3xf32>
    %c0_50 = arith.constant 0 : index
    %c0_51 = arith.constant 0 : index
    %690 = vector.load %arg12[%c0_50, %c0_51] : memref<16x3xf32, #tpu.memory_space<vmem>>, vector<6x3xf32>
    tpu.vector_store %arg12[%c0_50, %c0_51], %689 {strides = array<i32>} : memref<16x3xf32, #tpu.memory_space<vmem>>, vector<6x3xf32>,
    %c0_52 = arith.constant 0 : index
    %c0_53 = arith.constant 0 : index
    %691 = tpu.strided_load %arg12[%c0_52, %c0_53] {strides = array<i32: 2, 1>} : memref<16x3xf32, #tpu.memory_space<vmem>>, vector<3x3xf32>
    %cst_54 = arith.constant 0.000000e+00 : f32
    %692 = vector.broadcast %cst_54 : f32 to vector<3x3xf32>
    %693 = arith.maximumf %691, %692 : vector<3x3xf32>
    %694 = tpu.concatenate %20, %693, %20 in 0 : vector<1x3xf32>, vector<3x3xf32>, vector<1x3xf32> -> vector<5x3xf32>
    %695 = vector.extract_strided_slice %694 {offsets = [0, 0], sizes = [5, 1], strides = [1, 1]} : vector<5x3xf32> to vector<5x1xf32>
    %696 = vector.extract_strided_slice %694 {offsets = [0, 1], sizes = [5, 1], strides = [1, 1]} : vector<5x3xf32> to vector<5x1xf32>
    %697 = vector.extract_strided_slice %694 {offsets = [0, 2], sizes = [5, 1], strides = [1, 1]} : vector<5x3xf32> to vector<5x1xf32>
    %698 = vector.extract_strided_slice %695 {offsets = [0, 0], sizes = [3, 1], strides = [1, 1]} : vector<5x1xf32> to vector<3x1xf32>
    %699 = vector.broadcast %698 : vector<3x1xf32> to vector<3x3xf32>
    %700 = vector.broadcast %8 : vector<1x3xf32> to vector<3x3xf32>
    %701 = arith.mulf %699, %700 : vector<3x3xf32>
    %702 = vector.extract_strided_slice %696 {offsets = [0, 0], sizes = [3, 1], strides = [1, 1]} : vector<5x1xf32> to vector<3x1xf32>
    %703 = vector.broadcast %702 : vector<3x1xf32> to vector<3x3xf32>
    %704 = vector.broadcast %9 : vector<1x3xf32> to vector<3x3xf32>
    %705 = arith.mulf %703, %704 : vector<3x3xf32>
    %706 = arith.addf %701, %705 : vector<3x3xf32>
    %707 = vector.extract_strided_slice %697 {offsets = [0, 0], sizes = [3, 1], strides = [1, 1]} : vector<5x1xf32> to vector<3x1xf32>
    %708 = vector.broadcast %707 : vector<3x1xf32> to vector<3x3xf32>
    %709 = vector.broadcast %10 : vector<1x3xf32> to vector<3x3xf32>
    %710 = arith.mulf %708, %709 : vector<3x3xf32>
    %711 = arith.addf %706, %710 : vector<3x3xf32>
    %712 = vector.extract_strided_slice %695 {offsets = [1, 0], sizes = [3, 1], strides = [1, 1]} : vector<5x1xf32> to vector<3x1xf32>
    %713 = vector.broadcast %712 : vector<3x1xf32> to vector<3x3xf32>
    %714 = vector.broadcast %11 : vector<1x3xf32> to vector<3x3xf32>
    %715 = arith.mulf %713, %714 : vector<3x3xf32>
    %716 = arith.addf %711, %715 : vector<3x3xf32>
    %717 = vector.extract_strided_slice %696 {offsets = [1, 0], sizes = [3, 1], strides = [1, 1]} : vector<5x1xf32> to vector<3x1xf32>
    %718 = vector.broadcast %717 : vector<3x1xf32> to vector<3x3xf32>
    %719 = vector.broadcast %12 : vector<1x3xf32> to vector<3x3xf32>
    %720 = arith.mulf %718, %719 : vector<3x3xf32>
    %721 = arith.addf %716, %720 : vector<3x3xf32>
    %722 = vector.extract_strided_slice %697 {offsets = [1, 0], sizes = [3, 1], strides = [1, 1]} : vector<5x1xf32> to vector<3x1xf32>
    %723 = vector.broadcast %722 : vector<3x1xf32> to vector<3x3xf32>
    %724 = vector.broadcast %13 : vector<1x3xf32> to vector<3x3xf32>
    %725 = arith.mulf %723, %724 : vector<3x3xf32>
    %726 = arith.addf %721, %725 : vector<3x3xf32>
    %727 = vector.extract_strided_slice %695 {offsets = [2, 0], sizes = [3, 1], strides = [1, 1]} : vector<5x1xf32> to vector<3x1xf32>
    %728 = vector.broadcast %727 : vector<3x1xf32> to vector<3x3xf32>
    %729 = vector.broadcast %14 : vector<1x3xf32> to vector<3x3xf32>
    %730 = arith.mulf %728, %729 : vector<3x3xf32>
    %731 = arith.addf %726, %730 : vector<3x3xf32>
    %732 = vector.extract_strided_slice %696 {offsets = [2, 0], sizes = [3, 1], strides = [1, 1]} : vector<5x1xf32> to vector<3x1xf32>
    %733 = vector.broadcast %732 : vector<3x1xf32> to vector<3x3xf32>
    %734 = vector.broadcast %15 : vector<1x3xf32> to vector<3x3xf32>
    %735 = arith.mulf %733, %734 : vector<3x3xf32>
    %736 = arith.addf %731, %735 : vector<3x3xf32>
    %737 = vector.extract_strided_slice %697 {offsets = [2, 0], sizes = [3, 1], strides = [1, 1]} : vector<5x1xf32> to vector<3x1xf32>
    %738 = vector.broadcast %737 : vector<3x1xf32> to vector<3x3xf32>
    %739 = vector.broadcast %16 : vector<1x3xf32> to vector<3x3xf32>
    %740 = arith.mulf %738, %739 : vector<3x3xf32>
    %741 = arith.addf %736, %740 : vector<3x3xf32>
    %742 = vector.broadcast %4 : vector<1x3xf32> to vector<3x3xf32>
    %743 = arith.addf %741, %742 : vector<3x3xf32>
    %cst_55 = arith.constant 0.000000e+00 : f32
    %744 = vector.broadcast %cst_55 : f32 to vector<3x3xf32>
    %745 = arith.maximumf %743, %744 : vector<3x3xf32>
    %746 = tpu.concatenate %20, %745, %20 in 0 : vector<1x3xf32>, vector<3x3xf32>, vector<1x3xf32> -> vector<5x3xf32>
    %747 = vector.extract_strided_slice %746 {offsets = [0, 0], sizes = [5, 1], strides = [1, 1]} : vector<5x3xf32> to vector<5x1xf32>
    %748 = vector.extract_strided_slice %746 {offsets = [0, 1], sizes = [5, 1], strides = [1, 1]} : vector<5x3xf32> to vector<5x1xf32>
    %749 = vector.extract_strided_slice %746 {offsets = [0, 2], sizes = [5, 1], strides = [1, 1]} : vector<5x3xf32> to vector<5x1xf32>
    %750 = vector.extract_strided_slice %747 {offsets = [0, 0], sizes = [3, 1], strides = [1, 1]} : vector<5x1xf32> to vector<3x1xf32>
    %751 = vector.broadcast %750 : vector<3x1xf32> to vector<3x3xf32>
    %752 = vector.broadcast %8 : vector<1x3xf32> to vector<3x3xf32>
    %753 = arith.mulf %751, %752 : vector<3x3xf32>
    %754 = vector.extract_strided_slice %748 {offsets = [0, 0], sizes = [3, 1], strides = [1, 1]} : vector<5x1xf32> to vector<3x1xf32>
    %755 = vector.broadcast %754 : vector<3x1xf32> to vector<3x3xf32>
    %756 = vector.broadcast %9 : vector<1x3xf32> to vector<3x3xf32>
    %757 = arith.mulf %755, %756 : vector<3x3xf32>
    %758 = arith.addf %753, %757 : vector<3x3xf32>
    %759 = vector.extract_strided_slice %749 {offsets = [0, 0], sizes = [3, 1], strides = [1, 1]} : vector<5x1xf32> to vector<3x1xf32>
    %760 = vector.broadcast %759 : vector<3x1xf32> to vector<3x3xf32>
    %761 = vector.broadcast %10 : vector<1x3xf32> to vector<3x3xf32>
    %762 = arith.mulf %760, %761 : vector<3x3xf32>
    %763 = arith.addf %758, %762 : vector<3x3xf32>
    %764 = vector.extract_strided_slice %747 {offsets = [1, 0], sizes = [3, 1], strides = [1, 1]} : vector<5x1xf32> to vector<3x1xf32>
    %765 = vector.broadcast %764 : vector<3x1xf32> to vector<3x3xf32>
    %766 = vector.broadcast %11 : vector<1x3xf32> to vector<3x3xf32>
    %767 = arith.mulf %765, %766 : vector<3x3xf32>
    %768 = arith.addf %763, %767 : vector<3x3xf32>
    %769 = vector.extract_strided_slice %748 {offsets = [1, 0], sizes = [3, 1], strides = [1, 1]} : vector<5x1xf32> to vector<3x1xf32>
    %770 = vector.broadcast %769 : vector<3x1xf32> to vector<3x3xf32>
    %771 = vector.broadcast %12 : vector<1x3xf32> to vector<3x3xf32>
    %772 = arith.mulf %770, %771 : vector<3x3xf32>
    %773 = arith.addf %768, %772 : vector<3x3xf32>
    %774 = vector.extract_strided_slice %749 {offsets = [1, 0], sizes = [3, 1], strides = [1, 1]} : vector<5x1xf32> to vector<3x1xf32>
    %775 = vector.broadcast %774 : vector<3x1xf32> to vector<3x3xf32>
    %776 = vector.broadcast %13 : vector<1x3xf32> to vector<3x3xf32>
    %777 = arith.mulf %775, %776 : vector<3x3xf32>
    %778 = arith.addf %773, %777 : vector<3x3xf32>
    %779 = vector.extract_strided_slice %747 {offsets = [2, 0], sizes = [3, 1], strides = [1, 1]} : vector<5x1xf32> to vector<3x1xf32>
    %780 = vector.broadcast %779 : vector<3x1xf32> to vector<3x3xf32>
    %781 = vector.broadcast %14 : vector<1x3xf32> to vector<3x3xf32>
    %782 = arith.mulf %780, %781 : vector<3x3xf32>
    %783 = arith.addf %778, %782 : vector<3x3xf32>
    %784 = vector.extract_strided_slice %748 {offsets = [2, 0], sizes = [3, 1], strides = [1, 1]} : vector<5x1xf32> to vector<3x1xf32>
    %785 = vector.broadcast %784 : vector<3x1xf32> to vector<3x3xf32>
    %786 = vector.broadcast %15 : vector<1x3xf32> to vector<3x3xf32>
    %787 = arith.mulf %785, %786 : vector<3x3xf32>
    %788 = arith.addf %783, %787 : vector<3x3xf32>
    %789 = vector.extract_strided_slice %749 {offsets = [2, 0], sizes = [3, 1], strides = [1, 1]} : vector<5x1xf32> to vector<3x1xf32>
    %790 = vector.broadcast %789 : vector<3x1xf32> to vector<3x3xf32>
    %791 = vector.broadcast %16 : vector<1x3xf32> to vector<3x3xf32>
    %792 = arith.mulf %790, %791 : vector<3x3xf32>
    %793 = arith.addf %788, %792 : vector<3x3xf32>
    %794 = vector.broadcast %4 : vector<1x3xf32> to vector<3x3xf32>
    %795 = arith.addf %793, %794 : vector<3x3xf32>
    %796 = arith.addf %795, %691 : vector<3x3xf32>
    %797 = tpu.concatenate %796, %20 in 0 : vector<3x3xf32>, vector<1x3xf32> -> vector<4x3xf32>
    %798 = vector.extract_strided_slice %797 {offsets = [0, 0], sizes = [2, 3], strides = [1, 1]} : vector<4x3xf32> to vector<2x3xf32>
    %799 = vector.extract_strided_slice %797 {offsets = [1, 0], sizes = [2, 3], strides = [1, 1]} : vector<4x3xf32> to vector<2x3xf32>
    %800 = arith.maximumf %798, %799 : vector<2x3xf32>
    %801 = vector.extract_strided_slice %797 {offsets = [2, 0], sizes = [2, 3], strides = [1, 1]} : vector<4x3xf32> to vector<2x3xf32>
    %802 = arith.maximumf %800, %801 : vector<2x3xf32>
    %803 = vector.extract_strided_slice %802 {offsets = [0, 0], sizes = [1, 3], strides = [1, 1]} : vector<2x3xf32> to vector<1x3xf32>
    %cst_56 = arith.constant 0.000000e+00 : f32
    %804 = vector.broadcast %cst_56 : f32 to vector<1x3xf32>
    %805 = arith.maximumf %803, %804 : vector<1x3xf32>
    %806 = tpu.concatenate %20, %805, %20 in 0 : vector<1x3xf32>, vector<1x3xf32>, vector<1x3xf32> -> vector<3x3xf32>
    %807 = vector.extract_strided_slice %806 {offsets = [0, 0], sizes = [3, 1], strides = [1, 1]} : vector<3x3xf32> to vector<3x1xf32>
    %808 = vector.extract_strided_slice %806 {offsets = [0, 1], sizes = [3, 1], strides = [1, 1]} : vector<3x3xf32> to vector<3x1xf32>
    %809 = vector.extract_strided_slice %806 {offsets = [0, 2], sizes = [3, 1], strides = [1, 1]} : vector<3x3xf32> to vector<3x1xf32>
    %810 = vector.extract_strided_slice %807 {offsets = [0, 0], sizes = [1, 1], strides = [1, 1]} : vector<3x1xf32> to vector<1x1xf32>
    %811 = vector.broadcast %810 : vector<1x1xf32> to vector<1x3xf32>
    %812 = arith.mulf %811, %8 : vector<1x3xf32>
    %813 = vector.extract_strided_slice %808 {offsets = [0, 0], sizes = [1, 1], strides = [1, 1]} : vector<3x1xf32> to vector<1x1xf32>
    %814 = vector.broadcast %813 : vector<1x1xf32> to vector<1x3xf32>
    %815 = arith.mulf %814, %9 : vector<1x3xf32>
    %816 = arith.addf %812, %815 : vector<1x3xf32>
    %817 = vector.extract_strided_slice %809 {offsets = [0, 0], sizes = [1, 1], strides = [1, 1]} : vector<3x1xf32> to vector<1x1xf32>
    %818 = vector.broadcast %817 : vector<1x1xf32> to vector<1x3xf32>
    %819 = arith.mulf %818, %10 : vector<1x3xf32>
    %820 = arith.addf %816, %819 : vector<1x3xf32>
    %821 = vector.extract_strided_slice %807 {offsets = [1, 0], sizes = [1, 1], strides = [1, 1]} : vector<3x1xf32> to vector<1x1xf32>
    %822 = vector.broadcast %821 : vector<1x1xf32> to vector<1x3xf32>
    %823 = arith.mulf %822, %11 : vector<1x3xf32>
    %824 = arith.addf %820, %823 : vector<1x3xf32>
    %825 = vector.extract_strided_slice %808 {offsets = [1, 0], sizes = [1, 1], strides = [1, 1]} : vector<3x1xf32> to vector<1x1xf32>
    %826 = vector.broadcast %825 : vector<1x1xf32> to vector<1x3xf32>
    %827 = arith.mulf %826, %12 : vector<1x3xf32>
    %828 = arith.addf %824, %827 : vector<1x3xf32>
    %829 = vector.extract_strided_slice %809 {offsets = [1, 0], sizes = [1, 1], strides = [1, 1]} : vector<3x1xf32> to vector<1x1xf32>
    %830 = vector.broadcast %829 : vector<1x1xf32> to vector<1x3xf32>
    %831 = arith.mulf %830, %13 : vector<1x3xf32>
    %832 = arith.addf %828, %831 : vector<1x3xf32>
    %833 = vector.extract_strided_slice %807 {offsets = [2, 0], sizes = [1, 1], strides = [1, 1]} : vector<3x1xf32> to vector<1x1xf32>
    %834 = vector.broadcast %833 : vector<1x1xf32> to vector<1x3xf32>
    %835 = arith.mulf %834, %14 : vector<1x3xf32>
    %836 = arith.addf %832, %835 : vector<1x3xf32>
    %837 = vector.extract_strided_slice %808 {offsets = [2, 0], sizes = [1, 1], strides = [1, 1]} : vector<3x1xf32> to vector<1x1xf32>
    %838 = vector.broadcast %837 : vector<1x1xf32> to vector<1x3xf32>
    %839 = arith.mulf %838, %15 : vector<1x3xf32>
    %840 = arith.addf %836, %839 : vector<1x3xf32>
    %841 = vector.extract_strided_slice %809 {offsets = [2, 0], sizes = [1, 1], strides = [1, 1]} : vector<3x1xf32> to vector<1x1xf32>
    %842 = vector.broadcast %841 : vector<1x1xf32> to vector<1x3xf32>
    %843 = arith.mulf %842, %16 : vector<1x3xf32>
    %844 = arith.addf %840, %843 : vector<1x3xf32>
    %845 = arith.addf %844, %4 : vector<1x3xf32>
    %cst_57 = arith.constant 0.000000e+00 : f32
    %846 = vector.broadcast %cst_57 : f32 to vector<1x3xf32>
    %847 = arith.maximumf %845, %846 : vector<1x3xf32>
    %848 = tpu.concatenate %20, %847, %20 in 0 : vector<1x3xf32>, vector<1x3xf32>, vector<1x3xf32> -> vector<3x3xf32>
    %849 = vector.extract_strided_slice %848 {offsets = [0, 0], sizes = [3, 1], strides = [1, 1]} : vector<3x3xf32> to vector<3x1xf32>
    %850 = vector.extract_strided_slice %848 {offsets = [0, 1], sizes = [3, 1], strides = [1, 1]} : vector<3x3xf32> to vector<3x1xf32>
    %851 = vector.extract_strided_slice %848 {offsets = [0, 2], sizes = [3, 1], strides = [1, 1]} : vector<3x3xf32> to vector<3x1xf32>
    %852 = vector.extract_strided_slice %849 {offsets = [0, 0], sizes = [1, 1], strides = [1, 1]} : vector<3x1xf32> to vector<1x1xf32>
    %853 = vector.broadcast %852 : vector<1x1xf32> to vector<1x3xf32>
    %854 = arith.mulf %853, %8 : vector<1x3xf32>
    %855 = vector.extract_strided_slice %850 {offsets = [0, 0], sizes = [1, 1], strides = [1, 1]} : vector<3x1xf32> to vector<1x1xf32>
    %856 = vector.broadcast %855 : vector<1x1xf32> to vector<1x3xf32>
    %857 = arith.mulf %856, %9 : vector<1x3xf32>
    %858 = arith.addf %854, %857 : vector<1x3xf32>
    %859 = vector.extract_strided_slice %851 {offsets = [0, 0], sizes = [1, 1], strides = [1, 1]} : vector<3x1xf32> to vector<1x1xf32>
    %860 = vector.broadcast %859 : vector<1x1xf32> to vector<1x3xf32>
    %861 = arith.mulf %860, %10 : vector<1x3xf32>
    %862 = arith.addf %858, %861 : vector<1x3xf32>
    %863 = vector.extract_strided_slice %849 {offsets = [1, 0], sizes = [1, 1], strides = [1, 1]} : vector<3x1xf32> to vector<1x1xf32>
    %864 = vector.broadcast %863 : vector<1x1xf32> to vector<1x3xf32>
    %865 = arith.mulf %864, %11 : vector<1x3xf32>
    %866 = arith.addf %862, %865 : vector<1x3xf32>
    %867 = vector.extract_strided_slice %850 {offsets = [1, 0], sizes = [1, 1], strides = [1, 1]} : vector<3x1xf32> to vector<1x1xf32>
    %868 = vector.broadcast %867 : vector<1x1xf32> to vector<1x3xf32>
    %869 = arith.mulf %868, %12 : vector<1x3xf32>
    %870 = arith.addf %866, %869 : vector<1x3xf32>
    %871 = vector.extract_strided_slice %851 {offsets = [1, 0], sizes = [1, 1], strides = [1, 1]} : vector<3x1xf32> to vector<1x1xf32>
    %872 = vector.broadcast %871 : vector<1x1xf32> to vector<1x3xf32>
    %873 = arith.mulf %872, %13 : vector<1x3xf32>
    %874 = arith.addf %870, %873 : vector<1x3xf32>
    %875 = vector.extract_strided_slice %849 {offsets = [2, 0], sizes = [1, 1], strides = [1, 1]} : vector<3x1xf32> to vector<1x1xf32>
    %876 = vector.broadcast %875 : vector<1x1xf32> to vector<1x3xf32>
    %877 = arith.mulf %876, %14 : vector<1x3xf32>
    %878 = arith.addf %874, %877 : vector<1x3xf32>
    %879 = vector.extract_strided_slice %850 {offsets = [2, 0], sizes = [1, 1], strides = [1, 1]} : vector<3x1xf32> to vector<1x1xf32>
    %880 = vector.broadcast %879 : vector<1x1xf32> to vector<1x3xf32>
    %881 = arith.mulf %880, %15 : vector<1x3xf32>
    %882 = arith.addf %878, %881 : vector<1x3xf32>
    %883 = vector.extract_strided_slice %851 {offsets = [2, 0], sizes = [1, 1], strides = [1, 1]} : vector<3x1xf32> to vector<1x1xf32>
    %884 = vector.broadcast %883 : vector<1x1xf32> to vector<1x3xf32>
    %885 = arith.mulf %884, %16 : vector<1x3xf32>
    %886 = arith.addf %882, %885 : vector<1x3xf32>
    %887 = arith.addf %886, %4 : vector<1x3xf32>
    %888 = arith.addf %887, %803 : vector<1x3xf32>
    %889 = tpu.concatenate %454, %888 in 0 : vector<1x3xf32>, vector<1x3xf32> -> vector<2x3xf32>
    %890 = vector.extract_strided_slice %889 {offsets = [0, 0], sizes = [2, 1], strides = [1, 1]} : vector<2x3xf32> to vector<2x1xf32>
    %891 = vector.broadcast %890 : vector<2x1xf32> to vector<2x4xf32>
    %892 = vector.broadcast %17 : vector<1x4xf32> to vector<2x4xf32>
    %893 = arith.mulf %891, %892 : vector<2x4xf32>
    %894 = vector.extract_strided_slice %889 {offsets = [0, 1], sizes = [2, 1], strides = [1, 1]} : vector<2x3xf32> to vector<2x1xf32>
    %895 = vector.broadcast %894 : vector<2x1xf32> to vector<2x4xf32>
    %896 = vector.broadcast %18 : vector<1x4xf32> to vector<2x4xf32>
    %897 = arith.mulf %895, %896 : vector<2x4xf32>
    %898 = arith.addf %893, %897 : vector<2x4xf32>
    %899 = vector.extract_strided_slice %889 {offsets = [0, 2], sizes = [2, 1], strides = [1, 1]} : vector<2x3xf32> to vector<2x1xf32>
    %900 = vector.broadcast %899 : vector<2x1xf32> to vector<2x4xf32>
    %901 = vector.broadcast %19 : vector<1x4xf32> to vector<2x4xf32>
    %902 = arith.mulf %900, %901 : vector<2x4xf32>
    %903 = arith.addf %898, %902 : vector<2x4xf32>
    %904 = vector.broadcast %5 : vector<1x4xf32> to vector<2x4xf32>
    %905 = arith.addf %903, %904 : vector<2x4xf32>
    %c0_58 = arith.constant 0 : index
    %c0_59 = arith.constant 0 : index
    %c0_60 = arith.constant 0 : index
    %906 = vector.load %arg10[%c0_58, %c0_59, %c0_60] : memref<1x2x4xf32, #tpu.memory_space<vmem>>, vector<1x2x4xf32>
    %907 = vector.shape_cast %906 : vector<1x2x4xf32> to vector<2x4xf32>
    %908 = vector.shape_cast %905 : vector<2x4xf32> to vector<1x2x4xf32>
    tpu.vector_store %arg10[%c0_58, %c0_59, %c0_60], %908 {strides = array<i32>} : memref<1x2x4xf32, #tpu.memory_space<vmem>>, vector<1x2x4xf32>,
    return
  }
  func.func @transform_0(%arg0: i32) -> (i32, i32, i32) {
    %c0_i32 = arith.constant 0 : i32
    %c0_i32_0 = arith.constant 0 : i32
    %c0_i32_1 = arith.constant 0 : i32
    return %arg0, %c0_i32, %c0_i32_0 : i32, i32, i32
  }
  func.func @transform_1(%arg0: i32) -> (i32, i32) {
    %c0_i32 = arith.constant 0 : i32
    %c0_i32_0 = arith.constant 0 : i32
    %c0_i32_1 = arith.constant 0 : i32
    return %c0_i32, %c0_i32_0 : i32, i32
  }
  func.func @transform_2(%arg0: i32) -> (i32, i32) {
    %c0_i32 = arith.constant 0 : i32
    %c0_i32_0 = arith.constant 0 : i32
    %c0_i32_1 = arith.constant 0 : i32
    return %c0_i32, %c0_i32_0 : i32, i32
  }
  func.func @transform_3(%arg0: i32) -> (i32, i32) {
    %c0_i32 = arith.constant 0 : i32
    %c0_i32_0 = arith.constant 0 : i32
    %c0_i32_1 = arith.constant 0 : i32
    return %c0_i32, %c0_i32_0 : i32, i32
  }
  func.func @transform_4(%arg0: i32) -> (i32, i32) {
    %c0_i32 = arith.constant 0 : i32
    %c0_i32_0 = arith.constant 0 : i32
    %c0_i32_1 = arith.constant 0 : i32
    return %c0_i32, %c0_i32_0 : i32, i32
  }
  func.func @transform_5(%arg0: i32) -> (i32, i32) {
    %c0_i32 = arith.constant 0 : i32
    %c0_i32_0 = arith.constant 0 : i32
    %c0_i32_1 = arith.constant 0 : i32
    return %c0_i32, %c0_i32_0 : i32, i32
  }
  func.func @transform_6(%arg0: i32) -> (i32, i32) {
    %c0_i32 = arith.constant 0 : i32
    %c0_i32_0 = arith.constant 0 : i32
    %c0_i32_1 = arith.constant 0 : i32
    return %c0_i32, %c0_i32_0 : i32, i32
  }
  func.func @transform_7(%arg0: i32) -> (i32, i32) {
    %c0_i32 = arith.constant 0 : i32
    %c0_i32_0 = arith.constant 0 : i32
    %c0_i32_1 = arith.constant 0 : i32
    return %c0_i32, %c0_i32_0 : i32, i32
  }
  func.func @transform_8(%arg0: i32) -> (i32, i32) {
    %c0_i32 = arith.constant 0 : i32
    %c0_i32_0 = arith.constant 0 : i32
    %c0_i32_1 = arith.constant 0 : i32
    return %c0_i32, %c0_i32_0 : i32, i32
  }
  func.func @transform_9(%arg0: i32) -> (i32, i32, i32) {
    %c0_i32 = arith.constant 0 : i32
    %c0_i32_0 = arith.constant 0 : i32
    %c0_i32_1 = arith.constant 0 : i32
    return %arg0, %c0_i32, %c0_i32_0 : i32, i32, i32
  }
}

</mosaic_0001>

<llo_original>
// kernel: tpu_custom_call.1
$region0: #{tpu_custom_call.1}
  #allocation0 [shape = 'u32[]', space=smem, size = 0x4, offset = 0x4, fixed_abs, tag = 'smem constant byte address 0x4 - core index']
  #allocation1 [shape = 'u32[144,128]{1,0:T(1,128)}', space=vmem, size = 0x12000, scoped, tag = 'internal scratch']
  #allocation2 [shape = 'f32[16,3]{1,0:T(8,128)}', space=vmem, size = 0x2000, scoped, tag = 'scratch operand']
  #allocation3 [shape = 'f32[16,3]{1,0:T(8,128)}', space=vmem, size = 0x2000, scoped, tag = 'scratch operand']
  %s0 = inlined_call_operand.vmem [shape: f32[2,16,32], index: 0, kind: input, shape index: {}]
  %s1 = inlined_call_operand.vmem [shape: f32[32,3], index: 1, kind: input, shape index: {}]
  %s2 = inlined_call_operand.vmem [shape: f32[32,3], index: 2, kind: input, shape index: {}]
  %s3 = inlined_call_operand.vmem [shape: f32[32,3], index: 3, kind: input, shape index: {}]
  %s4 = inlined_call_operand.vmem [shape: f32[1,3], index: 4, kind: input, shape index: {}]
  %s5 = inlined_call_operand.vmem [shape: f32[9,3], index: 5, kind: input, shape index: {}]
  %s6 = inlined_call_operand.vmem [shape: f32[1,3], index: 6, kind: input, shape index: {}]
  %s7 = inlined_call_operand.vmem [shape: f32[3,4], index: 7, kind: input, shape index: {}]
  %s8 = inlined_call_operand.vmem [shape: f32[1,4], index: 8, kind: input, shape index: {}]
  %s9 = inlined_call_operand.hbm [shape: f32[1,2,4], index: 9, kind: output, shape index: {}]
  %s10 = sld [smem:[#allocation0]]
  $region46: #{tpu_custom_call.1} parent=0
    _
  %s12 = ssub.s32 1, %s10
  %s13 = scalar_select 0, %s12, %s10
  $region1: #{tpu_custom_call.1} parent=0
    #allocation4 [shape = 'u8[1024]{0}', space=vmem, size = 0x400, scoped, tag = 'output window, operand 0, single buffered']
    #allocation5 [shape = 's32[1]{0}', space=sflag, size = 0x4, scoped, tag = 'scoped memory for tpu_custom_call.1']
    %14 = vsyncpa [#allocation5], 0
    // Predicated region
    $region2: #{tpu_custom_call.1} parent=1 // pred_check
      _
    $region3: #{tpu_custom_call.1} parent=1 // pred_check_branch
      %16 = sbr.rel (0) target = $region5
    $region4: #{tpu_custom_call.1} parent=1 // pred_region
      _
    $region5: #{tpu_custom_call.1} parent=1 // pred_fallthru
      _
    // Predicated region
    $region6: #{tpu_custom_call.1} parent=1 // pred_check
      _
    $region7: #{tpu_custom_call.1} parent=1 // pred_check_branch
      %18 = sbr.rel (0) target = $region9
    $region8: #{tpu_custom_call.1} parent=1 // pred_region
      _
    $region9: #{tpu_custom_call.1} parent=1 // pred_fallthru
      _
    // Predicated region
    $region10: #{tpu_custom_call.1} parent=1 // pred_check
      _
    $region11: #{tpu_custom_call.1} parent=1 // pred_check_branch
      %20 = sbr.rel (0) target = $region13
    $region12: #{tpu_custom_call.1} parent=1 // pred_region
      _
    $region13: #{tpu_custom_call.1} parent=1 // pred_fallthru
      _
    // Predicated region
    $region14: #{tpu_custom_call.1} parent=1 // pred_check
      _
    $region15: #{tpu_custom_call.1} parent=1 // pred_check_branch
      %22 = sbr.rel (0) target = $region17
    $region16: #{tpu_custom_call.1} parent=1 // pred_region
      _
    $region17: #{tpu_custom_call.1} parent=1 // pred_fallthru
      _
    // Predicated region
    $region18: #{tpu_custom_call.1} parent=1 // pred_check
      _
    $region19: #{tpu_custom_call.1} parent=1 // pred_check_branch
      %24 = sbr.rel (0) target = $region21
    $region20: #{tpu_custom_call.1} parent=1 // pred_region
      _
    $region21: #{tpu_custom_call.1} parent=1 // pred_fallthru
      _
    // Predicated region
    $region22: #{tpu_custom_call.1} parent=1 // pred_check
      _
    $region23: #{tpu_custom_call.1} parent=1 // pred_check_branch
      %26 = sbr.rel (0) target = $region25
    $region24: #{tpu_custom_call.1} parent=1 // pred_region
      _
    $region25: #{tpu_custom_call.1} parent=1 // pred_fallthru
      _
    // Predicated region
    $region26: #{tpu_custom_call.1} parent=1 // pred_check
      _
    $region27: #{tpu_custom_call.1} parent=1 // pred_check_branch
      %28 = sbr.rel (0) target = $region29
    $region28: #{tpu_custom_call.1} parent=1 // pred_region
      _
    $region29: #{tpu_custom_call.1} parent=1 // pred_fallthru
      _
    // Predicated region
    $region30: #{tpu_custom_call.1} parent=1 // pred_check
      _
    $region31: #{tpu_custom_call.1} parent=1 // pred_check_branch
      %30 = sbr.rel (0) target = $region33
    $region32: #{tpu_custom_call.1} parent=1 // pred_region
      _
    $region33: #{tpu_custom_call.1} parent=1 // pred_fallthru
      _
    // Predicated region
    $region34: #{tpu_custom_call.1} parent=1 // pred_check
      _
    $region35: #{tpu_custom_call.1} parent=1 // pred_check_branch
      %32 = sbr.rel (0) target = $region37
    $region36: #{tpu_custom_call.1} parent=1 // pred_region
      _
    $region37: #{tpu_custom_call.1} parent=1 // pred_fallthru
      _
    %v33 = vld [vmem:[%s1] sm:$0xff]
    %v34 = vld [vmem:[%s1 + $0x8] sm:$0xff]
    %v35 = vld [vmem:[%s1 + $0x10] sm:$0xff]
    %v36 = vld [vmem:[%s1 + $0x18] sm:$0xff]
    %v37 = vld [vmem:[%s2] sm:$0xff]
    %v38 = vld [vmem:[%s2 + $0x8] sm:$0xff]
    %v39 = vld [vmem:[%s2 + $0x10] sm:$0xff]
    %v40 = vld [vmem:[%s2 + $0x18] sm:$0xff]
    %v41 = vld [vmem:[%s3] sm:$0xff]
    %v42 = vld [vmem:[%s3 + $0x8] sm:$0xff]
    %v43 = vld [vmem:[%s3 + $0x10] sm:$0xff]
    %v44 = vld [vmem:[%s3 + $0x18] sm:$0xff]
    %v45 = vld [vmem:[%s4] sm:$0x1]
    %v46 = vld [vmem:[%s6] sm:$0x1]
    %v47 = vld [vmem:[%s8] sm:$0x1]
    %v48 = vld [vmem:[%s5] sm:$0xff]
    %v49 = vld [vmem:[%s5 + $0x8] sm:$0x1]
    %v50 = vld [vmem:[%s7] sm:$0x7]
    %v51 = vld [vmem:[%s0] sm:$0xff]
    %v52 = vld [vmem:[%s0 + $0x8] sm:$0xff]
    %vm55 = vcmask 1046528
    %v56 = vrot.slane %v51, 1
    %v57 = vrot.slane %v52, 1
    %v58 = vsel %vm55, %v56, %v57
    %vm59 = vcmask 261120
    %v60 = vsel %vm59, %v58, 0
    %v62 = vsel %vm59, %v57, 0
    %64 = vmatprep.subr.mxu0 0.0
    %65 = vmatpush1.msra.mxu0 0.0
    %66 = vmatprep.subr.mxu0 0.0
    %67 = vmatpush1.msra.mxu0 0.0
    %68 = vmatprep.subr.mxu0 0.0
    %69 = vmatpush1.msra.mxu0 0.0
    %70 = vmatprep.subr.mxu0 0.0
    %71 = vmatpush1.msra.mxu0 0.0
    %72 = vmatprep.subr.mxu0 0.0
    %73 = vmatpush1.msra.mxu0 0.0
    %74 = vmatprep.subr.mxu0 0.0
    %75 = vmatpush1.msra.mxu0 0.0
    %76 = vmatprep.subr.mxu0 0.0
    %77 = vmatpush1.msra.mxu0 0.0
    %78 = vmatprep.subr.mxu0 0.0
    %79 = vmatpush1.msra.mxu0 0.0
    %80 = vmatprep.subr.mxu0 0.0
    %81 = vmatpush1.msra.mxu0 0.0
    %82 = vmatprep.subr.mxu0 0.0
    %83 = vmatpush1.msra.mxu0 0.0
    %84 = vmatprep.subr.mxu0 0.0
    %85 = vmatpush1.msra.mxu0 0.0
    %86 = vmatprep.subr.mxu0 0.0
    %87 = vmatpush1.msra.mxu0 0.0
    %88 = vmatprep.subr.mxu0 0.0
    %89 = vmatpush1.msra.mxu0 %v40
    %90 = vmatprep.subr.mxu0 0.0
    %91 = vmatpush1.msra.mxu0 %v39
    %92 = vmatprep.subr.mxu0 0.0
    %93 = vmatpush1.msra.mxu0 %v38
    %94 = vmatprep.subr.mxu0 0.0
    %95 = vmatpush1.msra.mxu0 %v37
    %96 = vmatprep.subr.mxu0 0.0
    %97 = vmatpush2.msra.mxu0 0.0
    %98 = vmatprep.subr.mxu0 0.0
    %99 = vmatpush2.msra.mxu0 0.0
    %100 = vmatprep.subr.mxu0 0.0
    %101 = vmatpush2.msra.mxu0 0.0
    %102 = vmatprep.subr.mxu0 0.0
    %103 = vmatpush2.msra.mxu0 0.0
    %104 = vmatprep.subr.mxu0 0.0
    %105 = vmatpush2.msra.mxu0 0.0
    %106 = vmatprep.subr.mxu0 0.0
    %107 = vmatpush2.msra.mxu0 0.0
    %108 = vmatprep.subr.mxu0 0.0
    %109 = vmatpush2.msra.mxu0 0.0
    %110 = vmatprep.subr.mxu0 0.0
    %111 = vmatpush2.msra.mxu0 0.0
    %112 = vmatprep.subr.mxu0 0.0
    %113 = vmatpush2.msra.mxu0 0.0
    %114 = vmatprep.subr.mxu0 0.0
    %115 = vmatpush2.msra.mxu0 0.0
    %116 = vmatprep.subr.mxu0 0.0
    %117 = vmatpush2.msra.mxu0 0.0
    %118 = vmatprep.subr.mxu0 0.0
    %119 = vmatpush2.msra.mxu0 0.0
    %120 = vmatprep.subr.mxu0 0.0
    %121 = vmatpush2.msra.mxu0 0.0
    %122 = vmatprep.subr.mxu0 0.0
    %123 = vmatpush2.msra.mxu0 0.0
    %124 = vmatprep.subr.mxu0 0.0
    %125 = vmatpush2.msra.mxu0 0.0
    %126 = vmatprep.subr.mxu0 0.0
    %127 = vmatpush2.msra.mxu0 0.0
    %128 = vmatprep.mubr.f32.mxu0 0.0
    %129 = vmatmul.mubr.f32.gmra.mxu0 %v60
    %v130 = vpop.f32.mrf.mxu0
    %v131 = vadd.f32 0.0, %v130
    %v132 = vpop.f32.mrf.mxu0
    %133 = vmatprep.mubr.f32.mxu0 0.0
    %134 = vmatmul.mubr.f32.gmra.mxu0 %v62
    %v135 = vpop.f32.mrf.mxu0
    %v136 = vadd.f32 0.0, %v135
    %v137 = vpop.f32.mrf.mxu0
    %138 = vdwg.mxu0
    %v139 = vsel %vm59, %v51, 0
    %v141 = vsel %vm59, %v52, 0
    %143 = vmatprep.subr.mxu0 0.0
    %144 = vmatpush1.msra.mxu0 0.0
    %145 = vmatprep.subr.mxu0 0.0
    %146 = vmatpush1.msra.mxu0 0.0
    %147 = vmatprep.subr.mxu0 0.0
    %148 = vmatpush1.msra.mxu0 0.0
    %149 = vmatprep.subr.mxu0 0.0
    %150 = vmatpush1.msra.mxu0 0.0
    %151 = vmatprep.subr.mxu0 0.0
    %152 = vmatpush1.msra.mxu0 0.0
    %153 = vmatprep.subr.mxu0 0.0
    %154 = vmatpush1.msra.mxu0 0.0
    %155 = vmatprep.subr.mxu0 0.0
    %156 = vmatpush1.msra.mxu0 0.0
    %157 = vmatprep.subr.mxu0 0.0
    %158 = vmatpush1.msra.mxu0 0.0
    %159 = vmatprep.subr.mxu0 0.0
    %160 = vmatpush1.msra.mxu0 0.0
    %161 = vmatprep.subr.mxu0 0.0
    %162 = vmatpush1.msra.mxu0 0.0
    %163 = vmatprep.subr.mxu0 0.0
    %164 = vmatpush1.msra.mxu0 0.0
    %165 = vmatprep.subr.mxu0 0.0
    %166 = vmatpush1.msra.mxu0 0.0
    %167 = vmatprep.subr.mxu0 0.0
    %168 = vmatpush1.msra.mxu0 %v36
    %169 = vmatprep.subr.mxu0 0.0
    %170 = vmatpush1.msra.mxu0 %v35
    %171 = vmatprep.subr.mxu0 0.0
    %172 = vmatpush1.msra.mxu0 %v34
    %173 = vmatprep.subr.mxu0 0.0
    %174 = vmatpush1.msra.mxu0 %v33
    %175 = vmatprep.subr.mxu0 0.0
    %176 = vmatpush2.msra.mxu0 0.0
    %177 = vmatprep.subr.mxu0 0.0
    %178 = vmatpush2.msra.mxu0 0.0
    %179 = vmatprep.subr.mxu0 0.0
    %180 = vmatpush2.msra.mxu0 0.0
    %181 = vmatprep.subr.mxu0 0.0
    %182 = vmatpush2.msra.mxu0 0.0
    %183 = vmatprep.subr.mxu0 0.0
    %184 = vmatpush2.msra.mxu0 0.0
    %185 = vmatprep.subr.mxu0 0.0
    %186 = vmatpush2.msra.mxu0 0.0
    %187 = vmatprep.subr.mxu0 0.0
    %188 = vmatpush2.msra.mxu0 0.0
    %189 = vmatprep.subr.mxu0 0.0
    %190 = vmatpush2.msra.mxu0 0.0
    %191 = vmatprep.subr.mxu0 0.0
    %192 = vmatpush2.msra.mxu0 0.0
    %193 = vmatprep.subr.mxu0 0.0
    %194 = vmatpush2.msra.mxu0 0.0
    %195 = vmatprep.subr.mxu0 0.0
    %196 = vmatpush2.msra.mxu0 0.0
    %197 = vmatprep.subr.mxu0 0.0
    %198 = vmatpush2.msra.mxu0 0.0
    %199 = vmatprep.subr.mxu0 0.0
    %200 = vmatpush2.msra.mxu0 0.0
    %201 = vmatprep.subr.mxu0 0.0
    %202 = vmatpush2.msra.mxu0 0.0
    %203 = vmatprep.subr.mxu0 0.0
    %204 = vmatpush2.msra.mxu0 0.0
    %205 = vmatprep.subr.mxu0 0.0
    %206 = vmatpush2.msra.mxu0 0.0
    %207 = vmatprep.mubr.f32.mxu0 0.0
    %208 = vmatmul.mubr.f32.gmra.mxu0 %v139
    %v209 = vpop.f32.mrf.mxu0
    %v210 = vadd.f32 %v131, %v209
    %v211 = vpop.f32.mrf.mxu0
    %212 = vmatprep.mubr.f32.mxu0 0.0
    %213 = vmatmul.mubr.f32.gmra.mxu0 %v141
    %v214 = vpop.f32.mrf.mxu0
    %v215 = vadd.f32 %v136, %v214
    %v216 = vpop.f32.mrf.mxu0
    %217 = vdwg.mxu0
    %vm218 = vcmask 1045504
    %v219 = vrot.slane %v51, 2
    %v220 = vrot.slane %v52, 2
    %v221 = vsel %vm218, %v219, %v220
    %v222 = vsel %vm59, %v221, 0
    %v224 = vsel %vm59, %v220, 0
    %226 = vmatprep.subr.mxu0 0.0
    %227 = vmatpush1.msra.mxu0 0.0
    %228 = vmatprep.subr.mxu0 0.0
    %229 = vmatpush1.msra.mxu0 0.0
    %230 = vmatprep.subr.mxu0 0.0
    %231 = vmatpush1.msra.mxu0 0.0
    %232 = vmatprep.subr.mxu0 0.0
    %233 = vmatpush1.msra.mxu0 0.0
    %234 = vmatprep.subr.mxu0 0.0
    %235 = vmatpush1.msra.mxu0 0.0
    %236 = vmatprep.subr.mxu0 0.0
    %237 = vmatpush1.msra.mxu0 0.0
    %238 = vmatprep.subr.mxu0 0.0
    %239 = vmatpush1.msra.mxu0 0.0
    %240 = vmatprep.subr.mxu0 0.0
    %241 = vmatpush1.msra.mxu0 0.0
    %242 = vmatprep.subr.mxu0 0.0
    %243 = vmatpush1.msra.mxu0 0.0
    %244 = vmatprep.subr.mxu0 0.0
    %245 = vmatpush1.msra.mxu0 0.0
    %246 = vmatprep.subr.mxu0 0.0
    %247 = vmatpush1.msra.mxu0 0.0
    %248 = vmatprep.subr.mxu0 0.0
    %249 = vmatpush1.msra.mxu0 0.0
    %250 = vmatprep.subr.mxu0 0.0
    %251 = vmatpush1.msra.mxu0 %v44
    %252 = vmatprep.subr.mxu0 0.0
    %253 = vmatpush1.msra.mxu0 %v43
    %254 = vmatprep.subr.mxu0 0.0
    %255 = vmatpush1.msra.mxu0 %v42
    %256 = vmatprep.subr.mxu0 0.0
    %257 = vmatpush1.msra.mxu0 %v41
    %258 = vmatprep.subr.mxu0 0.0
    %259 = vmatpush2.msra.mxu0 0.0
    %260 = vmatprep.subr.mxu0 0.0
    %261 = vmatpush2.msra.mxu0 0.0
    %262 = vmatprep.subr.mxu0 0.0
    %263 = vmatpush2.msra.mxu0 0.0
    %264 = vmatprep.subr.mxu0 0.0
    %265 = vmatpush2.msra.mxu0 0.0
    %266 = vmatprep.subr.mxu0 0.0
    %267 = vmatpush2.msra.mxu0 0.0
    %268 = vmatprep.subr.mxu0 0.0
    %269 = vmatpush2.msra.mxu0 0.0
    %270 = vmatprep.subr.mxu0 0.0
    %271 = vmatpush2.msra.mxu0 0.0
    %272 = vmatprep.subr.mxu0 0.0
    %273 = vmatpush2.msra.mxu0 0.0
    %274 = vmatprep.subr.mxu0 0.0
    %275 = vmatpush2.msra.mxu0 0.0
    %276 = vmatprep.subr.mxu0 0.0
    %277 = vmatpush2.msra.mxu0 0.0
    %278 = vmatprep.subr.mxu0 0.0
    %279 = vmatpush2.msra.mxu0 0.0
    %280 = vmatprep.subr.mxu0 0.0
    %281 = vmatpush2.msra.mxu0 0.0
    %282 = vmatprep.subr.mxu0 0.0
    %283 = vmatpush2.msra.mxu0 0.0
    %284 = vmatprep.subr.mxu0 0.0
    %285 = vmatpush2.msra.mxu0 0.0
    %286 = vmatprep.subr.mxu0 0.0
    %287 = vmatpush2.msra.mxu0 0.0
    %288 = vmatprep.subr.mxu0 0.0
    %289 = vmatpush2.msra.mxu0 0.0
    %290 = vmatprep.mubr.f32.mxu0 0.0
    %291 = vmatmul.mubr.f32.gmra.mxu0 %v222
    %v292 = vpop.f32.mrf.mxu0
    %v293 = vadd.f32 0.0, %v292
    %v294 = vpop.f32.mrf.mxu0
    %295 = vmatprep.mubr.f32.mxu0 0.0
    %296 = vmatmul.mubr.f32.gmra.mxu0 %v224
    %v297 = vpop.f32.mrf.mxu0
    %v298 = vadd.f32 0.0, %v297
    %v299 = vpop.f32.mrf.mxu0
    %300 = vdwg.mxu0
    %v301 = vadd.f32 %v210, %v293
    %v302 = vadd.f32 %v215, %v298
    %v304 = vlaneseq
    %v305 = vshrl.u32 %v304, 7
    %v306 = vsub.s32 0, %v305
    %v307 = vrot.slane %v45, %v306
    %v309 = vadd.f32 %v301, %v307
    %v310 = vadd.f32 %v302, %v307
    %v311 = vmax.f32 %v309, 0.0
    %v312 = vmax.f32 %v310, 0.0
    %vm315 = vcmask 1040384
    %v316 = vrot.slane %v311, 7
    %v317 = vrot.slane %v312, 7
    %v318 = vsel %vm315, %v316, %v317
    %v321 = vsel %vm315, 0.0, %v316
    %v322 = vsel %vm55, %v318, 0.0
    %324 = vset.pattern.permute.xlu0 0
    %325 = vperm.xlu0 %324, %v321
    %v326 = vpop.permute.xlu0 %325
    %329 = vset.pattern.permute.xlu0 0
    %330 = vperm.xlu0 %329, %v322
    %v331 = vpop.permute.xlu0 %330
    %v333 = vlaneseq
    %v334 = vshrl.u32 %v333, 7
    %v335 = vsub.s32 0, %v334
    %v336 = vrot.slane %v48, %v335
    %v337 = vmul.f32 %v326, %v336
    %v338 = vmul.f32 %v331, %v336
    %339 = vset.pattern.permute.xlu0 1
    %340 = vperm.xlu0 %339, %v321
    %v341 = vpop.permute.xlu0 %340
    %343 = vset.pattern.permute.xlu0 1
    %344 = vperm.xlu0 %343, %v322
    %v345 = vpop.permute.xlu0 %344
    %v347 = vlaneseq
    %v348 = vshrl.u32 %v347, 7
    %v349 = vsub.s32 1, %v348
    %v350 = vrot.slane %v48, %v349
    %v351 = vmul.f32 %v341, %v350
    %v352 = vmul.f32 %v345, %v350
    %v353 = vadd.f32 %v337, %v351
    %v354 = vadd.f32 %v338, %v352
    %355 = vset.pattern.permute.xlu0 2
    %356 = vperm.xlu0 %355, %v321
    %v357 = vpop.permute.xlu0 %356
    %359 = vset.pattern.permute.xlu0 2
    %360 = vperm.xlu0 %359, %v322
    %v361 = vpop.permute.xlu0 %360
    %v363 = vlaneseq
    %v364 = vshrl.u32 %v363, 7
    %v365 = vsub.s32 2, %v364
    %v366 = vrot.slane %v48, %v365
    %v367 = vmul.f32 %v357, %v366
    %v368 = vmul.f32 %v361, %v366
    %v369 = vadd.f32 %v353, %v367
    %v370 = vadd.f32 %v354, %v368
    %v371 = vlaneseq
    %v372 = vshrl.u32 %v371, 7
    %v373 = vsub.s32 3, %v372
    %v374 = vrot.slane %v48, %v373
    %v375 = vmul.f32 %v326, %v374
    %v376 = vmul.f32 %v331, %v374
    %v379 = vrot.slane %v375, 1
    %v380 = vrot.slane %v376, 1
    %v381 = vsel %vm55, %v379, %v380
    %v384 = vadd.f32 %v369, %v381
    %v385 = vadd.f32 %v370, %v380
    %v386 = vlaneseq
    %v387 = vshrl.u32 %v386, 7
    %v388 = vsub.s32 4, %v387
    %v389 = vrot.slane %v48, %v388
    %v390 = vmul.f32 %v341, %v389
    %v391 = vmul.f32 %v345, %v389
    %v394 = vrot.slane %v390, 1
    %v395 = vrot.slane %v391, 1
    %v396 = vsel %vm55, %v394, %v395
    %v399 = vadd.f32 %v384, %v396
    %v400 = vadd.f32 %v385, %v395
    %v401 = vlaneseq
    %v402 = vshrl.u32 %v401, 7
    %v403 = vsub.s32 5, %v402
    %v404 = vrot.slane %v48, %v403
    %v405 = vmul.f32 %v357, %v404
    %v406 = vmul.f32 %v361, %v404
    %v409 = vrot.slane %v405, 1
    %v410 = vrot.slane %v406, 1
    %v411 = vsel %vm55, %v409, %v410
    %v414 = vadd.f32 %v399, %v411
    %v415 = vadd.f32 %v400, %v410
    %v416 = vlaneseq
    %v417 = vshrl.u32 %v416, 7
    %v418 = vsub.s32 6, %v417
    %v419 = vrot.slane %v48, %v418
    %v420 = vmul.f32 %v326, %v419
    %v421 = vmul.f32 %v331, %v419
    %v424 = vrot.slane %v420, 2
    %v425 = vrot.slane %v421, 2
    %v426 = vsel %vm218, %v424, %v425
    %v429 = vadd.f32 %v414, %v426
    %v430 = vadd.f32 %v415, %v425
    %v431 = vlaneseq
    %v432 = vshrl.u32 %v431, 7
    %v433 = vsub.s32 7, %v432
    %v434 = vrot.slane %v48, %v433
    %v435 = vmul.f32 %v341, %v434
    %v436 = vmul.f32 %v345, %v434
    %v439 = vrot.slane %v435, 2
    %v440 = vrot.slane %v436, 2
    %v441 = vsel %vm218, %v439, %v440
    %v444 = vadd.f32 %v429, %v441
    %v445 = vadd.f32 %v430, %v440
    %v446 = vlaneseq
    %v447 = vshrl.u32 %v446, 7
    %v448 = vsub.s32 0, %v447
    %v449 = vrot.slane %v49, %v448
    %v450 = vmul.f32 %v357, %v449
    %v451 = vmul.f32 %v361, %v449
    %v454 = vrot.slane %v450, 2
    %v455 = vrot.slane %v451, 2
    %v456 = vsel %vm218, %v454, %v455
    %v459 = vadd.f32 %v444, %v456
    %v460 = vadd.f32 %v445, %v455
    %v462 = vlaneseq
    %v463 = vshrl.u32 %v462, 7
    %v464 = vsub.s32 0, %v463
    %v465 = vrot.slane %v46, %v464
    %v467 = vadd.f32 %v459, %v465
    %v468 = vadd.f32 %v460, %v465
    %v469 = vmax.f32 %v467, 0.0
    %v470 = vmax.f32 %v468, 0.0
    %v473 = vrot.slane %v469, 7
    %v474 = vrot.slane %v470, 7
    %v475 = vsel %vm315, %v473, %v474
    %v478 = vsel %vm315, 0.0, %v473
    %v479 = vsel %vm55, %v475, 0.0
    %481 = vset.pattern.permute.xlu0 0
    %482 = vperm.xlu0 %481, %v478
    %v483 = vpop.permute.xlu0 %482
    %486 = vset.pattern.permute.xlu0 0
    %487 = vperm.xlu0 %486, %v479
    %v488 = vpop.permute.xlu0 %487
    %v490 = vmul.f32 %v483, %v336
    %v491 = vmul.f32 %v488, %v336
    %492 = vset.pattern.permute.xlu0 1
    %493 = vperm.xlu0 %492, %v478
    %v494 = vpop.permute.xlu0 %493
    %496 = vset.pattern.permute.xlu0 1
    %497 = vperm.xlu0 %496, %v479
    %v498 = vpop.permute.xlu0 %497
    %v500 = vmul.f32 %v494, %v350
    %v501 = vmul.f32 %v498, %v350
    %v502 = vadd.f32 %v490, %v500
    %v503 = vadd.f32 %v491, %v501
    %504 = vset.pattern.permute.xlu0 2
    %505 = vperm.xlu0 %504, %v478
    %v506 = vpop.permute.xlu0 %505
    %508 = vset.pattern.permute.xlu0 2
    %509 = vperm.xlu0 %508, %v479
    %v510 = vpop.permute.xlu0 %509
    %v512 = vmul.f32 %v506, %v366
    %v513 = vmul.f32 %v510, %v366
    %v514 = vadd.f32 %v502, %v512
    %v515 = vadd.f32 %v503, %v513
    %v516 = vmul.f32 %v483, %v374
    %v517 = vmul.f32 %v488, %v374
    %v520 = vrot.slane %v516, 1
    %v521 = vrot.slane %v517, 1
    %v522 = vsel %vm55, %v520, %v521
    %v525 = vadd.f32 %v514, %v522
    %v526 = vadd.f32 %v515, %v521
    %v527 = vmul.f32 %v494, %v389
    %v528 = vmul.f32 %v498, %v389
    %v531 = vrot.slane %v527, 1
    %v532 = vrot.slane %v528, 1
    %v533 = vsel %vm55, %v531, %v532
    %v536 = vadd.f32 %v525, %v533
    %v537 = vadd.f32 %v526, %v532
    %v538 = vmul.f32 %v506, %v404
    %v539 = vmul.f32 %v510, %v404
    %v542 = vrot.slane %v538, 1
    %v543 = vrot.slane %v539, 1
    %v544 = vsel %vm55, %v542, %v543
    %v547 = vadd.f32 %v536, %v544
    %v548 = vadd.f32 %v537, %v543
    %v549 = vmul.f32 %v483, %v419
    %v550 = vmul.f32 %v488, %v419
    %v553 = vrot.slane %v549, 2
    %v554 = vrot.slane %v550, 2
    %v555 = vsel %vm218, %v553, %v554
    %v558 = vadd.f32 %v547, %v555
    %v559 = vadd.f32 %v548, %v554
    %v560 = vmul.f32 %v494, %v434
    %v561 = vmul.f32 %v498, %v434
    %v564 = vrot.slane %v560, 2
    %v565 = vrot.slane %v561, 2
    %v566 = vsel %vm218, %v564, %v565
    %v569 = vadd.f32 %v558, %v566
    %v570 = vadd.f32 %v559, %v565
    %v571 = vmul.f32 %v506, %v449
    %v572 = vmul.f32 %v510, %v449
    %v575 = vrot.slane %v571, 2
    %v576 = vrot.slane %v572, 2
    %v577 = vsel %vm218, %v575, %v576
    %v580 = vadd.f32 %v569, %v577
    %v581 = vadd.f32 %v570, %v576
    %v582 = vadd.f32 %v580, %v465
    %v583 = vadd.f32 %v581, %v465
    %v584 = vsel %vm218, %v583, 0.0
    %v587 = vrot.slane %v582, 1
    %v588 = vrot.slane %v584, 1
    %v589 = vsel %vm55, %v587, %v588
    %v592 = vmax.f32 %v582, %v589
    %v593 = vmax.f32 %v584, %v588
    %v594 = vrot.slane %v582, 2
    %v595 = vrot.slane %v584, 2
    %v596 = vsel %vm218, %v594, %v595
    %v599 = vmax.f32 %v592, %v596
    %v600 = vmax.f32 %v593, %v595
    %vm601 = vcmask 23552
    %602 = vst.msk [vmem:[#allocation2] sm:$0xff] %vm601, %v599
    %vm603 = vcmask 20480
    %604 = vst.msk [vmem:[#allocation2 + $0x8] sm:$0x1f] %vm603, %v600
    %v605 = vld [vmem:[#allocation2] ss:$2 sm:$0x7f]
    %v606 = vmax.f32 %v605, 0.0
    %v608 = vrot.slane %v606, 7
    %v610 = vsel %vm315, 0.0, %v608
    %612 = vset.pattern.permute.xlu0 0
    %613 = vperm.xlu0 %612, %v610
    %v614 = vpop.permute.xlu0 %613
    %v616 = vmul.f32 %v614, %v336
    %617 = vset.pattern.permute.xlu0 1
    %618 = vperm.xlu0 %617, %v610
    %v619 = vpop.permute.xlu0 %618
    %v621 = vmul.f32 %v619, %v350
    %v622 = vadd.f32 %v616, %v621
    %623 = vset.pattern.permute.xlu0 2
    %624 = vperm.xlu0 %623, %v610
    %v625 = vpop.permute.xlu0 %624
    %v627 = vmul.f32 %v625, %v366
    %v628 = vadd.f32 %v622, %v627
    %v629 = vmul.f32 %v614, %v374
    %v631 = vrot.slane %v629, 1
    %v633 = vadd.f32 %v628, %v631
    %v634 = vmul.f32 %v619, %v389
    %v636 = vrot.slane %v634, 1
    %v638 = vadd.f32 %v633, %v636
    %v639 = vmul.f32 %v625, %v404
    %v641 = vrot.slane %v639, 1
    %v643 = vadd.f32 %v638, %v641
    %645 = vset.pattern.permute.xlu0 0
    %646 = vperm.xlu0 %645, 0.0
    %v647 = vpop.permute.xlu0 %646
    %v649 = vmul.f32 %v614, %v419
    %v650 = vmul.f32 %v647, %v419
    %v653 = vrot.slane %v649, 2
    %v654 = vrot.slane %v650, 2
    %v655 = vsel %vm218, %v653, %v654
    %v657 = vadd.f32 %v643, %v655
    %658 = vset.pattern.permute.xlu0 1
    %659 = vperm.xlu0 %658, 0.0
    %v660 = vpop.permute.xlu0 %659
    %v662 = vmul.f32 %v619, %v434
    %v663 = vmul.f32 %v660, %v434
    %v666 = vrot.slane %v662, 2
    %v667 = vrot.slane %v663, 2
    %v668 = vsel %vm218, %v666, %v667
    %v670 = vadd.f32 %v657, %v668
    %671 = vset.pattern.permute.xlu0 2
    %672 = vperm.xlu0 %671, 0.0
    %v673 = vpop.permute.xlu0 %672
    %v675 = vmul.f32 %v625, %v449
    %v676 = vmul.f32 %v673, %v449
    %v679 = vrot.slane %v675, 2
    %v680 = vrot.slane %v676, 2
    %v681 = vsel %vm218, %v679, %v680
    %v683 = vadd.f32 %v670, %v681
    %v684 = vadd.f32 %v683, %v465
    %v685 = vmax.f32 %v684, 0.0
    %v687 = vrot.slane %v685, 7
    %v689 = vsel %vm315, 0.0, %v687
    %691 = vset.pattern.permute.xlu0 0
    %692 = vperm.xlu0 %691, %v689
    %v693 = vpop.permute.xlu0 %692
    %v695 = vmul.f32 %v693, %v336
    %696 = vset.pattern.permute.xlu0 1
    %697 = vperm.xlu0 %696, %v689
    %v698 = vpop.permute.xlu0 %697
    %v700 = vmul.f32 %v698, %v350
    %v701 = vadd.f32 %v695, %v700
    %702 = vset.pattern.permute.xlu0 2
    %703 = vperm.xlu0 %702, %v689
    %v704 = vpop.permute.xlu0 %703
    %v706 = vmul.f32 %v704, %v366
    %v707 = vadd.f32 %v701, %v706
    %v708 = vmul.f32 %v693, %v374
    %v710 = vrot.slane %v708, 1
    %v712 = vadd.f32 %v707, %v710
    %v713 = vmul.f32 %v698, %v389
    %v715 = vrot.slane %v713, 1
    %v717 = vadd.f32 %v712, %v715
    %v718 = vmul.f32 %v704, %v404
    %v720 = vrot.slane %v718, 1
    %v722 = vadd.f32 %v717, %v720
    %v723 = vmul.f32 %v693, %v419
    %v725 = vrot.slane %v723, 2
    %v726 = vsel %vm218, %v725, %v654
    %v728 = vadd.f32 %v722, %v726
    %v729 = vmul.f32 %v698, %v434
    %v731 = vrot.slane %v729, 2
    %v732 = vsel %vm218, %v731, %v667
    %v734 = vadd.f32 %v728, %v732
    %v735 = vmul.f32 %v704, %v449
    %v737 = vrot.slane %v735, 2
    %v738 = vsel %vm218, %v737, %v680
    %v740 = vadd.f32 %v734, %v738
    %v741 = vadd.f32 %v740, %v465
    %v742 = vadd.f32 %v741, %v605
    %v743 = vsel %vm55, %v742, 0.0
    %v745 = vrot.slane %v743, 1
    %v747 = vmax.f32 %v743, %v745
    %v748 = vrot.slane %v743, 2
    %v750 = vmax.f32 %v747, %v748
    %vm751 = vcmask 21504
    %752 = vst.msk [vmem:[#allocation2] sm:$0x3f] %vm751, %v750
    %v753 = vld [vmem:[#allocation2] ss:$2 sm:$0x7]
    %v754 = vmax.f32 %v753, 0.0
    %v756 = vrot.slane %v754, 7
    %v758 = vsel %vm315, 0.0, %v756
    %vm759 = vcmask 1043456
    %v760 = vsel %vm759, %v758, 0.0
    %762 = vset.pattern.permute.xlu0 0
    %763 = vperm.xlu0 %762, %v760
    %v764 = vpop.permute.xlu0 %763
    %v766 = vmul.f32 %v764, %v336
    %767 = vset.pattern.permute.xlu0 1
    %768 = vperm.xlu0 %767, %v760
    %v769 = vpop.permute.xlu0 %768
    %v771 = vmul.f32 %v769, %v350
    %v772 = vadd.f32 %v766, %v771
    %773 = vset.pattern.permute.xlu0 2
    %774 = vperm.xlu0 %773, %v760
    %v775 = vpop.permute.xlu0 %774
    %v777 = vmul.f32 %v775, %v366
    %v778 = vadd.f32 %v772, %v777
    %v779 = vmul.f32 %v764, %v374
    %v781 = vrot.slane %v779, 1
    %v783 = vadd.f32 %v778, %v781
    %v784 = vmul.f32 %v769, %v389
    %v786 = vrot.slane %v784, 1
    %v788 = vadd.f32 %v783, %v786
    %v789 = vmul.f32 %v775, %v404
    %v791 = vrot.slane %v789, 1
    %v793 = vadd.f32 %v788, %v791
    %v794 = vmul.f32 %v764, %v419
    %v796 = vrot.slane %v794, 2
    %v798 = vadd.f32 %v793, %v796
    %v799 = vmul.f32 %v769, %v434
    %v801 = vrot.slane %v799, 2
    %v803 = vadd.f32 %v798, %v801
    %v804 = vmul.f32 %v775, %v449
    %v806 = vrot.slane %v804, 2
    %v808 = vadd.f32 %v803, %v806
    %v809 = vadd.f32 %v808, %v465
    %v810 = vmax.f32 %v809, 0.0
    %v812 = vrot.slane %v810, 7
    %v814 = vsel %vm315, 0.0, %v812
    %v815 = vsel %vm759, %v814, 0.0
    %817 = vset.pattern.permute.xlu0 0
    %818 = vperm.xlu0 %817, %v815
    %v819 = vpop.permute.xlu0 %818
    %v821 = vmul.f32 %v819, %v336
    %822 = vset.pattern.permute.xlu0 1
    %823 = vperm.xlu0 %822, %v815
    %v824 = vpop.permute.xlu0 %823
    %v826 = vmul.f32 %v824, %v350
    %v827 = vadd.f32 %v821, %v826
    %828 = vset.pattern.permute.xlu0 2
    %829 = vperm.xlu0 %828, %v815
    %v830 = vpop.permute.xlu0 %829
    %v832 = vmul.f32 %v830, %v366
    %v833 = vadd.f32 %v827, %v832
    %v834 = vmul.f32 %v819, %v374
    %v836 = vrot.slane %v834, 1
    %v838 = vadd.f32 %v833, %v836
    %v839 = vmul.f32 %v824, %v389
    %v841 = vrot.slane %v839, 1
    %v843 = vadd.f32 %v838, %v841
    %v844 = vmul.f32 %v830, %v404
    %v846 = vrot.slane %v844, 1
    %v848 = vadd.f32 %v843, %v846
    %v849 = vmul.f32 %v819, %v419
    %v851 = vrot.slane %v849, 2
    %v853 = vadd.f32 %v848, %v851
    %v854 = vmul.f32 %v824, %v434
    %v856 = vrot.slane %v854, 2
    %v858 = vadd.f32 %v853, %v856
    %v859 = vmul.f32 %v830, %v449
    %v861 = vrot.slane %v859, 2
    %v863 = vadd.f32 %v858, %v861
    %v864 = vadd.f32 %v863, %v465
    %v865 = vadd.f32 %v864, %v753
    %vm866 = vcmask 1042432
    %v867 = vsel %vm866, %v865, 0.0
    %v869 = vrot.slane %v867, 1
    %v871 = vmax.f32 %v867, %v869
    %v872 = vrot.slane %v867, 2
    %v874 = vmax.f32 %v871, %v872
    %v875 = vmax.f32 %v874, 0.0
    %v877 = vrot.slane %v875, 7
    %v879 = vsel %vm315, 0.0, %v877
    %vm880 = vcmask 1041408
    %v881 = vsel %vm880, %v879, 0.0
    %883 = vset.pattern.permute.xlu0 0
    %884 = vperm.xlu0 %883, %v881
    %v885 = vpop.permute.xlu0 %884
    %v887 = vmul.f32 %v885, %v48
    %888 = vset.pattern.permute.xlu0 1
    %889 = vperm.xlu0 %888, %v881
    %v890 = vpop.permute.xlu0 %889
    %v893 = vrot.slane %v48, 1
    %v895 = vmul.f32 %v890, %v893
    %v896 = vadd.f32 %v887, %v895
    %897 = vset.pattern.permute.xlu0 2
    %898 = vperm.xlu0 %897, %v881
    %v899 = vpop.permute.xlu0 %898
    %v901 = vrot.slane %v48, 2
    %v903 = vmul.f32 %v899, %v901
    %v904 = vadd.f32 %v896, %v903
    %v905 = vmul.f32 %v885, %v901
    %v907 = vrot.slane %v905, 1
    %v909 = vadd.f32 %v904, %v907
    %v910 = vrot.slane %v48, 3
    %v912 = vmul.f32 %v890, %v910
    %v914 = vrot.slane %v912, 1
    %v916 = vadd.f32 %v909, %v914
    %v917 = vrot.slane %v48, 4
    %v919 = vmul.f32 %v899, %v917
    %v921 = vrot.slane %v919, 1
    %v923 = vadd.f32 %v916, %v921
    %v924 = vmul.f32 %v885, %v917
    %v926 = vrot.slane %v924, 2
    %v928 = vadd.f32 %v923, %v926
    %v929 = vrot.slane %v48, 5
    %v931 = vmul.f32 %v890, %v929
    %v933 = vrot.slane %v931, 2
    %v935 = vadd.f32 %v928, %v933
    %v937 = vrot.slane %v49, 6
    %v939 = vmul.f32 %v899, %v937
    %v941 = vrot.slane %v939, 2
    %v943 = vadd.f32 %v935, %v941
    %v944 = vadd.f32 %v943, %v46
    %v945 = vmax.f32 %v944, 0.0
    %v947 = vrot.slane %v945, 7
    %v949 = vsel %vm315, 0.0, %v947
    %v950 = vsel %vm880, %v949, 0.0
    %952 = vset.pattern.permute.xlu0 0
    %953 = vperm.xlu0 %952, %v950
    %v954 = vpop.permute.xlu0 %953
    %v956 = vmul.f32 %v954, %v48
    %957 = vset.pattern.permute.xlu0 1
    %958 = vperm.xlu0 %957, %v950
    %v959 = vpop.permute.xlu0 %958
    %v961 = vmul.f32 %v959, %v893
    %v962 = vadd.f32 %v956, %v961
    %963 = vset.pattern.permute.xlu0 2
    %964 = vperm.xlu0 %963, %v950
    %v965 = vpop.permute.xlu0 %964
    %v967 = vmul.f32 %v965, %v901
    %v968 = vadd.f32 %v962, %v967
    %v969 = vmul.f32 %v954, %v901
    %v971 = vrot.slane %v969, 1
    %v973 = vadd.f32 %v968, %v971
    %v974 = vmul.f32 %v959, %v910
    %v976 = vrot.slane %v974, 1
    %v978 = vadd.f32 %v973, %v976
    %v979 = vmul.f32 %v965, %v917
    %v981 = vrot.slane %v979, 1
    %v983 = vadd.f32 %v978, %v981
    %v984 = vmul.f32 %v954, %v917
    %v986 = vrot.slane %v984, 2
    %v988 = vadd.f32 %v983, %v986
    %v989 = vmul.f32 %v959, %v929
    %v991 = vrot.slane %v989, 2
    %v993 = vadd.f32 %v988, %v991
    %v994 = vmul.f32 %v965, %v937
    %v996 = vrot.slane %v994, 2
    %v998 = vadd.f32 %v993, %v996
    %v999 = vadd.f32 %v998, %v46
    %v1000 = vadd.f32 %v999, %v874
    %s1001 = scalar_lea.vmem %s0, 16
    %v1002 = vld [vmem:[%s1001] sm:$0xff]
    %v1003 = vld [vmem:[%s1001 + $0x8] sm:$0xff]
    %v1006 = vrot.slane %v1002, 1
    %v1007 = vrot.slane %v1003, 1
    %v1008 = vsel %vm55, %v1006, %v1007
    %v1009 = vsel %vm59, %v1008, 0
    %v1011 = vsel %vm59, %v1007, 0
    %1013 = vmatprep.subr.mxu0 0.0
    %1014 = vmatpush1.msra.mxu0 0.0
    %1015 = vmatprep.subr.mxu0 0.0
    %1016 = vmatpush1.msra.mxu0 0.0
    %1017 = vmatprep.subr.mxu0 0.0
    %1018 = vmatpush1.msra.mxu0 0.0
    %1019 = vmatprep.subr.mxu0 0.0
    %1020 = vmatpush1.msra.mxu0 0.0
    %1021 = vmatprep.subr.mxu0 0.0
    %1022 = vmatpush1.msra.mxu0 0.0
    %1023 = vmatprep.subr.mxu0 0.0
    %1024 = vmatpush1.msra.mxu0 0.0
    %1025 = vmatprep.subr.mxu0 0.0
    %1026 = vmatpush1.msra.mxu0 0.0
    %1027 = vmatprep.subr.mxu0 0.0
    %1028 = vmatpush1.msra.mxu0 0.0
    %1029 = vmatprep.subr.mxu0 0.0
    %1030 = vmatpush1.msra.mxu0 0.0
    %1031 = vmatprep.subr.mxu0 0.0
    %1032 = vmatpush1.msra.mxu0 0.0
    %1033 = vmatprep.subr.mxu0 0.0
    %1034 = vmatpush1.msra.mxu0 0.0
    %1035 = vmatprep.subr.mxu0 0.0
    %1036 = vmatpush1.msra.mxu0 0.0
    %1037 = vmatprep.subr.mxu0 0.0
    %1038 = vmatpush1.msra.mxu0 %v40
    %1039 = vmatprep.subr.mxu0 0.0
    %1040 = vmatpush1.msra.mxu0 %v39
    %1041 = vmatprep.subr.mxu0 0.0
    %1042 = vmatpush1.msra.mxu0 %v38
    %1043 = vmatprep.subr.mxu0 0.0
    %1044 = vmatpush1.msra.mxu0 %v37
    %1045 = vmatprep.subr.mxu0 0.0
    %1046 = vmatpush2.msra.mxu0 0.0
    %1047 = vmatprep.subr.mxu0 0.0
    %1048 = vmatpush2.msra.mxu0 0.0
    %1049 = vmatprep.subr.mxu0 0.0
    %1050 = vmatpush2.msra.mxu0 0.0
    %1051 = vmatprep.subr.mxu0 0.0
    %1052 = vmatpush2.msra.mxu0 0.0
    %1053 = vmatprep.subr.mxu0 0.0
    %1054 = vmatpush2.msra.mxu0 0.0
    %1055 = vmatprep.subr.mxu0 0.0
    %1056 = vmatpush2.msra.mxu0 0.0
    %1057 = vmatprep.subr.mxu0 0.0
    %1058 = vmatpush2.msra.mxu0 0.0
    %1059 = vmatprep.subr.mxu0 0.0
    %1060 = vmatpush2.msra.mxu0 0.0
    %1061 = vmatprep.subr.mxu0 0.0
    %1062 = vmatpush2.msra.mxu0 0.0
    %1063 = vmatprep.subr.mxu0 0.0
    %1064 = vmatpush2.msra.mxu0 0.0
    %1065 = vmatprep.subr.mxu0 0.0
    %1066 = vmatpush2.msra.mxu0 0.0
    %1067 = vmatprep.subr.mxu0 0.0
    %1068 = vmatpush2.msra.mxu0 0.0
    %1069 = vmatprep.subr.mxu0 0.0
    %1070 = vmatpush2.msra.mxu0 0.0
    %1071 = vmatprep.subr.mxu0 0.0
    %1072 = vmatpush2.msra.mxu0 0.0
    %1073 = vmatprep.subr.mxu0 0.0
    %1074 = vmatpush2.msra.mxu0 0.0
    %1075 = vmatprep.subr.mxu0 0.0
    %1076 = vmatpush2.msra.mxu0 0.0
    %1077 = vmatprep.mubr.f32.mxu0 0.0
    %1078 = vmatmul.mubr.f32.gmra.mxu0 %v1009
    %v1079 = vpop.f32.mrf.mxu0
    %v1080 = vadd.f32 0.0, %v1079
    %v1081 = vpop.f32.mrf.mxu0
    %1082 = vmatprep.mubr.f32.mxu0 0.0
    %1083 = vmatmul.mubr.f32.gmra.mxu0 %v1011
    %v1084 = vpop.f32.mrf.mxu0
    %v1085 = vadd.f32 0.0, %v1084
    %v1086 = vpop.f32.mrf.mxu0
    %1087 = vdwg.mxu0
    %v1088 = vsel %vm59, %v1002, 0
    %v1090 = vsel %vm59, %v1003, 0
    %1092 = vmatprep.subr.mxu0 0.0
    %1093 = vmatpush1.msra.mxu0 0.0
    %1094 = vmatprep.subr.mxu0 0.0
    %1095 = vmatpush1.msra.mxu0 0.0
    %1096 = vmatprep.subr.mxu0 0.0
    %1097 = vmatpush1.msra.mxu0 0.0
    %1098 = vmatprep.subr.mxu0 0.0
    %1099 = vmatpush1.msra.mxu0 0.0
    %1100 = vmatprep.subr.mxu0 0.0
    %1101 = vmatpush1.msra.mxu0 0.0
    %1102 = vmatprep.subr.mxu0 0.0
    %1103 = vmatpush1.msra.mxu0 0.0
    %1104 = vmatprep.subr.mxu0 0.0
    %1105 = vmatpush1.msra.mxu0 0.0
    %1106 = vmatprep.subr.mxu0 0.0
    %1107 = vmatpush1.msra.mxu0 0.0
    %1108 = vmatprep.subr.mxu0 0.0
    %1109 = vmatpush1.msra.mxu0 0.0
    %1110 = vmatprep.subr.mxu0 0.0
    %1111 = vmatpush1.msra.mxu0 0.0
    %1112 = vmatprep.subr.mxu0 0.0
    %1113 = vmatpush1.msra.mxu0 0.0
    %1114 = vmatprep.subr.mxu0 0.0
    %1115 = vmatpush1.msra.mxu0 0.0
    %1116 = vmatprep.subr.mxu0 0.0
    %1117 = vmatpush1.msra.mxu0 %v36
    %1118 = vmatprep.subr.mxu0 0.0
    %1119 = vmatpush1.msra.mxu0 %v35
    %1120 = vmatprep.subr.mxu0 0.0
    %1121 = vmatpush1.msra.mxu0 %v34
    %1122 = vmatprep.subr.mxu0 0.0
    %1123 = vmatpush1.msra.mxu0 %v33
    %1124 = vmatprep.subr.mxu0 0.0
    %1125 = vmatpush2.msra.mxu0 0.0
    %1126 = vmatprep.subr.mxu0 0.0
    %1127 = vmatpush2.msra.mxu0 0.0
    %1128 = vmatprep.subr.mxu0 0.0
    %1129 = vmatpush2.msra.mxu0 0.0
    %1130 = vmatprep.subr.mxu0 0.0
    %1131 = vmatpush2.msra.mxu0 0.0
    %1132 = vmatprep.subr.mxu0 0.0
    %1133 = vmatpush2.msra.mxu0 0.0
    %1134 = vmatprep.subr.mxu0 0.0
    %1135 = vmatpush2.msra.mxu0 0.0
    %1136 = vmatprep.subr.mxu0 0.0
    %1137 = vmatpush2.msra.mxu0 0.0
    %1138 = vmatprep.subr.mxu0 0.0
    %1139 = vmatpush2.msra.mxu0 0.0
    %1140 = vmatprep.subr.mxu0 0.0
    %1141 = vmatpush2.msra.mxu0 0.0
    %1142 = vmatprep.subr.mxu0 0.0
    %1143 = vmatpush2.msra.mxu0 0.0
    %1144 = vmatprep.subr.mxu0 0.0
    %1145 = vmatpush2.msra.mxu0 0.0
    %1146 = vmatprep.subr.mxu0 0.0
    %1147 = vmatpush2.msra.mxu0 0.0
    %1148 = vmatprep.subr.mxu0 0.0
    %1149 = vmatpush2.msra.mxu0 0.0
    %1150 = vmatprep.subr.mxu0 0.0
    %1151 = vmatpush2.msra.mxu0 0.0
    %1152 = vmatprep.subr.mxu0 0.0
    %1153 = vmatpush2.msra.mxu0 0.0
    %1154 = vmatprep.subr.mxu0 0.0
    %1155 = vmatpush2.msra.mxu0 0.0
    %1156 = vmatprep.mubr.f32.mxu0 0.0
    %1157 = vmatmul.mubr.f32.gmra.mxu0 %v1088
    %v1158 = vpop.f32.mrf.mxu0
    %v1159 = vadd.f32 %v1080, %v1158
    %v1160 = vpop.f32.mrf.mxu0
    %1161 = vmatprep.mubr.f32.mxu0 0.0
    %1162 = vmatmul.mubr.f32.gmra.mxu0 %v1090
    %v1163 = vpop.f32.mrf.mxu0
    %v1164 = vadd.f32 %v1085, %v1163
    %v1165 = vpop.f32.mrf.mxu0
    %1166 = vdwg.mxu0
    %v1167 = vrot.slane %v1002, 2
    %v1168 = vrot.slane %v1003, 2
    %v1169 = vsel %vm218, %v1167, %v1168
    %v1170 = vsel %vm59, %v1169, 0
    %v1172 = vsel %vm59, %v1168, 0
    %1174 = vmatprep.subr.mxu0 0.0
    %1175 = vmatpush1.msra.mxu0 0.0
    %1176 = vmatprep.subr.mxu0 0.0
    %1177 = vmatpush1.msra.mxu0 0.0
    %1178 = vmatprep.subr.mxu0 0.0
    %1179 = vmatpush1.msra.mxu0 0.0
    %1180 = vmatprep.subr.mxu0 0.0
    %1181 = vmatpush1.msra.mxu0 0.0
    %1182 = vmatprep.subr.mxu0 0.0
    %1183 = vmatpush1.msra.mxu0 0.0
    %1184 = vmatprep.subr.mxu0 0.0
    %1185 = vmatpush1.msra.mxu0 0.0
    %1186 = vmatprep.subr.mxu0 0.0
    %1187 = vmatpush1.msra.mxu0 0.0
    %1188 = vmatprep.subr.mxu0 0.0
    %1189 = vmatpush1.msra.mxu0 0.0
    %1190 = vmatprep.subr.mxu0 0.0
    %1191 = vmatpush1.msra.mxu0 0.0
    %1192 = vmatprep.subr.mxu0 0.0
    %1193 = vmatpush1.msra.mxu0 0.0
    %1194 = vmatprep.subr.mxu0 0.0
    %1195 = vmatpush1.msra.mxu0 0.0
    %1196 = vmatprep.subr.mxu0 0.0
    %1197 = vmatpush1.msra.mxu0 0.0
    %1198 = vmatprep.subr.mxu0 0.0
    %1199 = vmatpush1.msra.mxu0 %v44
    %1200 = vmatprep.subr.mxu0 0.0
    %1201 = vmatpush1.msra.mxu0 %v43
    %1202 = vmatprep.subr.mxu0 0.0
    %1203 = vmatpush1.msra.mxu0 %v42
    %1204 = vmatprep.subr.mxu0 0.0
    %1205 = vmatpush1.msra.mxu0 %v41
    %1206 = vmatprep.subr.mxu0 0.0
    %1207 = vmatpush2.msra.mxu0 0.0
    %1208 = vmatprep.subr.mxu0 0.0
    %1209 = vmatpush2.msra.mxu0 0.0
    %1210 = vmatprep.subr.mxu0 0.0
    %1211 = vmatpush2.msra.mxu0 0.0
    %1212 = vmatprep.subr.mxu0 0.0
    %1213 = vmatpush2.msra.mxu0 0.0
    %1214 = vmatprep.subr.mxu0 0.0
    %1215 = vmatpush2.msra.mxu0 0.0
    %1216 = vmatprep.subr.mxu0 0.0
    %1217 = vmatpush2.msra.mxu0 0.0
    %1218 = vmatprep.subr.mxu0 0.0
    %1219 = vmatpush2.msra.mxu0 0.0
    %1220 = vmatprep.subr.mxu0 0.0
    %1221 = vmatpush2.msra.mxu0 0.0
    %1222 = vmatprep.subr.mxu0 0.0
    %1223 = vmatpush2.msra.mxu0 0.0
    %1224 = vmatprep.subr.mxu0 0.0
    %1225 = vmatpush2.msra.mxu0 0.0
    %1226 = vmatprep.subr.mxu0 0.0
    %1227 = vmatpush2.msra.mxu0 0.0
    %1228 = vmatprep.subr.mxu0 0.0
    %1229 = vmatpush2.msra.mxu0 0.0
    %1230 = vmatprep.subr.mxu0 0.0
    %1231 = vmatpush2.msra.mxu0 0.0
    %1232 = vmatprep.subr.mxu0 0.0
    %1233 = vmatpush2.msra.mxu0 0.0
    %1234 = vmatprep.subr.mxu0 0.0
    %1235 = vmatpush2.msra.mxu0 0.0
    %1236 = vmatprep.subr.mxu0 0.0
    %1237 = vmatpush2.msra.mxu0 0.0
    %1238 = vmatprep.mubr.f32.mxu0 0.0
    %1239 = vmatmul.mubr.f32.gmra.mxu0 %v1170
    %v1240 = vpop.f32.mrf.mxu0
    %v1241 = vadd.f32 0.0, %v1240
    %v1242 = vpop.f32.mrf.mxu0
    %1243 = vmatprep.mubr.f32.mxu0 0.0
    %1244 = vmatmul.mubr.f32.gmra.mxu0 %v1172
    %v1245 = vpop.f32.mrf.mxu0
    %v1246 = vadd.f32 0.0, %v1245
    %v1247 = vpop.f32.mrf.mxu0
    %1248 = vdwg.mxu0
    %v1249 = vadd.f32 %v1159, %v1241
    %v1250 = vadd.f32 %v1164, %v1246
    %v1251 = vadd.f32 %v1249, %v307
    %v1252 = vadd.f32 %v1250, %v307
    %v1253 = vmax.f32 %v1251, 0.0
    %v1254 = vmax.f32 %v1252, 0.0
    %v1257 = vrot.slane %v1253, 7
    %v1258 = vrot.slane %v1254, 7
    %v1259 = vsel %vm315, %v1257, %v1258
    %v1262 = vsel %vm315, 0.0, %v1257
    %v1263 = vsel %vm55, %v1259, 0.0
    %1265 = vset.pattern.permute.xlu0 0
    %1266 = vperm.xlu0 %1265, %v1262
    %v1267 = vpop.permute.xlu0 %1266
    %1270 = vset.pattern.permute.xlu0 0
    %1271 = vperm.xlu0 %1270, %v1263
    %v1272 = vpop.permute.xlu0 %1271
    %v1274 = vmul.f32 %v1267, %v336
    %v1275 = vmul.f32 %v1272, %v336
    %1276 = vset.pattern.permute.xlu0 1
    %1277 = vperm.xlu0 %1276, %v1262
    %v1278 = vpop.permute.xlu0 %1277
    %1280 = vset.pattern.permute.xlu0 1
    %1281 = vperm.xlu0 %1280, %v1263
    %v1282 = vpop.permute.xlu0 %1281
    %v1284 = vmul.f32 %v1278, %v350
    %v1285 = vmul.f32 %v1282, %v350
    %v1286 = vadd.f32 %v1274, %v1284
    %v1287 = vadd.f32 %v1275, %v1285
    %1288 = vset.pattern.permute.xlu0 2
    %1289 = vperm.xlu0 %1288, %v1262
    %v1290 = vpop.permute.xlu0 %1289
    %1292 = vset.pattern.permute.xlu0 2
    %1293 = vperm.xlu0 %1292, %v1263
    %v1294 = vpop.permute.xlu0 %1293
    %v1296 = vmul.f32 %v1290, %v366
    %v1297 = vmul.f32 %v1294, %v366
    %v1298 = vadd.f32 %v1286, %v1296
    %v1299 = vadd.f32 %v1287, %v1297
    %v1300 = vmul.f32 %v1267, %v374
    %v1301 = vmul.f32 %v1272, %v374
    %v1304 = vrot.slane %v1300, 1
    %v1305 = vrot.slane %v1301, 1
    %v1306 = vsel %vm55, %v1304, %v1305
    %v1309 = vadd.f32 %v1298, %v1306
    %v1310 = vadd.f32 %v1299, %v1305
    %v1311 = vmul.f32 %v1278, %v389
    %v1312 = vmul.f32 %v1282, %v389
    %v1315 = vrot.slane %v1311, 1
    %v1316 = vrot.slane %v1312, 1
    %v1317 = vsel %vm55, %v1315, %v1316
    %v1320 = vadd.f32 %v1309, %v1317
    %v1321 = vadd.f32 %v1310, %v1316
    %v1322 = vmul.f32 %v1290, %v404
    %v1323 = vmul.f32 %v1294, %v404
    %v1326 = vrot.slane %v1322, 1
    %v1327 = vrot.slane %v1323, 1
    %v1328 = vsel %vm55, %v1326, %v1327
    %v1331 = vadd.f32 %v1320, %v1328
    %v1332 = vadd.f32 %v1321, %v1327
    %v1333 = vmul.f32 %v1267, %v419
    %v1334 = vmul.f32 %v1272, %v419
    %v1337 = vrot.slane %v1333, 2
    %v1338 = vrot.slane %v1334, 2
    %v1339 = vsel %vm218, %v1337, %v1338
    %v1342 = vadd.f32 %v1331, %v1339
    %v1343 = vadd.f32 %v1332, %v1338
    %v1344 = vmul.f32 %v1278, %v434
    %v1345 = vmul.f32 %v1282, %v434
    %v1348 = vrot.slane %v1344, 2
    %v1349 = vrot.slane %v1345, 2
    %v1350 = vsel %vm218, %v1348, %v1349
    %v1353 = vadd.f32 %v1342, %v1350
    %v1354 = vadd.f32 %v1343, %v1349
    %v1355 = vmul.f32 %v1290, %v449
    %v1356 = vmul.f32 %v1294, %v449
    %v1359 = vrot.slane %v1355, 2
    %v1360 = vrot.slane %v1356, 2
    %v1361 = vsel %vm218, %v1359, %v1360
    %v1364 = vadd.f32 %v1353, %v1361
    %v1365 = vadd.f32 %v1354, %v1360
    %v1366 = vadd.f32 %v1364, %v465
    %v1367 = vadd.f32 %v1365, %v465
    %v1368 = vmax.f32 %v1366, 0.0
    %v1369 = vmax.f32 %v1367, 0.0
    %v1372 = vrot.slane %v1368, 7
    %v1373 = vrot.slane %v1369, 7
    %v1374 = vsel %vm315, %v1372, %v1373
    %v1377 = vsel %vm315, 0.0, %v1372
    %v1378 = vsel %vm55, %v1374, 0.0
    %1380 = vset.pattern.permute.xlu0 0
    %1381 = vperm.xlu0 %1380, %v1377
    %v1382 = vpop.permute.xlu0 %1381
    %1385 = vset.pattern.permute.xlu0 0
    %1386 = vperm.xlu0 %1385, %v1378
    %v1387 = vpop.permute.xlu0 %1386
    %v1389 = vmul.f32 %v1382, %v336
    %v1390 = vmul.f32 %v1387, %v336
    %1391 = vset.pattern.permute.xlu0 1
    %1392 = vperm.xlu0 %1391, %v1377
    %v1393 = vpop.permute.xlu0 %1392
    %1395 = vset.pattern.permute.xlu0 1
    %1396 = vperm.xlu0 %1395, %v1378
    %v1397 = vpop.permute.xlu0 %1396
    %v1399 = vmul.f32 %v1393, %v350
    %v1400 = vmul.f32 %v1397, %v350
    %v1401 = vadd.f32 %v1389, %v1399
    %v1402 = vadd.f32 %v1390, %v1400
    %1403 = vset.pattern.permute.xlu0 2
    %1404 = vperm.xlu0 %1403, %v1377
    %v1405 = vpop.permute.xlu0 %1404
    %1407 = vset.pattern.permute.xlu0 2
    %1408 = vperm.xlu0 %1407, %v1378
    %v1409 = vpop.permute.xlu0 %1408
    %v1411 = vmul.f32 %v1405, %v366
    %v1412 = vmul.f32 %v1409, %v366
    %v1413 = vadd.f32 %v1401, %v1411
    %v1414 = vadd.f32 %v1402, %v1412
    %v1415 = vmul.f32 %v1382, %v374
    %v1416 = vmul.f32 %v1387, %v374
    %v1419 = vrot.slane %v1415, 1
    %v1420 = vrot.slane %v1416, 1
    %v1421 = vsel %vm55, %v1419, %v1420
    %v1424 = vadd.f32 %v1413, %v1421
    %v1425 = vadd.f32 %v1414, %v1420
    %v1426 = vmul.f32 %v1393, %v389
    %v1427 = vmul.f32 %v1397, %v389
    %v1430 = vrot.slane %v1426, 1
    %v1431 = vrot.slane %v1427, 1
    %v1432 = vsel %vm55, %v1430, %v1431
    %v1435 = vadd.f32 %v1424, %v1432
    %v1436 = vadd.f32 %v1425, %v1431
    %v1437 = vmul.f32 %v1405, %v404
    %v1438 = vmul.f32 %v1409, %v404
    %v1441 = vrot.slane %v1437, 1
    %v1442 = vrot.slane %v1438, 1
    %v1443 = vsel %vm55, %v1441, %v1442
    %v1446 = vadd.f32 %v1435, %v1443
    %v1447 = vadd.f32 %v1436, %v1442
    %v1448 = vmul.f32 %v1382, %v419
    %v1449 = vmul.f32 %v1387, %v419
    %v1452 = vrot.slane %v1448, 2
    %v1453 = vrot.slane %v1449, 2
    %v1454 = vsel %vm218, %v1452, %v1453
    %v1457 = vadd.f32 %v1446, %v1454
    %v1458 = vadd.f32 %v1447, %v1453
    %v1459 = vmul.f32 %v1393, %v434
    %v1460 = vmul.f32 %v1397, %v434
    %v1463 = vrot.slane %v1459, 2
    %v1464 = vrot.slane %v1460, 2
    %v1465 = vsel %vm218, %v1463, %v1464
    %v1468 = vadd.f32 %v1457, %v1465
    %v1469 = vadd.f32 %v1458, %v1464
    %v1470 = vmul.f32 %v1405, %v449
    %v1471 = vmul.f32 %v1409, %v449
    %v1474 = vrot.slane %v1470, 2
    %v1475 = vrot.slane %v1471, 2
    %v1476 = vsel %vm218, %v1474, %v1475
    %v1479 = vadd.f32 %v1468, %v1476
    %v1480 = vadd.f32 %v1469, %v1475
    %v1481 = vadd.f32 %v1479, %v465
    %v1482 = vadd.f32 %v1480, %v465
    %v1483 = vsel %vm218, %v1482, 0.0
    %v1486 = vrot.slane %v1481, 1
    %v1487 = vrot.slane %v1483, 1
    %v1488 = vsel %vm55, %v1486, %v1487
    %v1491 = vmax.f32 %v1481, %v1488
    %v1492 = vmax.f32 %v1483, %v1487
    %v1493 = vrot.slane %v1481, 2
    %v1494 = vrot.slane %v1483, 2
    %v1495 = vsel %vm218, %v1493, %v1494
    %v1498 = vmax.f32 %v1491, %v1495
    %v1499 = vmax.f32 %v1492, %v1494
    %1500 = vst.msk [vmem:[#allocation3] sm:$0xff] %vm601, %v1498
    %1501 = vst.msk [vmem:[#allocation3 + $0x8] sm:$0x1f] %vm603, %v1499
    %v1502 = vld [vmem:[#allocation3] ss:$2 sm:$0x7f]
    %v1503 = vmax.f32 %v1502, 0.0
    %v1505 = vrot.slane %v1503, 7
    %v1507 = vsel %vm315, 0.0, %v1505
    %1509 = vset.pattern.permute.xlu0 0
    %1510 = vperm.xlu0 %1509, %v1507
    %v1511 = vpop.permute.xlu0 %1510
    %v1513 = vmul.f32 %v1511, %v336
    %1514 = vset.pattern.permute.xlu0 1
    %1515 = vperm.xlu0 %1514, %v1507
    %v1516 = vpop.permute.xlu0 %1515
    %v1518 = vmul.f32 %v1516, %v350
    %v1519 = vadd.f32 %v1513, %v1518
    %1520 = vset.pattern.permute.xlu0 2
    %1521 = vperm.xlu0 %1520, %v1507
    %v1522 = vpop.permute.xlu0 %1521
    %v1524 = vmul.f32 %v1522, %v366
    %v1525 = vadd.f32 %v1519, %v1524
    %v1526 = vmul.f32 %v1511, %v374
    %v1528 = vrot.slane %v1526, 1
    %v1530 = vadd.f32 %v1525, %v1528
    %v1531 = vmul.f32 %v1516, %v389
    %v1533 = vrot.slane %v1531, 1
    %v1535 = vadd.f32 %v1530, %v1533
    %v1536 = vmul.f32 %v1522, %v404
    %v1538 = vrot.slane %v1536, 1
    %v1540 = vadd.f32 %v1535, %v1538
    %v1541 = vmul.f32 %v1511, %v419
    %v1543 = vrot.slane %v1541, 2
    %v1544 = vsel %vm218, %v1543, %v654
    %v1546 = vadd.f32 %v1540, %v1544
    %v1547 = vmul.f32 %v1516, %v434
    %v1549 = vrot.slane %v1547, 2
    %v1550 = vsel %vm218, %v1549, %v667
    %v1552 = vadd.f32 %v1546, %v1550
    %v1553 = vmul.f32 %v1522, %v449
    %v1555 = vrot.slane %v1553, 2
    %v1556 = vsel %vm218, %v1555, %v680
    %v1558 = vadd.f32 %v1552, %v1556
    %v1559 = vadd.f32 %v1558, %v465
    %v1560 = vmax.f32 %v1559, 0.0
    %v1562 = vrot.slane %v1560, 7
    %v1564 = vsel %vm315, 0.0, %v1562
    %1566 = vset.pattern.permute.xlu0 0
    %1567 = vperm.xlu0 %1566, %v1564
    %v1568 = vpop.permute.xlu0 %1567
    %v1570 = vmul.f32 %v1568, %v336
    %1571 = vset.pattern.permute.xlu0 1
    %1572 = vperm.xlu0 %1571, %v1564
    %v1573 = vpop.permute.xlu0 %1572
    %v1575 = vmul.f32 %v1573, %v350
    %v1576 = vadd.f32 %v1570, %v1575
    %1577 = vset.pattern.permute.xlu0 2
    %1578 = vperm.xlu0 %1577, %v1564
    %v1579 = vpop.permute.xlu0 %1578
    %v1581 = vmul.f32 %v1579, %v366
    %v1582 = vadd.f32 %v1576, %v1581
    %v1583 = vmul.f32 %v1568, %v374
    %v1585 = vrot.slane %v1583, 1
    %v1587 = vadd.f32 %v1582, %v1585
    %v1588 = vmul.f32 %v1573, %v389
    %v1590 = vrot.slane %v1588, 1
    %v1592 = vadd.f32 %v1587, %v1590
    %v1593 = vmul.f32 %v1579, %v404
    %v1595 = vrot.slane %v1593, 1
    %v1597 = vadd.f32 %v1592, %v1595
    %v1598 = vmul.f32 %v1568, %v419
    %v1600 = vrot.slane %v1598, 2
    %v1601 = vsel %vm218, %v1600, %v654
    %v1603 = vadd.f32 %v1597, %v1601
    %v1604 = vmul.f32 %v1573, %v434
    %v1606 = vrot.slane %v1604, 2
    %v1607 = vsel %vm218, %v1606, %v667
    %v1609 = vadd.f32 %v1603, %v1607
    %v1610 = vmul.f32 %v1579, %v449
    %v1612 = vrot.slane %v1610, 2
    %v1613 = vsel %vm218, %v1612, %v680
    %v1615 = vadd.f32 %v1609, %v1613
    %v1616 = vadd.f32 %v1615, %v465
    %v1617 = vadd.f32 %v1616, %v1502
    %v1618 = vsel %vm55, %v1617, 0.0
    %v1620 = vrot.slane %v1618, 1
    %v1622 = vmax.f32 %v1618, %v1620
    %v1623 = vrot.slane %v1618, 2
    %v1625 = vmax.f32 %v1622, %v1623
    %1626 = vst.msk [vmem:[#allocation3] sm:$0x3f] %vm751, %v1625
    %v1627 = vld [vmem:[#allocation3] ss:$2 sm:$0x7]
    %v1628 = vmax.f32 %v1627, 0.0
    %v1630 = vrot.slane %v1628, 7
    %v1632 = vsel %vm315, 0.0, %v1630
    %v1633 = vsel %vm759, %v1632, 0.0
    %1635 = vset.pattern.permute.xlu0 0
    %1636 = vperm.xlu0 %1635, %v1633
    %v1637 = vpop.permute.xlu0 %1636
    %v1639 = vmul.f32 %v1637, %v336
    %1640 = vset.pattern.permute.xlu0 1
    %1641 = vperm.xlu0 %1640, %v1633
    %v1642 = vpop.permute.xlu0 %1641
    %v1644 = vmul.f32 %v1642, %v350
    %v1645 = vadd.f32 %v1639, %v1644
    %1646 = vset.pattern.permute.xlu0 2
    %1647 = vperm.xlu0 %1646, %v1633
    %v1648 = vpop.permute.xlu0 %1647
    %v1650 = vmul.f32 %v1648, %v366
    %v1651 = vadd.f32 %v1645, %v1650
    %v1652 = vmul.f32 %v1637, %v374
    %v1654 = vrot.slane %v1652, 1
    %v1656 = vadd.f32 %v1651, %v1654
    %v1657 = vmul.f32 %v1642, %v389
    %v1659 = vrot.slane %v1657, 1
    %v1661 = vadd.f32 %v1656, %v1659
    %v1662 = vmul.f32 %v1648, %v404
    %v1664 = vrot.slane %v1662, 1
    %v1666 = vadd.f32 %v1661, %v1664
    %v1667 = vmul.f32 %v1637, %v419
    %v1669 = vrot.slane %v1667, 2
    %v1671 = vadd.f32 %v1666, %v1669
    %v1672 = vmul.f32 %v1642, %v434
    %v1674 = vrot.slane %v1672, 2
    %v1676 = vadd.f32 %v1671, %v1674
    %v1677 = vmul.f32 %v1648, %v449
    %v1679 = vrot.slane %v1677, 2
    %v1681 = vadd.f32 %v1676, %v1679
    %v1682 = vadd.f32 %v1681, %v465
    %v1683 = vmax.f32 %v1682, 0.0
    %v1685 = vrot.slane %v1683, 7
    %v1687 = vsel %vm315, 0.0, %v1685
    %v1688 = vsel %vm759, %v1687, 0.0
    %1690 = vset.pattern.permute.xlu0 0
    %1691 = vperm.xlu0 %1690, %v1688
    %v1692 = vpop.permute.xlu0 %1691
    %v1694 = vmul.f32 %v1692, %v336
    %1695 = vset.pattern.permute.xlu0 1
    %1696 = vperm.xlu0 %1695, %v1688
    %v1697 = vpop.permute.xlu0 %1696
    %v1699 = vmul.f32 %v1697, %v350
    %v1700 = vadd.f32 %v1694, %v1699
    %1701 = vset.pattern.permute.xlu0 2
    %1702 = vperm.xlu0 %1701, %v1688
    %v1703 = vpop.permute.xlu0 %1702
    %v1705 = vmul.f32 %v1703, %v366
    %v1706 = vadd.f32 %v1700, %v1705
    %v1707 = vmul.f32 %v1692, %v374
    %v1709 = vrot.slane %v1707, 1
    %v1711 = vadd.f32 %v1706, %v1709
    %v1712 = vmul.f32 %v1697, %v389
    %v1714 = vrot.slane %v1712, 1
    %v1716 = vadd.f32 %v1711, %v1714
    %v1717 = vmul.f32 %v1703, %v404
    %v1719 = vrot.slane %v1717, 1
    %v1721 = vadd.f32 %v1716, %v1719
    %v1722 = vmul.f32 %v1692, %v419
    %v1724 = vrot.slane %v1722, 2
    %v1726 = vadd.f32 %v1721, %v1724
    %v1727 = vmul.f32 %v1697, %v434
    %v1729 = vrot.slane %v1727, 2
    %v1731 = vadd.f32 %v1726, %v1729
    %v1732 = vmul.f32 %v1703, %v449
    %v1734 = vrot.slane %v1732, 2
    %v1736 = vadd.f32 %v1731, %v1734
    %v1737 = vadd.f32 %v1736, %v465
    %v1738 = vadd.f32 %v1737, %v1627
    %v1739 = vsel %vm866, %v1738, 0.0
    %v1741 = vrot.slane %v1739, 1
    %v1743 = vmax.f32 %v1739, %v1741
    %v1744 = vrot.slane %v1739, 2
    %v1746 = vmax.f32 %v1743, %v1744
    %v1747 = vmax.f32 %v1746, 0.0
    %v1749 = vrot.slane %v1747, 7
    %v1751 = vsel %vm315, 0.0, %v1749
    %v1752 = vsel %vm880, %v1751, 0.0
    %1754 = vset.pattern.permute.xlu0 0
    %1755 = vperm.xlu0 %1754, %v1752
    %v1756 = vpop.permute.xlu0 %1755
    %v1758 = vmul.f32 %v1756, %v48
    %1759 = vset.pattern.permute.xlu0 1
    %1760 = vperm.xlu0 %1759, %v1752
    %v1761 = vpop.permute.xlu0 %1760
    %v1763 = vmul.f32 %v1761, %v893
    %v1764 = vadd.f32 %v1758, %v1763
    %1765 = vset.pattern.permute.xlu0 2
    %1766 = vperm.xlu0 %1765, %v1752
    %v1767 = vpop.permute.xlu0 %1766
    %v1769 = vmul.f32 %v1767, %v901
    %v1770 = vadd.f32 %v1764, %v1769
    %v1771 = vmul.f32 %v1756, %v901
    %v1773 = vrot.slane %v1771, 1
    %v1775 = vadd.f32 %v1770, %v1773
    %v1776 = vmul.f32 %v1761, %v910
    %v1778 = vrot.slane %v1776, 1
    %v1780 = vadd.f32 %v1775, %v1778
    %v1781 = vmul.f32 %v1767, %v917
    %v1783 = vrot.slane %v1781, 1
    %v1785 = vadd.f32 %v1780, %v1783
    %v1786 = vmul.f32 %v1756, %v917
    %v1788 = vrot.slane %v1786, 2
    %v1790 = vadd.f32 %v1785, %v1788
    %v1791 = vmul.f32 %v1761, %v929
    %v1793 = vrot.slane %v1791, 2
    %v1795 = vadd.f32 %v1790, %v1793
    %v1796 = vmul.f32 %v1767, %v937
    %v1798 = vrot.slane %v1796, 2
    %v1800 = vadd.f32 %v1795, %v1798
    %v1801 = vadd.f32 %v1800, %v46
    %v1802 = vmax.f32 %v1801, 0.0
    %v1804 = vrot.slane %v1802, 7
    %v1806 = vsel %vm315, 0.0, %v1804
    %v1807 = vsel %vm880, %v1806, 0.0
    %1809 = vset.pattern.permute.xlu0 0
    %1810 = vperm.xlu0 %1809, %v1807
    %v1811 = vpop.permute.xlu0 %1810
    %v1813 = vmul.f32 %v1811, %v48
    %1814 = vset.pattern.permute.xlu0 1
    %1815 = vperm.xlu0 %1814, %v1807
    %v1816 = vpop.permute.xlu0 %1815
    %v1818 = vmul.f32 %v1816, %v893
    %v1819 = vadd.f32 %v1813, %v1818
    %1820 = vset.pattern.permute.xlu0 2
    %1821 = vperm.xlu0 %1820, %v1807
    %v1822 = vpop.permute.xlu0 %1821
    %v1824 = vmul.f32 %v1822, %v901
    %v1825 = vadd.f32 %v1819, %v1824
    %v1826 = vmul.f32 %v1811, %v901
    %v1828 = vrot.slane %v1826, 1
    %v1830 = vadd.f32 %v1825, %v1828
    %v1831 = vmul.f32 %v1816, %v910
    %v1833 = vrot.slane %v1831, 1
    %v1835 = vadd.f32 %v1830, %v1833
    %v1836 = vmul.f32 %v1822, %v917
    %v1838 = vrot.slane %v1836, 1
    %v1840 = vadd.f32 %v1835, %v1838
    %v1841 = vmul.f32 %v1811, %v917
    %v1843 = vrot.slane %v1841, 2
    %v1845 = vadd.f32 %v1840, %v1843
    %v1846 = vmul.f32 %v1816, %v929
    %v1848 = vrot.slane %v1846, 2
    %v1850 = vadd.f32 %v1845, %v1848
    %v1851 = vmul.f32 %v1822, %v937
    %v1853 = vrot.slane %v1851, 2
    %v1855 = vadd.f32 %v1850, %v1853
    %v1856 = vadd.f32 %v1855, %v46
    %v1857 = vadd.f32 %v1856, %v1746
    %v1859 = vrot.slane %v1857, 7
    %v1861 = vsel %vm315, %v1000, %v1859
    %1863 = vset.pattern.permute.xlu0 0
    %1864 = vperm.xlu0 %1863, %v1861
    %v1865 = vpop.permute.xlu0 %1864
    %v1867 = vlaneseq
    %v1868 = vshrl.u32 %v1867, 7
    %v1869 = vsub.s32 0, %v1868
    %v1870 = vrot.slane %v50, %v1869
    %v1871 = vmul.f32 %v1865, %v1870
    %1872 = vset.pattern.permute.xlu0 1
    %1873 = vperm.xlu0 %1872, %v1861
    %v1874 = vpop.permute.xlu0 %1873
    %v1876 = vlaneseq
    %v1877 = vshrl.u32 %v1876, 7
    %v1878 = vsub.s32 1, %v1877
    %v1879 = vrot.slane %v50, %v1878
    %v1880 = vmul.f32 %v1874, %v1879
    %v1881 = vadd.f32 %v1871, %v1880
    %1882 = vset.pattern.permute.xlu0 2
    %1883 = vperm.xlu0 %1882, %v1861
    %v1884 = vpop.permute.xlu0 %1883
    %v1886 = vlaneseq
    %v1887 = vshrl.u32 %v1886, 7
    %v1888 = vsub.s32 2, %v1887
    %v1889 = vrot.slane %v50, %v1888
    %v1890 = vmul.f32 %v1884, %v1889
    %v1891 = vadd.f32 %v1881, %v1890
    %v1893 = vlaneseq
    %v1894 = vshrl.u32 %v1893, 7
    %v1895 = vsub.s32 0, %v1894
    %v1896 = vrot.slane %v47, %v1895
    %v1898 = vadd.f32 %v1891, %v1896
    %vm1899 = vcmask 25600
    %1900 = vst.msk [vmem:[#allocation4] sm:$0x3] %vm1899, %v1898
    // Predicated region
    $region38: #{tpu_custom_call.1} parent=1 // pred_check
      _
    $region39: #{tpu_custom_call.1} parent=1 // pred_check_branch
      %1902 = sbr.rel (0) target = $region41
    $region40: #{tpu_custom_call.1} parent=1 // pred_region
      %s1904 = ssub.s32 32, 32
      %1905 = vsyncadd [#allocation5], %s1904
      %s1907 = sshll.u32 [#allocation4], 4
      %s1908 = int_to_ptr.vmem [resolvable:$true] %s1907
      %1910 = dma.vmem_to_hbm [thread:$0]  %s1908, 32, %s9, [#allocation5]
    $region41: #{tpu_custom_call.1} parent=1 // pred_fallthru
      _
    // Predicated region
    $region42: #{tpu_custom_call.1} parent=1 // pred_check
      _
    $region43: #{tpu_custom_call.1} parent=1 // pred_check_branch
      %1912 = sbr.rel (0) target = $region45
    $region44: #{tpu_custom_call.1} parent=1 // pred_region
      %1913 = dma.done [#allocation5], 32
    $region45: #{tpu_custom_call.1} parent=1 // pred_fallthru
      _
    %1914 = vsyncpa [#allocation5], 1

</llo_original>
